<compile_context>
chip_gen: v6e
topology: v6e:2x2x1
jax: 0.10.0
libtpu: 0.0.40
codegen_flags: <defaults>
</compile_context>

<pallas_src>
import functools

import jax
import jax.numpy as jnp
from jax.experimental import pallas as pl
from jax.experimental.pallas import tpu as pltpu


def _round_up(x, m):
    return (x + m - 1) // m * m


# ----------------------------------------------------------------------------
# The single fused decoder kernel (runs once per batch element, grid=(B,))
# ----------------------------------------------------------------------------
def _decoder_kernel(x_ref, wd_ref, bd_ref, w1_ref, b1_ref, w2_ref, b2_ref,
                    w3_ref, b3_ref, o_ref,
                    a2_rows, lhs2, a3_rows, lhs3, *,
                    expand_dim, latent_size):
    E = expand_dim
    ls = latent_size
    H1 = 2 * ls                       # cnn1 output spatial (cnn2 input)
    H2 = 4 * ls                       # cnn2 output spatial (cnn3 input)
    W2p = _round_up(H1 + 2, 8)        # padded, 8-aligned width for cnn2 gather
    W3p = _round_up(H2 + 2, 8)        # padded, 8-aligned width for cnn3 gather
    L2 = H1 * W2p                     # cnn2 GEMM rows (multiple of 8)
    L3 = H2 * W3p                     # cnn3 GEMM rows (multiple of 8)

    b = pl.program_id(0)

    # --- stage 1: dense + ReLU, then cnn1 folded to a dense map + ReLU -------
    xb = x_ref[pl.ds(b, 1), :]                                    # (1, hidden)
    h1 = jnp.dot(xb, wd_ref[...], preferred_element_type=jnp.float32)
    h1 = jnp.maximum(h1 + bd_ref[...], 0.0)                       # (1, E*ls*ls)
    h2 = jnp.dot(h1, w1_ref[...], preferred_element_type=jnp.float32)
    h2 = jnp.maximum(h2 + b1_ref[...], 0.0)                       # (1, H1*H1*E)

    # --- scatter the (H1, H1, E) activation into the zero-ring padded,
    #     row-flattened layout the cnn2 sub-pixel gather expects --------------
    a2_rows[...] = jnp.zeros_like(a2_rows)
    for h in range(H1):
        for w in range(H1):
            c0 = (h * H1 + w) * E
            row = (h + 1) * W2p + (w + 1)
            a2_rows[row:row + 1, :] = h2[:, c0:c0 + E]

    # --- cnn2 + ReLU: K-concat sub-pixel GEMM (single K=9*E MXU push) --------
    for dh in range(3):
        for dw in range(3):
            k9 = dh * 3 + dw
            off = dh * W2p + dw
            lhs2[:, k9 * E:(k9 + 1) * E] = a2_rows[off:off + L2, :]
    y2 = jnp.dot(lhs2[...], w2_ref[...], preferred_element_type=jnp.float32)
    y2 = jnp.maximum(y2 + b2_ref[...], 0.0)                       # (L2, >=4E)

    # --- pixel-shuffle the 4 cnn2 phases into the padded, row-flattened
    #     layout the cnn3 sub-pixel gather expects (all static row copies) ----
    a3_rows[...] = jnp.zeros_like(a3_rows)
    for hp in range(H1):
        for wq in range(H1):
            src = hp * W2p + wq
            for rh in range(2):
                for rw in range(2):
                    c0 = (rh * 2 + rw) * E
                    dst = (2 * hp + rh + 1) * W3p + (2 * wq + rw + 1)
                    a3_rows[dst:dst + 1, :] = y2[src:src + 1, c0:c0 + E]

    # --- cnn3 + sigmoid: K-concat sub-pixel GEMM, lane-dense 128-wide output -
    for dh in range(3):
        for dw in range(3):
            k9 = dh * 3 + dw
            off = dh * W3p + dw
            lhs3[:, k9 * E:(k9 + 1) * E] = a3_rows[off:off + L3, :]
    y3 = jnp.dot(lhs3[...], w3_ref[...], preferred_element_type=jnp.float32)
    y3 = y3 + b3_ref[...]
    # sigmoid(x) == 0.5*(tanh(x/2)+1): one EUP transcendental, no VALU Newton.
    o_ref[...] = 0.5 * (jnp.tanh(0.5 * y3) + 1.0)


# ----------------------------------------------------------------------------
# Forward wrapper: one pallas_call + one tiny XLA un-shuffle/transpose
# ----------------------------------------------------------------------------
def decoder_forward(x, prep, *, expand_dim, latent_size, output_dims):
    B = x.shape[0]
    E, ls = expand_dim, latent_size
    H1, H2, H3 = 2 * ls, 4 * ls, 8 * ls
    W2p = _round_up(H1 + 2, 8)
    W3p = _round_up(H2 + 2, 8)
    L2 = H1 * W2p
    L3 = H2 * W3p
    Q2p = (H1 + 2) * W2p + 8          # padded-row scratch (covers max shift)
    Q3p = (H2 + 2) * W3p + 8
    N3 = prep["cnn3_w"].shape[1]      # lane-padded 4*Cout (=128)

    kernel = functools.partial(_decoder_kernel, expand_dim=E, latent_size=ls)
    weight_args = (prep["dense_w"], prep["dense_b"], prep["cnn1_w"],
                   prep["cnn1_b"], prep["cnn2_w"], prep["cnn2_b"],
                   prep["cnn3_w"], prep["cnn3_b"])

    y = pl.pallas_call(
        kernel,
        out_shape=jax.ShapeDtypeStruct((B * L3, N3), jnp.float32),
        grid=(B,),
        in_specs=[pl.BlockSpec(x.shape, lambda b: (0, 0))]
                 + [pl.BlockSpec(w.shape, lambda b: (0, 0)) for w in weight_args],
        out_specs=pl.BlockSpec((L3, N3), lambda b: (b, 0)),
        scratch_shapes=[
            pltpu.VMEM((Q2p, E), jnp.float32),       # padded cnn2 input rows
            pltpu.VMEM((L2, 9 * E), jnp.float32),    # cnn2 K-concat LHS
            pltpu.VMEM((Q3p, E), jnp.float32),       # padded cnn3 input rows
            pltpu.VMEM((L3, 9 * E), jnp.float32),    # cnn3 K-concat LHS
        ],
        compiler_params=pltpu.CompilerParams(
            dimension_semantics=("parallel",),       # batch across v7x's 2 TCs
            vmem_limit_bytes=32 * 1024 * 1024,
        ),
    )(x, *weight_args)

    # Tiny epilogue glue (~6 KiB, one XLA fusion): drop padded columns, 2x2
    # pixel-shuffle of the 4 phases and HWC->CHW transpose to NCHW.
    y = y.reshape(B, H2, W3p, N3)[:, :, :H2, :4 * output_dims]
    y = y.reshape(B, H2, H2, 2, 2, output_dims)
    return y.transpose(0, 5, 1, 3, 2, 4).reshape(B, output_dims, H3, H3)


# ----------------------------------------------------------------------------
# One-off parameter re-layout (hoisted out of the jitted forward)
# ----------------------------------------------------------------------------
def _convt_ref_nchw(x, w):
    """Exact PyTorch ConvTranspose2d(k=4, s=2, p=1) without bias, NCHW / f32."""
    rhs = jnp.transpose(jnp.flip(w, (2, 3)), (1, 0, 2, 3))      # (Co, Ci, 4, 4)
    return jax.lax.conv_general_dilated(
        x, rhs, window_strides=(1, 1), padding=((2, 2), (2, 2)),
        lhs_dilation=(2, 2), rhs_dilation=(1, 1),
        dimension_numbers=("NCHW", "OIHW", "NCHW"),
        precision=jax.lax.Precision.HIGHEST)


def _fold_cnn1(w, b, ls):
    """Fold view+PixelShuffle(ls)+ConvTranspose2d on the ls x ls grid into a
    dense (expand*ls*ls, (2ls)^2*Co) matrix (exact by linearity)."""
    Ci, Co = w.shape[0], w.shape[1]
    k = Ci * ls * ls
    basis = jnp.eye(k, dtype=jnp.float32).reshape(k, Ci, ls, ls)
    out = _convt_ref_nchw(basis, w)                              # (k, Co, 2ls, 2ls)
    w_fold = out.transpose(0, 2, 3, 1).reshape(k, (2 * ls) * (2 * ls) * Co)
    b_fold = jnp.broadcast_to(b.reshape(1, 1, Co),
                              (2 * ls, 2 * ls, Co)).reshape(1, -1)
    return w_fold, b_fold


def _subpixel_weights(w, b):
    """Re-pack torch ConvTranspose2d(k=4,s=2,p=1) weight (Ci, Co, 4, 4) into
    the sub-pixel GEMM layout (9*Ci, 4*Co): shift (dh, dw), phase (rh, rw),
    tap (kh, kw) = (rh - 2*dh + 3, rw - 2*dw + 3) when inside the kernel."""
    Ci, Co = w.shape[0], w.shape[1]
    wsub = jnp.zeros((9 * Ci, 4 * Co), jnp.float32)
    for dh in range(3):
        for dw in range(3):
            for rh in range(2):
                for rw in range(2):
                    kh = rh - 2 * dh + 3
                    kw = rw - 2 * dw + 3
                    if 0 <= kh <= 3 and 0 <= kw <= 3:
                        r0 = (dh * 3 + dw) * Ci
                        c0 = (rh * 2 + rw) * Co
                        wsub = wsub.at[r0:r0 + Ci, c0:c0 + Co].set(w[:, :, kh, kw])
    bsub = jnp.tile(b.reshape(1, Co), (1, 4))
    return wsub, bsub


def _pad_lanes(w, b, n):
    """Zero-pad GEMM columns (and bias) up to n lanes for lane-dense stores."""
    pad = n - w.shape[1]
    if pad > 0:
        w = jnp.pad(w, ((0, 0), (0, pad)))
        b = jnp.pad(b, ((0, 0), (0, pad)))
    return w, b


def prepare_params(params, *, latent_size):
    w1_fold, b1_fold = _fold_cnn1(params["cnn1_w"], params["cnn1_b"], latent_size)
    w2, b2 = _subpixel_weights(params["cnn2_w"], params["cnn2_b"])
    w3, b3 = _subpixel_weights(params["cnn3_w"], params["cnn3_b"])
    w2, b2 = _pad_lanes(w2, b2, _round_up(max(w2.shape[1], 128), 128))
    w3, b3 = _pad_lanes(w3, b3, _round_up(max(w3.shape[1], 128), 128))
    return {
        "dense_w": params["dense_w"].T.astype(jnp.float32),     # (in, out)
        "dense_b": params["dense_b"].reshape(1, -1).astype(jnp.float32),
        "cnn1_w": w1_fold, "cnn1_b": b1_fold,
        "cnn2_w": w2, "cnn2_b": b2,
        "cnn3_w": w3, "cnn3_b": b3,
    }


# ----------------------------------------------------------------------------
# Independent pure-JAX reference (exact PyTorch semantics, NCHW)
# ----------------------------------------------------------------------------
def decoder_ref(x, params, *, expand_dim, latent_size):
    B = x.shape[0]
    h = jnp.dot(x, params["dense_w"].T,
                precision=jax.lax.Precision.HIGHEST) + params["dense_b"]
    h = jnp.maximum(h, 0.0)
    h = h.reshape(B, expand_dim, latent_size, latent_size)
    h = jnp.maximum(_convt_ref_nchw(h, params["cnn1_w"])
                    + params["cnn1_b"].reshape(1, -1, 1, 1), 0.0)
    h = jnp.maximum(_convt_ref_nchw(h, params["cnn2_w"])
                    + params["cnn2_b"].reshape(1, -1, 1, 1), 0.0)
    h = (_convt_ref_nchw(h, params["cnn3_w"])
         + params["cnn3_b"].reshape(1, -1, 1, 1))
    return jax.nn.sigmoid(h)


# ----------------------------------------------------------------------------
# Deterministic parameter init (Kaiming-normal fan_out / relu, like the module)
# ----------------------------------------------------------------------------
def init_params(key, hidden_dim, output_dims, output_size, expand_dim):
    ls = output_size >> 3
    dense_out = expand_dim * ls * ls
    ks = jax.random.split(key, 8)

    def kaiming_fan_out(k, shape, fan_out):
        return jax.random.normal(k, shape, jnp.float32) * jnp.sqrt(2.0 / fan_out)

    return {
        "dense_w": kaiming_fan_out(ks[0], (dense_out, hidden_dim), dense_out),
        "dense_b": 0.01 * jax.random.normal(ks[1], (dense_out,), jnp.float32),
        "cnn1_w": kaiming_fan_out(ks[2], (expand_dim, expand_dim, 4, 4), expand_dim * 16),
        "cnn1_b": 0.01 * jax.random.normal(ks[3], (expand_dim,), jnp.float32),
        "cnn2_w": kaiming_fan_out(ks[4], (expand_dim, expand_dim, 4, 4), expand_dim * 16),
        "cnn2_b": 0.01 * jax.random.normal(ks[5], (expand_dim,), jnp.float32),
        "cnn3_w": kaiming_fan_out(ks[6], (expand_dim, output_dims, 4, 4), expand_dim * 16),
        "cnn3_b": 0.01 * jax.random.normal(ks[7], (output_dims,), jnp.float32),
    }


if __name__ == "__main__":
    # Small config consistent with the module: output_size=16 -> latent_size=2.
    hidden_dim = 32
    output_dims = 3
    output_size = 16
    expand_dim = 32
    batch = 2
    latent_size = output_size >> 3

    key = jax.random.PRNGKey(0)
    pkey, xkey = jax.random.split(key)
    params = init_params(pkey, hidden_dim, output_dims, output_size, expand_dim)
    x = jax.random.normal(xkey, (batch, hidden_dim), jnp.float32)

    # One-off weight re-layout, outside the latency-critical forward.
    prep = prepare_params(params, latent_size=latent_size)

    fwd = jax.jit(functools.partial(decoder_forward,
                                    expand_dim=expand_dim,
                                    latent_size=latent_size,
                                    output_dims=output_dims))
    out = jax.block_until_ready(fwd(x, prep))

    # Independent reference (lax.conv_general_dilated, exact torch semantics).
    ref = decoder_ref(x, params, expand_dim=expand_dim, latent_size=latent_size)

    assert out.shape == (batch, output_dims, output_size, output_size), out.shape
    assert bool(jnp.all(jnp.isfinite(out)))
    assert bool(jnp.allclose(out, ref, atol=1e-4, rtol=1e-4)), \
        float(jnp.max(jnp.abs(out - ref)))
    print("KERNEL_OK")
</pallas_src>

<mosaic_0001>
module attributes {stable_mosaic.version = 11 : i64} {
  func.func @_decoder_kernel(%arg0: i32, %arg1: memref<2x32xf32, #tpu.memory_space<vmem>>, %arg2: memref<32x128xf32, #tpu.memory_space<vmem>>, %arg3: memref<1x128xf32, #tpu.memory_space<vmem>>, %arg4: memref<128x512xf32, #tpu.memory_space<vmem>>, %arg5: memref<1x512xf32, #tpu.memory_space<vmem>>, %arg6: memref<288x128xf32, #tpu.memory_space<vmem>>, %arg7: memref<1x128xf32, #tpu.memory_space<vmem>>, %arg8: memref<288x128xf32, #tpu.memory_space<vmem>>, %arg9: memref<1x128xf32, #tpu.memory_space<vmem>>, %arg10: memref<128x128xf32, #tpu.memory_space<vmem>>, %arg11: memref<56x32xf32, #tpu.memory_space<vmem>>, %arg12: memref<32x288xf32, #tpu.memory_space<vmem>>, %arg13: memref<168x32xf32, #tpu.memory_space<vmem>>, %arg14: memref<128x288xf32, #tpu.memory_space<vmem>>) attributes {dimension_semantics = [#tpu.dimension_semantics<parallel>], iteration_bounds = array<i64: 2>, scalar_prefetch = 0 : i64, scratch_operands = 4 : i64, tpu.core_type = #tpu.core_type<tc>, window_params = [{pipeline_mode = #tpu.pipeline_mode<synchronous>, transform_indices = @transform_0, window_bounds = array<i64: 2, 32>}, {pipeline_mode = #tpu.pipeline_mode<synchronous>, transform_indices = @transform_1, window_bounds = array<i64: 32, 128>}, {pipeline_mode = #tpu.pipeline_mode<synchronous>, transform_indices = @transform_2, window_bounds = array<i64: 1, 128>}, {pipeline_mode = #tpu.pipeline_mode<synchronous>, transform_indices = @transform_3, window_bounds = array<i64: 128, 512>}, {pipeline_mode = #tpu.pipeline_mode<synchronous>, transform_indices = @transform_4, window_bounds = array<i64: 1, 512>}, {pipeline_mode = #tpu.pipeline_mode<synchronous>, transform_indices = @transform_5, window_bounds = array<i64: 288, 128>}, {pipeline_mode = #tpu.pipeline_mode<synchronous>, transform_indices = @transform_6, window_bounds = array<i64: 1, 128>}, {pipeline_mode = #tpu.pipeline_mode<synchronous>, transform_indices = @transform_7, window_bounds = array<i64: 288, 128>}, {pipeline_mode = #tpu.pipeline_mode<synchronous>, transform_indices = @transform_8, window_bounds = array<i64: 1, 128>}, {transform_indices = @transform_9, window_bounds = array<i64: 128, 128>}]} {
    %0 = arith.index_cast %arg0 : i32 to index
    %c0 = arith.constant 0 : index
    %1 = vector.load %arg1[%0, %c0] : memref<2x32xf32, #tpu.memory_space<vmem>>, vector<1x32xf32>
    %c0_0 = arith.constant 0 : index
    %c0_1 = arith.constant 0 : index
    %2 = vector.load %arg2[%c0_0, %c0_1] : memref<32x128xf32, #tpu.memory_space<vmem>>, vector<32x128xf32>
    %cst = arith.constant dense<0.000000e+00> : vector<1x128xf32>
    %3 = tpu.matmul %1, %2, %cst {dimension_numbers = #tpu.dot_dimension_numbers<[1], [0], [0], [1], [0, 0, 1, 1], [], []>} : vector<1x32xf32>, vector<32x128xf32>, vector<1x128xf32> -> vector<1x128xf32>
    %c0_2 = arith.constant 0 : index
    %c0_3 = arith.constant 0 : index
    %4 = vector.load %arg3[%c0_2, %c0_3] : memref<1x128xf32, #tpu.memory_space<vmem>>, vector<1x128xf32>
    %5 = arith.addf %3, %4 : vector<1x128xf32>
    %cst_4 = arith.constant 0.000000e+00 : f32
    %6 = vector.broadcast %cst_4 : f32 to vector<1x128xf32>
    %7 = arith.maximumf %5, %6 : vector<1x128xf32>
    %c0_5 = arith.constant 0 : index
    %c0_6 = arith.constant 0 : index
    %8 = vector.load %arg4[%c0_5, %c0_6] : memref<128x512xf32, #tpu.memory_space<vmem>>, vector<128x512xf32>
    %cst_7 = arith.constant dense<0.000000e+00> : vector<1x512xf32>
    %9 = tpu.matmul %7, %8, %cst_7 {dimension_numbers = #tpu.dot_dimension_numbers<[1], [0], [0], [1], [0, 0, 1, 1], [], []>} : vector<1x128xf32>, vector<128x512xf32>, vector<1x512xf32> -> vector<1x512xf32>
    %c0_8 = arith.constant 0 : index
    %c0_9 = arith.constant 0 : index
    %10 = vector.load %arg5[%c0_8, %c0_9] : memref<1x512xf32, #tpu.memory_space<vmem>>, vector<1x512xf32>
    %11 = arith.addf %9, %10 : vector<1x512xf32>
    %cst_10 = arith.constant 0.000000e+00 : f32
    %12 = vector.broadcast %cst_10 : f32 to vector<1x512xf32>
    %13 = arith.maximumf %11, %12 : vector<1x512xf32>
    %cst_11 = arith.constant 0.000000e+00 : f32
    %14 = vector.broadcast %cst_11 : f32 to vector<56x32xf32>
    %c0_12 = arith.constant 0 : index
    %c0_13 = arith.constant 0 : index
    %15 = vector.load %arg11[%c0_12, %c0_13] : memref<56x32xf32, #tpu.memory_space<vmem>>, vector<56x32xf32>
    tpu.vector_store %arg11[%c0_12, %c0_13], %14 {strides = array<i32>} : memref<56x32xf32, #tpu.memory_space<vmem>>, vector<56x32xf32>,
    %16 = vector.extract_strided_slice %13 {offsets = [0, 0], sizes = [1, 32], strides = [1, 1]} : vector<1x512xf32> to vector<1x32xf32>
    %c9 = arith.constant 9 : index
    %c0_14 = arith.constant 0 : index
    %17 = vector.load %arg11[%c9, %c0_14] : memref<56x32xf32, #tpu.memory_space<vmem>>, vector<1x32xf32>
    tpu.vector_store %arg11[%c9, %c0_14], %16 {strides = array<i32>} : memref<56x32xf32, #tpu.memory_space<vmem>>, vector<1x32xf32>,
    %18 = vector.extract_strided_slice %13 {offsets = [0, 32], sizes = [1, 32], strides = [1, 1]} : vector<1x512xf32> to vector<1x32xf32>
    %c10 = arith.constant 10 : index
    %c0_15 = arith.constant 0 : index
    %19 = vector.load %arg11[%c10, %c0_15] : memref<56x32xf32, #tpu.memory_space<vmem>>, vector<1x32xf32>
    tpu.vector_store %arg11[%c10, %c0_15], %18 {strides = array<i32>} : memref<56x32xf32, #tpu.memory_space<vmem>>, vector<1x32xf32>,
    %20 = vector.extract_strided_slice %13 {offsets = [0, 64], sizes = [1, 32], strides = [1, 1]} : vector<1x512xf32> to vector<1x32xf32>
    %c11 = arith.constant 11 : index
    %c0_16 = arith.constant 0 : index
    %21 = vector.load %arg11[%c11, %c0_16] : memref<56x32xf32, #tpu.memory_space<vmem>>, vector<1x32xf32>
    tpu.vector_store %arg11[%c11, %c0_16], %20 {strides = array<i32>} : memref<56x32xf32, #tpu.memory_space<vmem>>, vector<1x32xf32>,
    %22 = vector.extract_strided_slice %13 {offsets = [0, 96], sizes = [1, 32], strides = [1, 1]} : vector<1x512xf32> to vector<1x32xf32>
    %c12 = arith.constant 12 : index
    %c0_17 = arith.constant 0 : index
    %23 = vector.load %arg11[%c12, %c0_17] : memref<56x32xf32, #tpu.memory_space<vmem>>, vector<1x32xf32>
    tpu.vector_store %arg11[%c12, %c0_17], %22 {strides = array<i32>} : memref<56x32xf32, #tpu.memory_space<vmem>>, vector<1x32xf32>,
    %24 = vector.extract_strided_slice %13 {offsets = [0, 128], sizes = [1, 32], strides = [1, 1]} : vector<1x512xf32> to vector<1x32xf32>
    %c17 = arith.constant 17 : index
    %c0_18 = arith.constant 0 : index
    %25 = vector.load %arg11[%c17, %c0_18] : memref<56x32xf32, #tpu.memory_space<vmem>>, vector<1x32xf32>
    tpu.vector_store %arg11[%c17, %c0_18], %24 {strides = array<i32>} : memref<56x32xf32, #tpu.memory_space<vmem>>, vector<1x32xf32>,
    %26 = vector.extract_strided_slice %13 {offsets = [0, 160], sizes = [1, 32], strides = [1, 1]} : vector<1x512xf32> to vector<1x32xf32>
    %c18 = arith.constant 18 : index
    %c0_19 = arith.constant 0 : index
    %27 = vector.load %arg11[%c18, %c0_19] : memref<56x32xf32, #tpu.memory_space<vmem>>, vector<1x32xf32>
    tpu.vector_store %arg11[%c18, %c0_19], %26 {strides = array<i32>} : memref<56x32xf32, #tpu.memory_space<vmem>>, vector<1x32xf32>,
    %28 = vector.extract_strided_slice %13 {offsets = [0, 192], sizes = [1, 32], strides = [1, 1]} : vector<1x512xf32> to vector<1x32xf32>
    %c19 = arith.constant 19 : index
    %c0_20 = arith.constant 0 : index
    %29 = vector.load %arg11[%c19, %c0_20] : memref<56x32xf32, #tpu.memory_space<vmem>>, vector<1x32xf32>
    tpu.vector_store %arg11[%c19, %c0_20], %28 {strides = array<i32>} : memref<56x32xf32, #tpu.memory_space<vmem>>, vector<1x32xf32>,
    %30 = vector.extract_strided_slice %13 {offsets = [0, 224], sizes = [1, 32], strides = [1, 1]} : vector<1x512xf32> to vector<1x32xf32>
    %c20 = arith.constant 20 : index
    %c0_21 = arith.constant 0 : index
    %31 = vector.load %arg11[%c20, %c0_21] : memref<56x32xf32, #tpu.memory_space<vmem>>, vector<1x32xf32>
    tpu.vector_store %arg11[%c20, %c0_21], %30 {strides = array<i32>} : memref<56x32xf32, #tpu.memory_space<vmem>>, vector<1x32xf32>,
    %32 = vector.extract_strided_slice %13 {offsets = [0, 256], sizes = [1, 32], strides = [1, 1]} : vector<1x512xf32> to vector<1x32xf32>
    %c25 = arith.constant 25 : index
    %c0_22 = arith.constant 0 : index
    %33 = vector.load %arg11[%c25, %c0_22] : memref<56x32xf32, #tpu.memory_space<vmem>>, vector<1x32xf32>
    tpu.vector_store %arg11[%c25, %c0_22], %32 {strides = array<i32>} : memref<56x32xf32, #tpu.memory_space<vmem>>, vector<1x32xf32>,
    %34 = vector.extract_strided_slice %13 {offsets = [0, 288], sizes = [1, 32], strides = [1, 1]} : vector<1x512xf32> to vector<1x32xf32>
    %c26 = arith.constant 26 : index
    %c0_23 = arith.constant 0 : index
    %35 = vector.load %arg11[%c26, %c0_23] : memref<56x32xf32, #tpu.memory_space<vmem>>, vector<1x32xf32>
    tpu.vector_store %arg11[%c26, %c0_23], %34 {strides = array<i32>} : memref<56x32xf32, #tpu.memory_space<vmem>>, vector<1x32xf32>,
    %36 = vector.extract_strided_slice %13 {offsets = [0, 320], sizes = [1, 32], strides = [1, 1]} : vector<1x512xf32> to vector<1x32xf32>
    %c27 = arith.constant 27 : index
    %c0_24 = arith.constant 0 : index
    %37 = vector.load %arg11[%c27, %c0_24] : memref<56x32xf32, #tpu.memory_space<vmem>>, vector<1x32xf32>
    tpu.vector_store %arg11[%c27, %c0_24], %36 {strides = array<i32>} : memref<56x32xf32, #tpu.memory_space<vmem>>, vector<1x32xf32>,
    %38 = vector.extract_strided_slice %13 {offsets = [0, 352], sizes = [1, 32], strides = [1, 1]} : vector<1x512xf32> to vector<1x32xf32>
    %c28 = arith.constant 28 : index
    %c0_25 = arith.constant 0 : index
    %39 = vector.load %arg11[%c28, %c0_25] : memref<56x32xf32, #tpu.memory_space<vmem>>, vector<1x32xf32>
    tpu.vector_store %arg11[%c28, %c0_25], %38 {strides = array<i32>} : memref<56x32xf32, #tpu.memory_space<vmem>>, vector<1x32xf32>,
    %40 = vector.extract_strided_slice %13 {offsets = [0, 384], sizes = [1, 32], strides = [1, 1]} : vector<1x512xf32> to vector<1x32xf32>
    %c33 = arith.constant 33 : index
    %c0_26 = arith.constant 0 : index
    %41 = vector.load %arg11[%c33, %c0_26] : memref<56x32xf32, #tpu.memory_space<vmem>>, vector<1x32xf32>
    tpu.vector_store %arg11[%c33, %c0_26], %40 {strides = array<i32>} : memref<56x32xf32, #tpu.memory_space<vmem>>, vector<1x32xf32>,
    %42 = vector.extract_strided_slice %13 {offsets = [0, 416], sizes = [1, 32], strides = [1, 1]} : vector<1x512xf32> to vector<1x32xf32>
    %c34 = arith.constant 34 : index
    %c0_27 = arith.constant 0 : index
    %43 = vector.load %arg11[%c34, %c0_27] : memref<56x32xf32, #tpu.memory_space<vmem>>, vector<1x32xf32>
    tpu.vector_store %arg11[%c34, %c0_27], %42 {strides = array<i32>} : memref<56x32xf32, #tpu.memory_space<vmem>>, vector<1x32xf32>,
    %44 = vector.extract_strided_slice %13 {offsets = [0, 448], sizes = [1, 32], strides = [1, 1]} : vector<1x512xf32> to vector<1x32xf32>
    %c35 = arith.constant 35 : index
    %c0_28 = arith.constant 0 : index
    %45 = vector.load %arg11[%c35, %c0_28] : memref<56x32xf32, #tpu.memory_space<vmem>>, vector<1x32xf32>
    tpu.vector_store %arg11[%c35, %c0_28], %44 {strides = array<i32>} : memref<56x32xf32, #tpu.memory_space<vmem>>, vector<1x32xf32>,
    %46 = vector.extract_strided_slice %13 {offsets = [0, 480], sizes = [1, 32], strides = [1, 1]} : vector<1x512xf32> to vector<1x32xf32>
    %c36 = arith.constant 36 : index
    %c0_29 = arith.constant 0 : index
    %47 = vector.load %arg11[%c36, %c0_29] : memref<56x32xf32, #tpu.memory_space<vmem>>, vector<1x32xf32>
    tpu.vector_store %arg11[%c36, %c0_29], %46 {strides = array<i32>} : memref<56x32xf32, #tpu.memory_space<vmem>>, vector<1x32xf32>,
    %c0_30 = arith.constant 0 : index
    %c0_31 = arith.constant 0 : index
    %48 = vector.load %arg11[%c0_30, %c0_31] : memref<56x32xf32, #tpu.memory_space<vmem>>, vector<32x32xf32>
    %c0_32 = arith.constant 0 : index
    %c0_33 = arith.constant 0 : index
    %49 = vector.load %arg12[%c0_32, %c0_33] : memref<32x288xf32, #tpu.memory_space<vmem>>, vector<32x32xf32>
    tpu.vector_store %arg12[%c0_32, %c0_33], %48 {strides = array<i32>} : memref<32x288xf32, #tpu.memory_space<vmem>>, vector<32x32xf32>,
    %c1 = arith.constant 1 : index
    %c0_34 = arith.constant 0 : index
    %50 = vector.load %arg11[%c1, %c0_34] : memref<56x32xf32, #tpu.memory_space<vmem>>, vector<32x32xf32>
    %c0_35 = arith.constant 0 : index
    %c32 = arith.constant 32 : index
    %51 = vector.load %arg12[%c0_35, %c32] : memref<32x288xf32, #tpu.memory_space<vmem>>, vector<32x32xf32>
    tpu.vector_store %arg12[%c0_35, %c32], %50 {strides = array<i32>} : memref<32x288xf32, #tpu.memory_space<vmem>>, vector<32x32xf32>,
    %c2 = arith.constant 2 : index
    %c0_36 = arith.constant 0 : index
    %52 = vector.load %arg11[%c2, %c0_36] : memref<56x32xf32, #tpu.memory_space<vmem>>, vector<32x32xf32>
    %c0_37 = arith.constant 0 : index
    %c64 = arith.constant 64 : index
    %53 = vector.load %arg12[%c0_37, %c64] : memref<32x288xf32, #tpu.memory_space<vmem>>, vector<32x32xf32>
    tpu.vector_store %arg12[%c0_37, %c64], %52 {strides = array<i32>} : memref<32x288xf32, #tpu.memory_space<vmem>>, vector<32x32xf32>,
    %c8 = arith.constant 8 : index
    %c0_38 = arith.constant 0 : index
    %54 = vector.load %arg11[%c8, %c0_38] : memref<56x32xf32, #tpu.memory_space<vmem>>, vector<32x32xf32>
    %c0_39 = arith.constant 0 : index
    %c96 = arith.constant 96 : index
    %55 = vector.load %arg12[%c0_39, %c96] : memref<32x288xf32, #tpu.memory_space<vmem>>, vector<32x32xf32>
    tpu.vector_store %arg12[%c0_39, %c96], %54 {strides = array<i32>} : memref<32x288xf32, #tpu.memory_space<vmem>>, vector<32x32xf32>,
    %c9_40 = arith.constant 9 : index
    %c0_41 = arith.constant 0 : index
    %56 = vector.load %arg11[%c9_40, %c0_41] : memref<56x32xf32, #tpu.memory_space<vmem>>, vector<32x32xf32>
    %c0_42 = arith.constant 0 : index
    %c128 = arith.constant 128 : index
    %57 = vector.load %arg12[%c0_42, %c128] : memref<32x288xf32, #tpu.memory_space<vmem>>, vector<32x32xf32>
    tpu.vector_store %arg12[%c0_42, %c128], %56 {strides = array<i32>} : memref<32x288xf32, #tpu.memory_space<vmem>>, vector<32x32xf32>,
    %c10_43 = arith.constant 10 : index
    %c0_44 = arith.constant 0 : index
    %58 = vector.load %arg11[%c10_43, %c0_44] : memref<56x32xf32, #tpu.memory_space<vmem>>, vector<32x32xf32>
    %c0_45 = arith.constant 0 : index
    %c160 = arith.constant 160 : index
    %59 = vector.load %arg12[%c0_45, %c160] : memref<32x288xf32, #tpu.memory_space<vmem>>, vector<32x32xf32>
    tpu.vector_store %arg12[%c0_45, %c160], %58 {strides = array<i32>} : memref<32x288xf32, #tpu.memory_space<vmem>>, vector<32x32xf32>,
    %c16 = arith.constant 16 : index
    %c0_46 = arith.constant 0 : index
    %60 = vector.load %arg11[%c16, %c0_46] : memref<56x32xf32, #tpu.memory_space<vmem>>, vector<32x32xf32>
    %c0_47 = arith.constant 0 : index
    %c192 = arith.constant 192 : index
    %61 = vector.load %arg12[%c0_47, %c192] : memref<32x288xf32, #tpu.memory_space<vmem>>, vector<32x32xf32>
    tpu.vector_store %arg12[%c0_47, %c192], %60 {strides = array<i32>} : memref<32x288xf32, #tpu.memory_space<vmem>>, vector<32x32xf32>,
    %c17_48 = arith.constant 17 : index
    %c0_49 = arith.constant 0 : index
    %62 = vector.load %arg11[%c17_48, %c0_49] : memref<56x32xf32, #tpu.memory_space<vmem>>, vector<32x32xf32>
    %c0_50 = arith.constant 0 : index
    %c224 = arith.constant 224 : index
    %63 = vector.load %arg12[%c0_50, %c224] : memref<32x288xf32, #tpu.memory_space<vmem>>, vector<32x32xf32>
    tpu.vector_store %arg12[%c0_50, %c224], %62 {strides = array<i32>} : memref<32x288xf32, #tpu.memory_space<vmem>>, vector<32x32xf32>,
    %c18_51 = arith.constant 18 : index
    %c0_52 = arith.constant 0 : index
    %64 = vector.load %arg11[%c18_51, %c0_52] : memref<56x32xf32, #tpu.memory_space<vmem>>, vector<32x32xf32>
    %c0_53 = arith.constant 0 : index
    %c256 = arith.constant 256 : index
    %65 = vector.load %arg12[%c0_53, %c256] : memref<32x288xf32, #tpu.memory_space<vmem>>, vector<32x32xf32>
    tpu.vector_store %arg12[%c0_53, %c256], %64 {strides = array<i32>} : memref<32x288xf32, #tpu.memory_space<vmem>>, vector<32x32xf32>,
    %c0_54 = arith.constant 0 : index
    %c0_55 = arith.constant 0 : index
    %66 = vector.load %arg12[%c0_54, %c0_55] : memref<32x288xf32, #tpu.memory_space<vmem>>, vector<32x288xf32>
    %c0_56 = arith.constant 0 : index
    %c0_57 = arith.constant 0 : index
    %67 = vector.load %arg6[%c0_56, %c0_57] : memref<288x128xf32, #tpu.memory_space<vmem>>, vector<288x128xf32>
    %cst_58 = arith.constant dense<0.000000e+00> : vector<32x128xf32>
    %68 = tpu.matmul %66, %67, %cst_58 {dimension_numbers = #tpu.dot_dimension_numbers<[1], [0], [0], [1], [0, 0, 1, 1], [], []>} : vector<32x288xf32>, vector<288x128xf32>, vector<32x128xf32> -> vector<32x128xf32>
    %c0_59 = arith.constant 0 : index
    %c0_60 = arith.constant 0 : index
    %69 = vector.load %arg7[%c0_59, %c0_60] : memref<1x128xf32, #tpu.memory_space<vmem>>, vector<1x128xf32>
    %70 = vector.broadcast %69 : vector<1x128xf32> to vector<32x128xf32>
    %71 = arith.addf %68, %70 : vector<32x128xf32>
    %cst_61 = arith.constant 0.000000e+00 : f32
    %72 = vector.broadcast %cst_61 : f32 to vector<32x128xf32>
    %73 = arith.maximumf %71, %72 : vector<32x128xf32>
    %cst_62 = arith.constant 0.000000e+00 : f32
    %74 = vector.broadcast %cst_62 : f32 to vector<168x32xf32>
    %c0_63 = arith.constant 0 : index
    %c0_64 = arith.constant 0 : index
    %75 = vector.load %arg13[%c0_63, %c0_64] : memref<168x32xf32, #tpu.memory_space<vmem>>, vector<168x32xf32>
    tpu.vector_store %arg13[%c0_63, %c0_64], %74 {strides = array<i32>} : memref<168x32xf32, #tpu.memory_space<vmem>>, vector<168x32xf32>,
    %76 = vector.extract_strided_slice %73 {offsets = [0, 0], sizes = [1, 32], strides = [1, 1]} : vector<32x128xf32> to vector<1x32xf32>
    %c17_65 = arith.constant 17 : index
    %c0_66 = arith.constant 0 : index
    %77 = vector.load %arg13[%c17_65, %c0_66] : memref<168x32xf32, #tpu.memory_space<vmem>>, vector<1x32xf32>
    tpu.vector_store %arg13[%c17_65, %c0_66], %76 {strides = array<i32>} : memref<168x32xf32, #tpu.memory_space<vmem>>, vector<1x32xf32>,
    %78 = vector.extract_strided_slice %73 {offsets = [0, 32], sizes = [1, 32], strides = [1, 1]} : vector<32x128xf32> to vector<1x32xf32>
    %c18_67 = arith.constant 18 : index
    %c0_68 = arith.constant 0 : index
    %79 = vector.load %arg13[%c18_67, %c0_68] : memref<168x32xf32, #tpu.memory_space<vmem>>, vector<1x32xf32>
    tpu.vector_store %arg13[%c18_67, %c0_68], %78 {strides = array<i32>} : memref<168x32xf32, #tpu.memory_space<vmem>>, vector<1x32xf32>,
    %80 = vector.extract_strided_slice %73 {offsets = [0, 64], sizes = [1, 32], strides = [1, 1]} : vector<32x128xf32> to vector<1x32xf32>
    %c33_69 = arith.constant 33 : index
    %c0_70 = arith.constant 0 : index
    %81 = vector.load %arg13[%c33_69, %c0_70] : memref<168x32xf32, #tpu.memory_space<vmem>>, vector<1x32xf32>
    tpu.vector_store %arg13[%c33_69, %c0_70], %80 {strides = array<i32>} : memref<168x32xf32, #tpu.memory_space<vmem>>, vector<1x32xf32>,
    %82 = vector.extract_strided_slice %73 {offsets = [0, 96], sizes = [1, 32], strides = [1, 1]} : vector<32x128xf32> to vector<1x32xf32>
    %c34_71 = arith.constant 34 : index
    %c0_72 = arith.constant 0 : index
    %83 = vector.load %arg13[%c34_71, %c0_72] : memref<168x32xf32, #tpu.memory_space<vmem>>, vector<1x32xf32>
    tpu.vector_store %arg13[%c34_71, %c0_72], %82 {strides = array<i32>} : memref<168x32xf32, #tpu.memory_space<vmem>>, vector<1x32xf32>,
    %84 = vector.extract_strided_slice %73 {offsets = [1, 0], sizes = [1, 32], strides = [1, 1]} : vector<32x128xf32> to vector<1x32xf32>
    %c19_73 = arith.constant 19 : index
    %c0_74 = arith.constant 0 : index
    %85 = vector.load %arg13[%c19_73, %c0_74] : memref<168x32xf32, #tpu.memory_space<vmem>>, vector<1x32xf32>
    tpu.vector_store %arg13[%c19_73, %c0_74], %84 {strides = array<i32>} : memref<168x32xf32, #tpu.memory_space<vmem>>, vector<1x32xf32>,
    %86 = vector.extract_strided_slice %73 {offsets = [1, 32], sizes = [1, 32], strides = [1, 1]} : vector<32x128xf32> to vector<1x32xf32>
    %c20_75 = arith.constant 20 : index
    %c0_76 = arith.constant 0 : index
    %87 = vector.load %arg13[%c20_75, %c0_76] : memref<168x32xf32, #tpu.memory_space<vmem>>, vector<1x32xf32>
    tpu.vector_store %arg13[%c20_75, %c0_76], %86 {strides = array<i32>} : memref<168x32xf32, #tpu.memory_space<vmem>>, vector<1x32xf32>,
    %88 = vector.extract_strided_slice %73 {offsets = [1, 64], sizes = [1, 32], strides = [1, 1]} : vector<32x128xf32> to vector<1x32xf32>
    %c35_77 = arith.constant 35 : index
    %c0_78 = arith.constant 0 : index
    %89 = vector.load %arg13[%c35_77, %c0_78] : memref<168x32xf32, #tpu.memory_space<vmem>>, vector<1x32xf32>
    tpu.vector_store %arg13[%c35_77, %c0_78], %88 {strides = array<i32>} : memref<168x32xf32, #tpu.memory_space<vmem>>, vector<1x32xf32>,
    %90 = vector.extract_strided_slice %73 {offsets = [1, 96], sizes = [1, 32], strides = [1, 1]} : vector<32x128xf32> to vector<1x32xf32>
    %c36_79 = arith.constant 36 : index
    %c0_80 = arith.constant 0 : index
    %91 = vector.load %arg13[%c36_79, %c0_80] : memref<168x32xf32, #tpu.memory_space<vmem>>, vector<1x32xf32>
    tpu.vector_store %arg13[%c36_79, %c0_80], %90 {strides = array<i32>} : memref<168x32xf32, #tpu.memory_space<vmem>>, vector<1x32xf32>,
    %92 = vector.extract_strided_slice %73 {offsets = [2, 0], sizes = [1, 32], strides = [1, 1]} : vector<32x128xf32> to vector<1x32xf32>
    %c21 = arith.constant 21 : index
    %c0_81 = arith.constant 0 : index
    %93 = vector.load %arg13[%c21, %c0_81] : memref<168x32xf32, #tpu.memory_space<vmem>>, vector<1x32xf32>
    tpu.vector_store %arg13[%c21, %c0_81], %92 {strides = array<i32>} : memref<168x32xf32, #tpu.memory_space<vmem>>, vector<1x32xf32>,
    %94 = vector.extract_strided_slice %73 {offsets = [2, 32], sizes = [1, 32], strides = [1, 1]} : vector<32x128xf32> to vector<1x32xf32>
    %c22 = arith.constant 22 : index
    %c0_82 = arith.constant 0 : index
    %95 = vector.load %arg13[%c22, %c0_82] : memref<168x32xf32, #tpu.memory_space<vmem>>, vector<1x32xf32>
    tpu.vector_store %arg13[%c22, %c0_82], %94 {strides = array<i32>} : memref<168x32xf32, #tpu.memory_space<vmem>>, vector<1x32xf32>,
    %96 = vector.extract_strided_slice %73 {offsets = [2, 64], sizes = [1, 32], strides = [1, 1]} : vector<32x128xf32> to vector<1x32xf32>
    %c37 = arith.constant 37 : index
    %c0_83 = arith.constant 0 : index
    %97 = vector.load %arg13[%c37, %c0_83] : memref<168x32xf32, #tpu.memory_space<vmem>>, vector<1x32xf32>
    tpu.vector_store %arg13[%c37, %c0_83], %96 {strides = array<i32>} : memref<168x32xf32, #tpu.memory_space<vmem>>, vector<1x32xf32>,
    %98 = vector.extract_strided_slice %73 {offsets = [2, 96], sizes = [1, 32], strides = [1, 1]} : vector<32x128xf32> to vector<1x32xf32>
    %c38 = arith.constant 38 : index
    %c0_84 = arith.constant 0 : index
    %99 = vector.load %arg13[%c38, %c0_84] : memref<168x32xf32, #tpu.memory_space<vmem>>, vector<1x32xf32>
    tpu.vector_store %arg13[%c38, %c0_84], %98 {strides = array<i32>} : memref<168x32xf32, #tpu.memory_space<vmem>>, vector<1x32xf32>,
    %100 = vector.extract_strided_slice %73 {offsets = [3, 0], sizes = [1, 32], strides = [1, 1]} : vector<32x128xf32> to vector<1x32xf32>
    %c23 = arith.constant 23 : index
    %c0_85 = arith.constant 0 : index
    %101 = vector.load %arg13[%c23, %c0_85] : memref<168x32xf32, #tpu.memory_space<vmem>>, vector<1x32xf32>
    tpu.vector_store %arg13[%c23, %c0_85], %100 {strides = array<i32>} : memref<168x32xf32, #tpu.memory_space<vmem>>, vector<1x32xf32>,
    %102 = vector.extract_strided_slice %73 {offsets = [3, 32], sizes = [1, 32], strides = [1, 1]} : vector<32x128xf32> to vector<1x32xf32>
    %c24 = arith.constant 24 : index
    %c0_86 = arith.constant 0 : index
    %103 = vector.load %arg13[%c24, %c0_86] : memref<168x32xf32, #tpu.memory_space<vmem>>, vector<1x32xf32>
    tpu.vector_store %arg13[%c24, %c0_86], %102 {strides = array<i32>} : memref<168x32xf32, #tpu.memory_space<vmem>>, vector<1x32xf32>,
    %104 = vector.extract_strided_slice %73 {offsets = [3, 64], sizes = [1, 32], strides = [1, 1]} : vector<32x128xf32> to vector<1x32xf32>
    %c39 = arith.constant 39 : index
    %c0_87 = arith.constant 0 : index
    %105 = vector.load %arg13[%c39, %c0_87] : memref<168x32xf32, #tpu.memory_space<vmem>>, vector<1x32xf32>
    tpu.vector_store %arg13[%c39, %c0_87], %104 {strides = array<i32>} : memref<168x32xf32, #tpu.memory_space<vmem>>, vector<1x32xf32>,
    %106 = vector.extract_strided_slice %73 {offsets = [3, 96], sizes = [1, 32], strides = [1, 1]} : vector<32x128xf32> to vector<1x32xf32>
    %c40 = arith.constant 40 : index
    %c0_88 = arith.constant 0 : index
    %107 = vector.load %arg13[%c40, %c0_88] : memref<168x32xf32, #tpu.memory_space<vmem>>, vector<1x32xf32>
    tpu.vector_store %arg13[%c40, %c0_88], %106 {strides = array<i32>} : memref<168x32xf32, #tpu.memory_space<vmem>>, vector<1x32xf32>,
    %108 = vector.extract_strided_slice %73 {offsets = [8, 0], sizes = [1, 32], strides = [1, 1]} : vector<32x128xf32> to vector<1x32xf32>
    %c49 = arith.constant 49 : index
    %c0_89 = arith.constant 0 : index
    %109 = vector.load %arg13[%c49, %c0_89] : memref<168x32xf32, #tpu.memory_space<vmem>>, vector<1x32xf32>
    tpu.vector_store %arg13[%c49, %c0_89], %108 {strides = array<i32>} : memref<168x32xf32, #tpu.memory_space<vmem>>, vector<1x32xf32>,
    %110 = vector.extract_strided_slice %73 {offsets = [8, 32], sizes = [1, 32], strides = [1, 1]} : vector<32x128xf32> to vector<1x32xf32>
    %c50 = arith.constant 50 : index
    %c0_90 = arith.constant 0 : index
    %111 = vector.load %arg13[%c50, %c0_90] : memref<168x32xf32, #tpu.memory_space<vmem>>, vector<1x32xf32>
    tpu.vector_store %arg13[%c50, %c0_90], %110 {strides = array<i32>} : memref<168x32xf32, #tpu.memory_space<vmem>>, vector<1x32xf32>,
    %112 = vector.extract_strided_slice %73 {offsets = [8, 64], sizes = [1, 32], strides = [1, 1]} : vector<32x128xf32> to vector<1x32xf32>
    %c65 = arith.constant 65 : index
    %c0_91 = arith.constant 0 : index
    %113 = vector.load %arg13[%c65, %c0_91] : memref<168x32xf32, #tpu.memory_space<vmem>>, vector<1x32xf32>
    tpu.vector_store %arg13[%c65, %c0_91], %112 {strides = array<i32>} : memref<168x32xf32, #tpu.memory_space<vmem>>, vector<1x32xf32>,
    %114 = vector.extract_strided_slice %73 {offsets = [8, 96], sizes = [1, 32], strides = [1, 1]} : vector<32x128xf32> to vector<1x32xf32>
    %c66 = arith.constant 66 : index
    %c0_92 = arith.constant 0 : index
    %115 = vector.load %arg13[%c66, %c0_92] : memref<168x32xf32, #tpu.memory_space<vmem>>, vector<1x32xf32>
    tpu.vector_store %arg13[%c66, %c0_92], %114 {strides = array<i32>} : memref<168x32xf32, #tpu.memory_space<vmem>>, vector<1x32xf32>,
    %116 = vector.extract_strided_slice %73 {offsets = [9, 0], sizes = [1, 32], strides = [1, 1]} : vector<32x128xf32> to vector<1x32xf32>
    %c51 = arith.constant 51 : index
    %c0_93 = arith.constant 0 : index
    %117 = vector.load %arg13[%c51, %c0_93] : memref<168x32xf32, #tpu.memory_space<vmem>>, vector<1x32xf32>
    tpu.vector_store %arg13[%c51, %c0_93], %116 {strides = array<i32>} : memref<168x32xf32, #tpu.memory_space<vmem>>, vector<1x32xf32>,
    %118 = vector.extract_strided_slice %73 {offsets = [9, 32], sizes = [1, 32], strides = [1, 1]} : vector<32x128xf32> to vector<1x32xf32>
    %c52 = arith.constant 52 : index
    %c0_94 = arith.constant 0 : index
    %119 = vector.load %arg13[%c52, %c0_94] : memref<168x32xf32, #tpu.memory_space<vmem>>, vector<1x32xf32>
    tpu.vector_store %arg13[%c52, %c0_94], %118 {strides = array<i32>} : memref<168x32xf32, #tpu.memory_space<vmem>>, vector<1x32xf32>,
    %120 = vector.extract_strided_slice %73 {offsets = [9, 64], sizes = [1, 32], strides = [1, 1]} : vector<32x128xf32> to vector<1x32xf32>
    %c67 = arith.constant 67 : index
    %c0_95 = arith.constant 0 : index
    %121 = vector.load %arg13[%c67, %c0_95] : memref<168x32xf32, #tpu.memory_space<vmem>>, vector<1x32xf32>
    tpu.vector_store %arg13[%c67, %c0_95], %120 {strides = array<i32>} : memref<168x32xf32, #tpu.memory_space<vmem>>, vector<1x32xf32>,
    %122 = vector.extract_strided_slice %73 {offsets = [9, 96], sizes = [1, 32], strides = [1, 1]} : vector<32x128xf32> to vector<1x32xf32>
    %c68 = arith.constant 68 : index
    %c0_96 = arith.constant 0 : index
    %123 = vector.load %arg13[%c68, %c0_96] : memref<168x32xf32, #tpu.memory_space<vmem>>, vector<1x32xf32>
    tpu.vector_store %arg13[%c68, %c0_96], %122 {strides = array<i32>} : memref<168x32xf32, #tpu.memory_space<vmem>>, vector<1x32xf32>,
    %124 = vector.extract_strided_slice %73 {offsets = [10, 0], sizes = [1, 32], strides = [1, 1]} : vector<32x128xf32> to vector<1x32xf32>
    %c53 = arith.constant 53 : index
    %c0_97 = arith.constant 0 : index
    %125 = vector.load %arg13[%c53, %c0_97] : memref<168x32xf32, #tpu.memory_space<vmem>>, vector<1x32xf32>
    tpu.vector_store %arg13[%c53, %c0_97], %124 {strides = array<i32>} : memref<168x32xf32, #tpu.memory_space<vmem>>, vector<1x32xf32>,
    %126 = vector.extract_strided_slice %73 {offsets = [10, 32], sizes = [1, 32], strides = [1, 1]} : vector<32x128xf32> to vector<1x32xf32>
    %c54 = arith.constant 54 : index
    %c0_98 = arith.constant 0 : index
    %127 = vector.load %arg13[%c54, %c0_98] : memref<168x32xf32, #tpu.memory_space<vmem>>, vector<1x32xf32>
    tpu.vector_store %arg13[%c54, %c0_98], %126 {strides = array<i32>} : memref<168x32xf32, #tpu.memory_space<vmem>>, vector<1x32xf32>,
    %128 = vector.extract_strided_slice %73 {offsets = [10, 64], sizes = [1, 32], strides = [1, 1]} : vector<32x128xf32> to vector<1x32xf32>
    %c69 = arith.constant 69 : index
    %c0_99 = arith.constant 0 : index
    %129 = vector.load %arg13[%c69, %c0_99] : memref<168x32xf32, #tpu.memory_space<vmem>>, vector<1x32xf32>
    tpu.vector_store %arg13[%c69, %c0_99], %128 {strides = array<i32>} : memref<168x32xf32, #tpu.memory_space<vmem>>, vector<1x32xf32>,
    %130 = vector.extract_strided_slice %73 {offsets = [10, 96], sizes = [1, 32], strides = [1, 1]} : vector<32x128xf32> to vector<1x32xf32>
    %c70 = arith.constant 70 : index
    %c0_100 = arith.constant 0 : index
    %131 = vector.load %arg13[%c70, %c0_100] : memref<168x32xf32, #tpu.memory_space<vmem>>, vector<1x32xf32>
    tpu.vector_store %arg13[%c70, %c0_100], %130 {strides = array<i32>} : memref<168x32xf32, #tpu.memory_space<vmem>>, vector<1x32xf32>,
    %132 = vector.extract_strided_slice %73 {offsets = [11, 0], sizes = [1, 32], strides = [1, 1]} : vector<32x128xf32> to vector<1x32xf32>
    %c55 = arith.constant 55 : index
    %c0_101 = arith.constant 0 : index
    %133 = vector.load %arg13[%c55, %c0_101] : memref<168x32xf32, #tpu.memory_space<vmem>>, vector<1x32xf32>
    tpu.vector_store %arg13[%c55, %c0_101], %132 {strides = array<i32>} : memref<168x32xf32, #tpu.memory_space<vmem>>, vector<1x32xf32>,
    %134 = vector.extract_strided_slice %73 {offsets = [11, 32], sizes = [1, 32], strides = [1, 1]} : vector<32x128xf32> to vector<1x32xf32>
    %c56 = arith.constant 56 : index
    %c0_102 = arith.constant 0 : index
    %135 = vector.load %arg13[%c56, %c0_102] : memref<168x32xf32, #tpu.memory_space<vmem>>, vector<1x32xf32>
    tpu.vector_store %arg13[%c56, %c0_102], %134 {strides = array<i32>} : memref<168x32xf32, #tpu.memory_space<vmem>>, vector<1x32xf32>,
    %136 = vector.extract_strided_slice %73 {offsets = [11, 64], sizes = [1, 32], strides = [1, 1]} : vector<32x128xf32> to vector<1x32xf32>
    %c71 = arith.constant 71 : index
    %c0_103 = arith.constant 0 : index
    %137 = vector.load %arg13[%c71, %c0_103] : memref<168x32xf32, #tpu.memory_space<vmem>>, vector<1x32xf32>
    tpu.vector_store %arg13[%c71, %c0_103], %136 {strides = array<i32>} : memref<168x32xf32, #tpu.memory_space<vmem>>, vector<1x32xf32>,
    %138 = vector.extract_strided_slice %73 {offsets = [11, 96], sizes = [1, 32], strides = [1, 1]} : vector<32x128xf32> to vector<1x32xf32>
    %c72 = arith.constant 72 : index
    %c0_104 = arith.constant 0 : index
    %139 = vector.load %arg13[%c72, %c0_104] : memref<168x32xf32, #tpu.memory_space<vmem>>, vector<1x32xf32>
    tpu.vector_store %arg13[%c72, %c0_104], %138 {strides = array<i32>} : memref<168x32xf32, #tpu.memory_space<vmem>>, vector<1x32xf32>,
    %140 = vector.extract_strided_slice %73 {offsets = [16, 0], sizes = [1, 32], strides = [1, 1]} : vector<32x128xf32> to vector<1x32xf32>
    %c81 = arith.constant 81 : index
    %c0_105 = arith.constant 0 : index
    %141 = vector.load %arg13[%c81, %c0_105] : memref<168x32xf32, #tpu.memory_space<vmem>>, vector<1x32xf32>
    tpu.vector_store %arg13[%c81, %c0_105], %140 {strides = array<i32>} : memref<168x32xf32, #tpu.memory_space<vmem>>, vector<1x32xf32>,
    %142 = vector.extract_strided_slice %73 {offsets = [16, 32], sizes = [1, 32], strides = [1, 1]} : vector<32x128xf32> to vector<1x32xf32>
    %c82 = arith.constant 82 : index
    %c0_106 = arith.constant 0 : index
    %143 = vector.load %arg13[%c82, %c0_106] : memref<168x32xf32, #tpu.memory_space<vmem>>, vector<1x32xf32>
    tpu.vector_store %arg13[%c82, %c0_106], %142 {strides = array<i32>} : memref<168x32xf32, #tpu.memory_space<vmem>>, vector<1x32xf32>,
    %144 = vector.extract_strided_slice %73 {offsets = [16, 64], sizes = [1, 32], strides = [1, 1]} : vector<32x128xf32> to vector<1x32xf32>
    %c97 = arith.constant 97 : index
    %c0_107 = arith.constant 0 : index
    %145 = vector.load %arg13[%c97, %c0_107] : memref<168x32xf32, #tpu.memory_space<vmem>>, vector<1x32xf32>
    tpu.vector_store %arg13[%c97, %c0_107], %144 {strides = array<i32>} : memref<168x32xf32, #tpu.memory_space<vmem>>, vector<1x32xf32>,
    %146 = vector.extract_strided_slice %73 {offsets = [16, 96], sizes = [1, 32], strides = [1, 1]} : vector<32x128xf32> to vector<1x32xf32>
    %c98 = arith.constant 98 : index
    %c0_108 = arith.constant 0 : index
    %147 = vector.load %arg13[%c98, %c0_108] : memref<168x32xf32, #tpu.memory_space<vmem>>, vector<1x32xf32>
    tpu.vector_store %arg13[%c98, %c0_108], %146 {strides = array<i32>} : memref<168x32xf32, #tpu.memory_space<vmem>>, vector<1x32xf32>,
    %148 = vector.extract_strided_slice %73 {offsets = [17, 0], sizes = [1, 32], strides = [1, 1]} : vector<32x128xf32> to vector<1x32xf32>
    %c83 = arith.constant 83 : index
    %c0_109 = arith.constant 0 : index
    %149 = vector.load %arg13[%c83, %c0_109] : memref<168x32xf32, #tpu.memory_space<vmem>>, vector<1x32xf32>
    tpu.vector_store %arg13[%c83, %c0_109], %148 {strides = array<i32>} : memref<168x32xf32, #tpu.memory_space<vmem>>, vector<1x32xf32>,
    %150 = vector.extract_strided_slice %73 {offsets = [17, 32], sizes = [1, 32], strides = [1, 1]} : vector<32x128xf32> to vector<1x32xf32>
    %c84 = arith.constant 84 : index
    %c0_110 = arith.constant 0 : index
    %151 = vector.load %arg13[%c84, %c0_110] : memref<168x32xf32, #tpu.memory_space<vmem>>, vector<1x32xf32>
    tpu.vector_store %arg13[%c84, %c0_110], %150 {strides = array<i32>} : memref<168x32xf32, #tpu.memory_space<vmem>>, vector<1x32xf32>,
    %152 = vector.extract_strided_slice %73 {offsets = [17, 64], sizes = [1, 32], strides = [1, 1]} : vector<32x128xf32> to vector<1x32xf32>
    %c99 = arith.constant 99 : index
    %c0_111 = arith.constant 0 : index
    %153 = vector.load %arg13[%c99, %c0_111] : memref<168x32xf32, #tpu.memory_space<vmem>>, vector<1x32xf32>
    tpu.vector_store %arg13[%c99, %c0_111], %152 {strides = array<i32>} : memref<168x32xf32, #tpu.memory_space<vmem>>, vector<1x32xf32>,
    %154 = vector.extract_strided_slice %73 {offsets = [17, 96], sizes = [1, 32], strides = [1, 1]} : vector<32x128xf32> to vector<1x32xf32>
    %c100 = arith.constant 100 : index
    %c0_112 = arith.constant 0 : index
    %155 = vector.load %arg13[%c100, %c0_112] : memref<168x32xf32, #tpu.memory_space<vmem>>, vector<1x32xf32>
    tpu.vector_store %arg13[%c100, %c0_112], %154 {strides = array<i32>} : memref<168x32xf32, #tpu.memory_space<vmem>>, vector<1x32xf32>,
    %156 = vector.extract_strided_slice %73 {offsets = [18, 0], sizes = [1, 32], strides = [1, 1]} : vector<32x128xf32> to vector<1x32xf32>
    %c85 = arith.constant 85 : index
    %c0_113 = arith.constant 0 : index
    %157 = vector.load %arg13[%c85, %c0_113] : memref<168x32xf32, #tpu.memory_space<vmem>>, vector<1x32xf32>
    tpu.vector_store %arg13[%c85, %c0_113], %156 {strides = array<i32>} : memref<168x32xf32, #tpu.memory_space<vmem>>, vector<1x32xf32>,
    %158 = vector.extract_strided_slice %73 {offsets = [18, 32], sizes = [1, 32], strides = [1, 1]} : vector<32x128xf32> to vector<1x32xf32>
    %c86 = arith.constant 86 : index
    %c0_114 = arith.constant 0 : index
    %159 = vector.load %arg13[%c86, %c0_114] : memref<168x32xf32, #tpu.memory_space<vmem>>, vector<1x32xf32>
    tpu.vector_store %arg13[%c86, %c0_114], %158 {strides = array<i32>} : memref<168x32xf32, #tpu.memory_space<vmem>>, vector<1x32xf32>,
    %160 = vector.extract_strided_slice %73 {offsets = [18, 64], sizes = [1, 32], strides = [1, 1]} : vector<32x128xf32> to vector<1x32xf32>
    %c101 = arith.constant 101 : index
    %c0_115 = arith.constant 0 : index
    %161 = vector.load %arg13[%c101, %c0_115] : memref<168x32xf32, #tpu.memory_space<vmem>>, vector<1x32xf32>
    tpu.vector_store %arg13[%c101, %c0_115], %160 {strides = array<i32>} : memref<168x32xf32, #tpu.memory_space<vmem>>, vector<1x32xf32>,
    %162 = vector.extract_strided_slice %73 {offsets = [18, 96], sizes = [1, 32], strides = [1, 1]} : vector<32x128xf32> to vector<1x32xf32>
    %c102 = arith.constant 102 : index
    %c0_116 = arith.constant 0 : index
    %163 = vector.load %arg13[%c102, %c0_116] : memref<168x32xf32, #tpu.memory_space<vmem>>, vector<1x32xf32>
    tpu.vector_store %arg13[%c102, %c0_116], %162 {strides = array<i32>} : memref<168x32xf32, #tpu.memory_space<vmem>>, vector<1x32xf32>,
    %164 = vector.extract_strided_slice %73 {offsets = [19, 0], sizes = [1, 32], strides = [1, 1]} : vector<32x128xf32> to vector<1x32xf32>
    %c87 = arith.constant 87 : index
    %c0_117 = arith.constant 0 : index
    %165 = vector.load %arg13[%c87, %c0_117] : memref<168x32xf32, #tpu.memory_space<vmem>>, vector<1x32xf32>
    tpu.vector_store %arg13[%c87, %c0_117], %164 {strides = array<i32>} : memref<168x32xf32, #tpu.memory_space<vmem>>, vector<1x32xf32>,
    %166 = vector.extract_strided_slice %73 {offsets = [19, 32], sizes = [1, 32], strides = [1, 1]} : vector<32x128xf32> to vector<1x32xf32>
    %c88 = arith.constant 88 : index
    %c0_118 = arith.constant 0 : index
    %167 = vector.load %arg13[%c88, %c0_118] : memref<168x32xf32, #tpu.memory_space<vmem>>, vector<1x32xf32>
    tpu.vector_store %arg13[%c88, %c0_118], %166 {strides = array<i32>} : memref<168x32xf32, #tpu.memory_space<vmem>>, vector<1x32xf32>,
    %168 = vector.extract_strided_slice %73 {offsets = [19, 64], sizes = [1, 32], strides = [1, 1]} : vector<32x128xf32> to vector<1x32xf32>
    %c103 = arith.constant 103 : index
    %c0_119 = arith.constant 0 : index
    %169 = vector.load %arg13[%c103, %c0_119] : memref<168x32xf32, #tpu.memory_space<vmem>>, vector<1x32xf32>
    tpu.vector_store %arg13[%c103, %c0_119], %168 {strides = array<i32>} : memref<168x32xf32, #tpu.memory_space<vmem>>, vector<1x32xf32>,
    %170 = vector.extract_strided_slice %73 {offsets = [19, 96], sizes = [1, 32], strides = [1, 1]} : vector<32x128xf32> to vector<1x32xf32>
    %c104 = arith.constant 104 : index
    %c0_120 = arith.constant 0 : index
    %171 = vector.load %arg13[%c104, %c0_120] : memref<168x32xf32, #tpu.memory_space<vmem>>, vector<1x32xf32>
    tpu.vector_store %arg13[%c104, %c0_120], %170 {strides = array<i32>} : memref<168x32xf32, #tpu.memory_space<vmem>>, vector<1x32xf32>,
    %172 = vector.extract_strided_slice %73 {offsets = [24, 0], sizes = [1, 32], strides = [1, 1]} : vector<32x128xf32> to vector<1x32xf32>
    %c113 = arith.constant 113 : index
    %c0_121 = arith.constant 0 : index
    %173 = vector.load %arg13[%c113, %c0_121] : memref<168x32xf32, #tpu.memory_space<vmem>>, vector<1x32xf32>
    tpu.vector_store %arg13[%c113, %c0_121], %172 {strides = array<i32>} : memref<168x32xf32, #tpu.memory_space<vmem>>, vector<1x32xf32>,
    %174 = vector.extract_strided_slice %73 {offsets = [24, 32], sizes = [1, 32], strides = [1, 1]} : vector<32x128xf32> to vector<1x32xf32>
    %c114 = arith.constant 114 : index
    %c0_122 = arith.constant 0 : index
    %175 = vector.load %arg13[%c114, %c0_122] : memref<168x32xf32, #tpu.memory_space<vmem>>, vector<1x32xf32>
    tpu.vector_store %arg13[%c114, %c0_122], %174 {strides = array<i32>} : memref<168x32xf32, #tpu.memory_space<vmem>>, vector<1x32xf32>,
    %176 = vector.extract_strided_slice %73 {offsets = [24, 64], sizes = [1, 32], strides = [1, 1]} : vector<32x128xf32> to vector<1x32xf32>
    %c129 = arith.constant 129 : index
    %c0_123 = arith.constant 0 : index
    %177 = vector.load %arg13[%c129, %c0_123] : memref<168x32xf32, #tpu.memory_space<vmem>>, vector<1x32xf32>
    tpu.vector_store %arg13[%c129, %c0_123], %176 {strides = array<i32>} : memref<168x32xf32, #tpu.memory_space<vmem>>, vector<1x32xf32>,
    %178 = vector.extract_strided_slice %73 {offsets = [24, 96], sizes = [1, 32], strides = [1, 1]} : vector<32x128xf32> to vector<1x32xf32>
    %c130 = arith.constant 130 : index
    %c0_124 = arith.constant 0 : index
    %179 = vector.load %arg13[%c130, %c0_124] : memref<168x32xf32, #tpu.memory_space<vmem>>, vector<1x32xf32>
    tpu.vector_store %arg13[%c130, %c0_124], %178 {strides = array<i32>} : memref<168x32xf32, #tpu.memory_space<vmem>>, vector<1x32xf32>,
    %180 = vector.extract_strided_slice %73 {offsets = [25, 0], sizes = [1, 32], strides = [1, 1]} : vector<32x128xf32> to vector<1x32xf32>
    %c115 = arith.constant 115 : index
    %c0_125 = arith.constant 0 : index
    %181 = vector.load %arg13[%c115, %c0_125] : memref<168x32xf32, #tpu.memory_space<vmem>>, vector<1x32xf32>
    tpu.vector_store %arg13[%c115, %c0_125], %180 {strides = array<i32>} : memref<168x32xf32, #tpu.memory_space<vmem>>, vector<1x32xf32>,
    %182 = vector.extract_strided_slice %73 {offsets = [25, 32], sizes = [1, 32], strides = [1, 1]} : vector<32x128xf32> to vector<1x32xf32>
    %c116 = arith.constant 116 : index
    %c0_126 = arith.constant 0 : index
    %183 = vector.load %arg13[%c116, %c0_126] : memref<168x32xf32, #tpu.memory_space<vmem>>, vector<1x32xf32>
    tpu.vector_store %arg13[%c116, %c0_126], %182 {strides = array<i32>} : memref<168x32xf32, #tpu.memory_space<vmem>>, vector<1x32xf32>,
    %184 = vector.extract_strided_slice %73 {offsets = [25, 64], sizes = [1, 32], strides = [1, 1]} : vector<32x128xf32> to vector<1x32xf32>
    %c131 = arith.constant 131 : index
    %c0_127 = arith.constant 0 : index
    %185 = vector.load %arg13[%c131, %c0_127] : memref<168x32xf32, #tpu.memory_space<vmem>>, vector<1x32xf32>
    tpu.vector_store %arg13[%c131, %c0_127], %184 {strides = array<i32>} : memref<168x32xf32, #tpu.memory_space<vmem>>, vector<1x32xf32>,
    %186 = vector.extract_strided_slice %73 {offsets = [25, 96], sizes = [1, 32], strides = [1, 1]} : vector<32x128xf32> to vector<1x32xf32>
    %c132 = arith.constant 132 : index
    %c0_128 = arith.constant 0 : index
    %187 = vector.load %arg13[%c132, %c0_128] : memref<168x32xf32, #tpu.memory_space<vmem>>, vector<1x32xf32>
    tpu.vector_store %arg13[%c132, %c0_128], %186 {strides = array<i32>} : memref<168x32xf32, #tpu.memory_space<vmem>>, vector<1x32xf32>,
    %188 = vector.extract_strided_slice %73 {offsets = [26, 0], sizes = [1, 32], strides = [1, 1]} : vector<32x128xf32> to vector<1x32xf32>
    %c117 = arith.constant 117 : index
    %c0_129 = arith.constant 0 : index
    %189 = vector.load %arg13[%c117, %c0_129] : memref<168x32xf32, #tpu.memory_space<vmem>>, vector<1x32xf32>
    tpu.vector_store %arg13[%c117, %c0_129], %188 {strides = array<i32>} : memref<168x32xf32, #tpu.memory_space<vmem>>, vector<1x32xf32>,
    %190 = vector.extract_strided_slice %73 {offsets = [26, 32], sizes = [1, 32], strides = [1, 1]} : vector<32x128xf32> to vector<1x32xf32>
    %c118 = arith.constant 118 : index
    %c0_130 = arith.constant 0 : index
    %191 = vector.load %arg13[%c118, %c0_130] : memref<168x32xf32, #tpu.memory_space<vmem>>, vector<1x32xf32>
    tpu.vector_store %arg13[%c118, %c0_130], %190 {strides = array<i32>} : memref<168x32xf32, #tpu.memory_space<vmem>>, vector<1x32xf32>,
    %192 = vector.extract_strided_slice %73 {offsets = [26, 64], sizes = [1, 32], strides = [1, 1]} : vector<32x128xf32> to vector<1x32xf32>
    %c133 = arith.constant 133 : index
    %c0_131 = arith.constant 0 : index
    %193 = vector.load %arg13[%c133, %c0_131] : memref<168x32xf32, #tpu.memory_space<vmem>>, vector<1x32xf32>
    tpu.vector_store %arg13[%c133, %c0_131], %192 {strides = array<i32>} : memref<168x32xf32, #tpu.memory_space<vmem>>, vector<1x32xf32>,
    %194 = vector.extract_strided_slice %73 {offsets = [26, 96], sizes = [1, 32], strides = [1, 1]} : vector<32x128xf32> to vector<1x32xf32>
    %c134 = arith.constant 134 : index
    %c0_132 = arith.constant 0 : index
    %195 = vector.load %arg13[%c134, %c0_132] : memref<168x32xf32, #tpu.memory_space<vmem>>, vector<1x32xf32>
    tpu.vector_store %arg13[%c134, %c0_132], %194 {strides = array<i32>} : memref<168x32xf32, #tpu.memory_space<vmem>>, vector<1x32xf32>,
    %196 = vector.extract_strided_slice %73 {offsets = [27, 0], sizes = [1, 32], strides = [1, 1]} : vector<32x128xf32> to vector<1x32xf32>
    %c119 = arith.constant 119 : index
    %c0_133 = arith.constant 0 : index
    %197 = vector.load %arg13[%c119, %c0_133] : memref<168x32xf32, #tpu.memory_space<vmem>>, vector<1x32xf32>
    tpu.vector_store %arg13[%c119, %c0_133], %196 {strides = array<i32>} : memref<168x32xf32, #tpu.memory_space<vmem>>, vector<1x32xf32>,
    %198 = vector.extract_strided_slice %73 {offsets = [27, 32], sizes = [1, 32], strides = [1, 1]} : vector<32x128xf32> to vector<1x32xf32>
    %c120 = arith.constant 120 : index
    %c0_134 = arith.constant 0 : index
    %199 = vector.load %arg13[%c120, %c0_134] : memref<168x32xf32, #tpu.memory_space<vmem>>, vector<1x32xf32>
    tpu.vector_store %arg13[%c120, %c0_134], %198 {strides = array<i32>} : memref<168x32xf32, #tpu.memory_space<vmem>>, vector<1x32xf32>,
    %200 = vector.extract_strided_slice %73 {offsets = [27, 64], sizes = [1, 32], strides = [1, 1]} : vector<32x128xf32> to vector<1x32xf32>
    %c135 = arith.constant 135 : index
    %c0_135 = arith.constant 0 : index
    %201 = vector.load %arg13[%c135, %c0_135] : memref<168x32xf32, #tpu.memory_space<vmem>>, vector<1x32xf32>
    tpu.vector_store %arg13[%c135, %c0_135], %200 {strides = array<i32>} : memref<168x32xf32, #tpu.memory_space<vmem>>, vector<1x32xf32>,
    %202 = vector.extract_strided_slice %73 {offsets = [27, 96], sizes = [1, 32], strides = [1, 1]} : vector<32x128xf32> to vector<1x32xf32>
    %c136 = arith.constant 136 : index
    %c0_136 = arith.constant 0 : index
    %203 = vector.load %arg13[%c136, %c0_136] : memref<168x32xf32, #tpu.memory_space<vmem>>, vector<1x32xf32>
    tpu.vector_store %arg13[%c136, %c0_136], %202 {strides = array<i32>} : memref<168x32xf32, #tpu.memory_space<vmem>>, vector<1x32xf32>,
    %c0_137 = arith.constant 0 : index
    %c0_138 = arith.constant 0 : index
    %204 = vector.load %arg13[%c0_137, %c0_138] : memref<168x32xf32, #tpu.memory_space<vmem>>, vector<128x32xf32>
    %c0_139 = arith.constant 0 : index
    %c0_140 = arith.constant 0 : index
    %205 = vector.load %arg14[%c0_139, %c0_140] : memref<128x288xf32, #tpu.memory_space<vmem>>, vector<128x32xf32>
    tpu.vector_store %arg14[%c0_139, %c0_140], %204 {strides = array<i32>} : memref<128x288xf32, #tpu.memory_space<vmem>>, vector<128x32xf32>,
    %c1_141 = arith.constant 1 : index
    %c0_142 = arith.constant 0 : index
    %206 = vector.load %arg13[%c1_141, %c0_142] : memref<168x32xf32, #tpu.memory_space<vmem>>, vector<128x32xf32>
    %c0_143 = arith.constant 0 : index
    %c32_144 = arith.constant 32 : index
    %207 = vector.load %arg14[%c0_143, %c32_144] : memref<128x288xf32, #tpu.memory_space<vmem>>, vector<128x32xf32>
    tpu.vector_store %arg14[%c0_143, %c32_144], %206 {strides = array<i32>} : memref<128x288xf32, #tpu.memory_space<vmem>>, vector<128x32xf32>,
    %c2_145 = arith.constant 2 : index
    %c0_146 = arith.constant 0 : index
    %208 = vector.load %arg13[%c2_145, %c0_146] : memref<168x32xf32, #tpu.memory_space<vmem>>, vector<128x32xf32>
    %c0_147 = arith.constant 0 : index
    %c64_148 = arith.constant 64 : index
    %209 = vector.load %arg14[%c0_147, %c64_148] : memref<128x288xf32, #tpu.memory_space<vmem>>, vector<128x32xf32>
    tpu.vector_store %arg14[%c0_147, %c64_148], %208 {strides = array<i32>} : memref<128x288xf32, #tpu.memory_space<vmem>>, vector<128x32xf32>,
    %c16_149 = arith.constant 16 : index
    %c0_150 = arith.constant 0 : index
    %210 = vector.load %arg13[%c16_149, %c0_150] : memref<168x32xf32, #tpu.memory_space<vmem>>, vector<128x32xf32>
    %c0_151 = arith.constant 0 : index
    %c96_152 = arith.constant 96 : index
    %211 = vector.load %arg14[%c0_151, %c96_152] : memref<128x288xf32, #tpu.memory_space<vmem>>, vector<128x32xf32>
    tpu.vector_store %arg14[%c0_151, %c96_152], %210 {strides = array<i32>} : memref<128x288xf32, #tpu.memory_space<vmem>>, vector<128x32xf32>,
    %c17_153 = arith.constant 17 : index
    %c0_154 = arith.constant 0 : index
    %212 = vector.load %arg13[%c17_153, %c0_154] : memref<168x32xf32, #tpu.memory_space<vmem>>, vector<128x32xf32>
    %c0_155 = arith.constant 0 : index
    %c128_156 = arith.constant 128 : index
    %213 = vector.load %arg14[%c0_155, %c128_156] : memref<128x288xf32, #tpu.memory_space<vmem>>, vector<128x32xf32>
    tpu.vector_store %arg14[%c0_155, %c128_156], %212 {strides = array<i32>} : memref<128x288xf32, #tpu.memory_space<vmem>>, vector<128x32xf32>,
    %c18_157 = arith.constant 18 : index
    %c0_158 = arith.constant 0 : index
    %214 = vector.load %arg13[%c18_157, %c0_158] : memref<168x32xf32, #tpu.memory_space<vmem>>, vector<128x32xf32>
    %c0_159 = arith.constant 0 : index
    %c160_160 = arith.constant 160 : index
    %215 = vector.load %arg14[%c0_159, %c160_160] : memref<128x288xf32, #tpu.memory_space<vmem>>, vector<128x32xf32>
    tpu.vector_store %arg14[%c0_159, %c160_160], %214 {strides = array<i32>} : memref<128x288xf32, #tpu.memory_space<vmem>>, vector<128x32xf32>,
    %c32_161 = arith.constant 32 : index
    %c0_162 = arith.constant 0 : index
    %216 = vector.load %arg13[%c32_161, %c0_162] : memref<168x32xf32, #tpu.memory_space<vmem>>, vector<128x32xf32>
    %c0_163 = arith.constant 0 : index
    %c192_164 = arith.constant 192 : index
    %217 = vector.load %arg14[%c0_163, %c192_164] : memref<128x288xf32, #tpu.memory_space<vmem>>, vector<128x32xf32>
    tpu.vector_store %arg14[%c0_163, %c192_164], %216 {strides = array<i32>} : memref<128x288xf32, #tpu.memory_space<vmem>>, vector<128x32xf32>,
    %c33_165 = arith.constant 33 : index
    %c0_166 = arith.constant 0 : index
    %218 = vector.load %arg13[%c33_165, %c0_166] : memref<168x32xf32, #tpu.memory_space<vmem>>, vector<128x32xf32>
    %c0_167 = arith.constant 0 : index
    %c224_168 = arith.constant 224 : index
    %219 = vector.load %arg14[%c0_167, %c224_168] : memref<128x288xf32, #tpu.memory_space<vmem>>, vector<128x32xf32>
    tpu.vector_store %arg14[%c0_167, %c224_168], %218 {strides = array<i32>} : memref<128x288xf32, #tpu.memory_space<vmem>>, vector<128x32xf32>,
    %c34_169 = arith.constant 34 : index
    %c0_170 = arith.constant 0 : index
    %220 = vector.load %arg13[%c34_169, %c0_170] : memref<168x32xf32, #tpu.memory_space<vmem>>, vector<128x32xf32>
    %c0_171 = arith.constant 0 : index
    %c256_172 = arith.constant 256 : index
    %221 = vector.load %arg14[%c0_171, %c256_172] : memref<128x288xf32, #tpu.memory_space<vmem>>, vector<128x32xf32>
    tpu.vector_store %arg14[%c0_171, %c256_172], %220 {strides = array<i32>} : memref<128x288xf32, #tpu.memory_space<vmem>>, vector<128x32xf32>,
    %c0_173 = arith.constant 0 : index
    %c0_174 = arith.constant 0 : index
    %222 = vector.load %arg14[%c0_173, %c0_174] : memref<128x288xf32, #tpu.memory_space<vmem>>, vector<128x288xf32>
    %c0_175 = arith.constant 0 : index
    %c0_176 = arith.constant 0 : index
    %223 = vector.load %arg8[%c0_175, %c0_176] : memref<288x128xf32, #tpu.memory_space<vmem>>, vector<288x128xf32>
    %cst_177 = arith.constant dense<0.000000e+00> : vector<128x128xf32>
    %224 = tpu.matmul %222, %223, %cst_177 {dimension_numbers = #tpu.dot_dimension_numbers<[1], [0], [0], [1], [0, 0, 1, 1], [], []>} : vector<128x288xf32>, vector<288x128xf32>, vector<128x128xf32> -> vector<128x128xf32>
    %c0_178 = arith.constant 0 : index
    %c0_179 = arith.constant 0 : index
    %225 = vector.load %arg9[%c0_178, %c0_179] : memref<1x128xf32, #tpu.memory_space<vmem>>, vector<1x128xf32>
    %226 = vector.broadcast %225 : vector<1x128xf32> to vector<128x128xf32>
    %227 = arith.addf %224, %226 : vector<128x128xf32>
    %cst_180 = arith.constant 5.000000e-01 : f32
    %228 = vector.broadcast %cst_180 : f32 to vector<128x128xf32>
    %229 = arith.mulf %228, %227 : vector<128x128xf32>
    %230 = math.tanh %229 : vector<128x128xf32>
    %cst_181 = arith.constant 1.000000e+00 : f32
    %231 = vector.broadcast %cst_181 : f32 to vector<128x128xf32>
    %232 = arith.addf %230, %231 : vector<128x128xf32>
    %cst_182 = arith.constant 5.000000e-01 : f32
    %233 = vector.broadcast %cst_182 : f32 to vector<128x128xf32>
    %234 = arith.mulf %233, %232 : vector<128x128xf32>
    %c0_183 = arith.constant 0 : index
    %c0_184 = arith.constant 0 : index
    %235 = vector.load %arg10[%c0_183, %c0_184] : memref<128x128xf32, #tpu.memory_space<vmem>>, vector<128x128xf32>
    tpu.vector_store %arg10[%c0_183, %c0_184], %234 {strides = array<i32>} : memref<128x128xf32, #tpu.memory_space<vmem>>, vector<128x128xf32>,
    return
  }
  func.func @transform_0(%arg0: i32) -> (i32, i32) {
    %c0_i32 = arith.constant 0 : i32
    %c0_i32_0 = arith.constant 0 : i32
    %c0_i32_1 = arith.constant 0 : i32
    return %c0_i32, %c0_i32_0 : i32, i32
  }
  func.func @transform_1(%arg0: i32) -> (i32, i32) {
    %c0_i32 = arith.constant 0 : i32
    %c0_i32_0 = arith.constant 0 : i32
    %c0_i32_1 = arith.constant 0 : i32
    return %c0_i32, %c0_i32_0 : i32, i32
  }
  func.func @transform_2(%arg0: i32) -> (i32, i32) {
    %c0_i32 = arith.constant 0 : i32
    %c0_i32_0 = arith.constant 0 : i32
    %c0_i32_1 = arith.constant 0 : i32
    return %c0_i32, %c0_i32_0 : i32, i32
  }
  func.func @transform_3(%arg0: i32) -> (i32, i32) {
    %c0_i32 = arith.constant 0 : i32
    %c0_i32_0 = arith.constant 0 : i32
    %c0_i32_1 = arith.constant 0 : i32
    return %c0_i32, %c0_i32_0 : i32, i32
  }
  func.func @transform_4(%arg0: i32) -> (i32, i32) {
    %c0_i32 = arith.constant 0 : i32
    %c0_i32_0 = arith.constant 0 : i32
    %c0_i32_1 = arith.constant 0 : i32
    return %c0_i32, %c0_i32_0 : i32, i32
  }
  func.func @transform_5(%arg0: i32) -> (i32, i32) {
    %c0_i32 = arith.constant 0 : i32
    %c0_i32_0 = arith.constant 0 : i32
    %c0_i32_1 = arith.constant 0 : i32
    return %c0_i32, %c0_i32_0 : i32, i32
  }
  func.func @transform_6(%arg0: i32) -> (i32, i32) {
    %c0_i32 = arith.constant 0 : i32
    %c0_i32_0 = arith.constant 0 : i32
    %c0_i32_1 = arith.constant 0 : i32
    return %c0_i32, %c0_i32_0 : i32, i32
  }
  func.func @transform_7(%arg0: i32) -> (i32, i32) {
    %c0_i32 = arith.constant 0 : i32
    %c0_i32_0 = arith.constant 0 : i32
    %c0_i32_1 = arith.constant 0 : i32
    return %c0_i32, %c0_i32_0 : i32, i32
  }
  func.func @transform_8(%arg0: i32) -> (i32, i32) {
    %c0_i32 = arith.constant 0 : i32
    %c0_i32_0 = arith.constant 0 : i32
    %c0_i32_1 = arith.constant 0 : i32
    return %c0_i32, %c0_i32_0 : i32, i32
  }
  func.func @transform_9(%arg0: i32) -> (i32, i32) {
    %c0_i32 = arith.constant 0 : i32
    %c0_i32_0 = arith.constant 0 : i32
    return %arg0, %c0_i32 : i32, i32
  }
}

</mosaic_0001>

<llo_original>
// kernel: decoder_forward.1
$region0: #{decoder_forward.1}
  #allocation0 [shape = 'u32[]', space=smem, size = 0x4, offset = 0x4, fixed_abs, tag = 'smem constant byte address 0x4 - core index']
  #allocation1 [shape = 'u32[144,128]{1,0:T(1,128)}', space=vmem, size = 0x12000, scoped, tag = 'internal scratch']
  #allocation2 [shape = 'f32[56,32]{1,0:T(8,128)}', space=vmem, size = 0x7000, scoped, tag = 'scratch operand']
  #allocation3 [shape = 'f32[32,288]{1,0:T(8,128)}', space=vmem, size = 0xc000, scoped, tag = 'scratch operand']
  #allocation4 [shape = 'f32[168,32]{1,0:T(8,128)}', space=vmem, size = 0x15000, scoped, tag = 'scratch operand']
  #allocation5 [shape = 'f32[128,288]{1,0:T(8,128)}', space=vmem, size = 0x30000, scoped, tag = 'scratch operand']
  %s0 = inlined_call_operand.hbm [shape: f32[2,32], index: 0, kind: input, shape index: {}]
  %s1 = inlined_call_operand.hbm [shape: f32[32,128], index: 1, kind: input, shape index: {}]
  %s2 = inlined_call_operand.vmem [shape: f32[1,128], index: 2, kind: input, shape index: {}]
  %s3 = inlined_call_operand.hbm [shape: f32[128,512], index: 3, kind: input, shape index: {}]
  %s4 = inlined_call_operand.hbm [shape: f32[1,512], index: 4, kind: input, shape index: {}]
  %s5 = inlined_call_operand.hbm [shape: f32[288,128], index: 5, kind: input, shape index: {}]
  %s6 = inlined_call_operand.vmem [shape: f32[1,128], index: 6, kind: input, shape index: {}]
  %s7 = inlined_call_operand.hbm [shape: f32[288,128], index: 7, kind: input, shape index: {}]
  %s8 = inlined_call_operand.vmem [shape: f32[1,128], index: 8, kind: input, shape index: {}]
  %s9 = inlined_call_operand.vmem [shape: f32[256,128], index: 9, kind: output, shape index: {}]
  %s10 = sld [smem:[#allocation0]]
  $region93: #{decoder_forward.1} parent=0
    _
  %s12 = ssub.s32 1, %s10
  %s13 = scalar_select 0, %s12, %s10
  $region1: #{decoder_forward.1} parent=0
    #allocation6 [shape = 'u8[1024]{0}', space=vmem, size = 0x400, scoped, tag = 'input window, operand 0, single buffered']
    #allocation7 [shape = 's32[2]{0}', space=sflag, size = 0x8, scoped, tag = 'scoped memory for decoder_forward.1']
    #allocation8 [shape = 'u8[16384]{0}', space=vmem, size = 0x4000, scoped, tag = 'input window, operand 1, single buffered']
    #allocation9 [shape = 's32[1]{0}', space=sflag, size = 0x4, scoped, tag = 'scoped memory for decoder_forward.1']
    #allocation10 [shape = 'u8[262144]{0}', space=vmem, size = 0x40000, scoped, tag = 'input window, operand 3, single buffered']
    #allocation11 [shape = 'u8[2048]{0}', space=vmem, size = 0x800, scoped, tag = 'input window, operand 4, single buffered']
    #allocation12 [shape = 's32[1]{0}', space=sflag, size = 0x4, scoped, tag = 'scoped memory for decoder_forward.1']
    #allocation13 [shape = 'u8[147456]{0}', space=vmem, size = 0x24000, scoped, tag = 'input window, operand 5, single buffered']
    #allocation14 [shape = 'u8[147456]{0}', space=vmem, size = 0x24000, scoped, tag = 'input window, operand 7, single buffered']
    #allocation15 [shape = 's32[1]{0}', space=sflag, size = 0x4, scoped, tag = 'scoped memory for decoder_forward.1']
    %14 = vsyncpa [#allocation7], 0
    %15 = vsyncpa [#allocation9], 0
    %16 = vsyncpa [#allocation12], 0
    %17 = vsyncpa [#allocation15], 0
    loop: start=0, step=1, limit=4
    $region2: #{decoder_forward.1} parent=1 // loop_pre_header
      _
    $region3: #{decoder_forward.1} parent=1 // loop_header
      %s19 = sphi 0, %s23
      %p20 = scmp.ge.s32.totalorder %s19, 4
      %s27 = sphi 0, %s27
      %s29 = sphi 0, %s27
      %s30 = sphi 0, %s29
      %s44 = sphi 0, %s30
      %s48 = sphi 0, %s48
      %s50 = sphi 0, %s48
      %s51 = sphi 0, %s50
      %s65 = sphi 0, %s51
      %s69 = sphi 0, %s69
      %s71 = sphi 0, %s69
      %s72 = sphi 0, %s71
      %s86 = sphi 0, %s72
      %s90 = sphi 0, %s90
      %s92 = sphi 0, %s90
      %s93 = sphi 0, %s92
      %s107 = sphi 0, %s93
      %s111 = sphi 0, %s111
      %s113 = sphi 0, %s111
      %s114 = sphi 0, %s113
      %s128 = sphi 0, %s114
      %s132 = sphi 0, %s132
      %s134 = sphi 0, %s132
      %s135 = sphi 0, %s134
      %s149 = sphi 0, %s135
      %s153 = sphi 0, %s153
      %s155 = sphi 0, %s153
      %s156 = sphi 0, %s155
      %s170 = sphi 0, %s156
      %s174 = sphi 0, %s174
      %s176 = sphi 0, %s174
      %s177 = sphi 0, %s176
      %s191 = sphi 0, %s177
      %s195 = sphi 0, %s195
      %s197 = sphi 0, %s195
      %s198 = sphi 0, %s197
      %s212 = sphi 0, %s198
      %s218 = sphi 0, %s220
      %s221 = sphi 0, %s218
      %s222 = sphi 0, %s221
      %s238 = sphi 0, %s222
    $region4: #{decoder_forward.1} parent=1 // loop_header_branch
      %22 = sbr.rel (%p20) target = $region8
    $region5: #{decoder_forward.1} parent=1 // loop_body
      %s24 = ssub.s32 %s19, 1
      %s25 = ssub.s32 %s19, 2
      %s26 = sadd.s32 %s19, 1
      %s28 = sadd.s32 %s27, 1
      %p31 = scmp.eq.s32.totalorder %s19, 1
      %p32 = scmp.ne.s32.totalorder %s27, %s29
      %p33 = scmp.eq.s32.totalorder %s19, 0
      %p34 = por %p32, %p33
      %p35 = scmp.ne.s32.totalorder %s27, %s29
      %p36 = scmp.eq.s32.totalorder %s24, 1
      %p37 = por %p35, %p36
      %p38 = scmp.ne.s32.totalorder %s29, %s30
      %p39 = scmp.eq.s32.totalorder %s24, 0
      %p40 = por %p38, %p39
      %p41 = scmp.ne.s32.totalorder %s29, %s30
      %p42 = scmp.eq.s32.totalorder %s25, 1
      %p43 = por %p41, %p42
      %p45 = scmp.ne.s32.totalorder %s30, %s44
      %p46 = scmp.eq.s32.totalorder %s25, 0
      %p47 = por %p45, %p46
      %s49 = sadd.s32 %s48, 1
      %p52 = scmp.eq.s32.totalorder %s19, 1
      %p53 = scmp.ne.s32.totalorder %s48, %s50
      %p54 = scmp.eq.s32.totalorder %s19, 0
      %p55 = por %p53, %p54
      %p56 = scmp.ne.s32.totalorder %s48, %s50
      %p57 = scmp.eq.s32.totalorder %s24, 1
      %p58 = por %p56, %p57
      %p59 = scmp.ne.s32.totalorder %s50, %s51
      %p60 = scmp.eq.s32.totalorder %s24, 0
      %p61 = por %p59, %p60
      %p62 = scmp.ne.s32.totalorder %s50, %s51
      %p63 = scmp.eq.s32.totalorder %s25, 1
      %p64 = por %p62, %p63
      %p66 = scmp.ne.s32.totalorder %s51, %s65
      %p67 = scmp.eq.s32.totalorder %s25, 0
      %p68 = por %p66, %p67
      %s70 = sadd.s32 %s69, 1
      %p73 = scmp.eq.s32.totalorder %s19, 1
      %p74 = scmp.ne.s32.totalorder %s69, %s71
      %p75 = scmp.eq.s32.totalorder %s19, 0
      %p76 = por %p74, %p75
      %p77 = scmp.ne.s32.totalorder %s69, %s71
      %p78 = scmp.eq.s32.totalorder %s24, 1
      %p79 = por %p77, %p78
      %p80 = scmp.ne.s32.totalorder %s71, %s72
      %p81 = scmp.eq.s32.totalorder %s24, 0
      %p82 = por %p80, %p81
      %p83 = scmp.ne.s32.totalorder %s71, %s72
      %p84 = scmp.eq.s32.totalorder %s25, 1
      %p85 = por %p83, %p84
      %p87 = scmp.ne.s32.totalorder %s72, %s86
      %p88 = scmp.eq.s32.totalorder %s25, 0
      %p89 = por %p87, %p88
      %s91 = sadd.s32 %s90, 1
      %p94 = scmp.eq.s32.totalorder %s19, 1
      %p95 = scmp.ne.s32.totalorder %s90, %s92
      %p96 = scmp.eq.s32.totalorder %s19, 0
      %p97 = por %p95, %p96
      %p98 = scmp.ne.s32.totalorder %s90, %s92
      %p99 = scmp.eq.s32.totalorder %s24, 1
      %p100 = por %p98, %p99
      %p101 = scmp.ne.s32.totalorder %s92, %s93
      %p102 = scmp.eq.s32.totalorder %s24, 0
      %p103 = por %p101, %p102
      %p104 = scmp.ne.s32.totalorder %s92, %s93
      %p105 = scmp.eq.s32.totalorder %s25, 1
      %p106 = por %p104, %p105
      %p108 = scmp.ne.s32.totalorder %s93, %s107
      %p109 = scmp.eq.s32.totalorder %s25, 0
      %p110 = por %p108, %p109
      %s112 = sadd.s32 %s111, 1
      %p115 = scmp.eq.s32.totalorder %s19, 1
      %p116 = scmp.ne.s32.totalorder %s111, %s113
      %p117 = scmp.eq.s32.totalorder %s19, 0
      %p118 = por %p116, %p117
      %p119 = scmp.ne.s32.totalorder %s111, %s113
      %p120 = scmp.eq.s32.totalorder %s24, 1
      %p121 = por %p119, %p120
      %p122 = scmp.ne.s32.totalorder %s113, %s114
      %p123 = scmp.eq.s32.totalorder %s24, 0
      %p124 = por %p122, %p123
      %p125 = scmp.ne.s32.totalorder %s113, %s114
      %p126 = scmp.eq.s32.totalorder %s25, 1
      %p127 = por %p125, %p126
      %p129 = scmp.ne.s32.totalorder %s114, %s128
      %p130 = scmp.eq.s32.totalorder %s25, 0
      %p131 = por %p129, %p130
      %s133 = sadd.s32 %s132, 1
      %p136 = scmp.eq.s32.totalorder %s19, 1
      %p137 = scmp.ne.s32.totalorder %s132, %s134
      %p138 = scmp.eq.s32.totalorder %s19, 0
      %p139 = por %p137, %p138
      %p140 = scmp.ne.s32.totalorder %s132, %s134
      %p141 = scmp.eq.s32.totalorder %s24, 1
      %p142 = por %p140, %p141
      %p143 = scmp.ne.s32.totalorder %s134, %s135
      %p144 = scmp.eq.s32.totalorder %s24, 0
      %p145 = por %p143, %p144
      %p146 = scmp.ne.s32.totalorder %s134, %s135
      %p147 = scmp.eq.s32.totalorder %s25, 1
      %p148 = por %p146, %p147
      %p150 = scmp.ne.s32.totalorder %s135, %s149
      %p151 = scmp.eq.s32.totalorder %s25, 0
      %p152 = por %p150, %p151
      %s154 = sadd.s32 %s153, 1
      %p157 = scmp.eq.s32.totalorder %s19, 1
      %p158 = scmp.ne.s32.totalorder %s153, %s155
      %p159 = scmp.eq.s32.totalorder %s19, 0
      %p160 = por %p158, %p159
      %p161 = scmp.ne.s32.totalorder %s153, %s155
      %p162 = scmp.eq.s32.totalorder %s24, 1
      %p163 = por %p161, %p162
      %p164 = scmp.ne.s32.totalorder %s155, %s156
      %p165 = scmp.eq.s32.totalorder %s24, 0
      %p166 = por %p164, %p165
      %p167 = scmp.ne.s32.totalorder %s155, %s156
      %p168 = scmp.eq.s32.totalorder %s25, 1
      %p169 = por %p167, %p168
      %p171 = scmp.ne.s32.totalorder %s156, %s170
      %p172 = scmp.eq.s32.totalorder %s25, 0
      %p173 = por %p171, %p172
      %s175 = sadd.s32 %s174, 1
      %p178 = scmp.eq.s32.totalorder %s19, 1
      %p179 = scmp.ne.s32.totalorder %s174, %s176
      %p180 = scmp.eq.s32.totalorder %s19, 0
      %p181 = por %p179, %p180
      %p182 = scmp.ne.s32.totalorder %s174, %s176
      %p183 = scmp.eq.s32.totalorder %s24, 1
      %p184 = por %p182, %p183
      %p185 = scmp.ne.s32.totalorder %s176, %s177
      %p186 = scmp.eq.s32.totalorder %s24, 0
      %p187 = por %p185, %p186
      %p188 = scmp.ne.s32.totalorder %s176, %s177
      %p189 = scmp.eq.s32.totalorder %s25, 1
      %p190 = por %p188, %p189
      %p192 = scmp.ne.s32.totalorder %s177, %s191
      %p193 = scmp.eq.s32.totalorder %s25, 0
      %p194 = por %p192, %p193
      %s196 = sadd.s32 %s195, 1
      %p199 = scmp.eq.s32.totalorder %s19, 1
      %p200 = scmp.ne.s32.totalorder %s195, %s197
      %p201 = scmp.eq.s32.totalorder %s19, 0
      %p202 = por %p200, %p201
      %p203 = scmp.ne.s32.totalorder %s195, %s197
      %p204 = scmp.eq.s32.totalorder %s24, 1
      %p205 = por %p203, %p204
      %p206 = scmp.ne.s32.totalorder %s197, %s198
      %p207 = scmp.eq.s32.totalorder %s24, 0
      %p208 = por %p206, %p207
      %p209 = scmp.ne.s32.totalorder %s197, %s198
      %p210 = scmp.eq.s32.totalorder %s25, 1
      %p211 = por %p209, %p210
      %p213 = scmp.ne.s32.totalorder %s198, %s212
      %p214 = scmp.eq.s32.totalorder %s25, 0
      %p215 = por %p213, %p214
      %s216 = ssub.s32 %s19, %s26
      %p217 = scmp.eq.s32.totalorder %s216, 0
      %s219 = sadd.s32 %s218, 1
      %s220 = scalar_select %p217, %s218, %s219
      %p223 = pneg %p217
      %p224 = scmp.eq.s32.totalorder %s19, 1
      %p225 = por %p223, %p224
      %p226 = scmp.ne.s32.totalorder %s218, %s221
      %p227 = scmp.eq.s32.totalorder %s19, 0
      %p228 = por %p226, %p227
      %p229 = scmp.ne.s32.totalorder %s218, %s221
      %p230 = scmp.eq.s32.totalorder %s24, 1
      %p231 = por %p229, %p230
      %p232 = scmp.ne.s32.totalorder %s221, %s222
      %p233 = scmp.eq.s32.totalorder %s24, 0
      %p234 = por %p232, %p233
      %p235 = scmp.ne.s32.totalorder %s221, %s222
      %p236 = scmp.eq.s32.totalorder %s25, 1
      %p237 = por %p235, %p236
      %p239 = scmp.ne.s32.totalorder %s222, %s238
      %p240 = scmp.eq.s32.totalorder %s25, 0
      %p241 = por %p239, %p240
      %p242 = scmp.le.s32.totalorder 1, %s19
      %p243 = scmp.lt.s32.totalorder %s19, 3
      %p244 = pnand %p242, %p243
      %p245 = pneg %p244
      // Predicated region
      $region9: #{decoder_forward.1} parent=5 // pred_check
        _
      $region10: #{decoder_forward.1} parent=5 // pred_check_branch
        %247 = sbr.rel (%p244) target = $region12
      $region11: #{decoder_forward.1} parent=5 // pred_region
        %s248 = ssub.s32 %s19, 1
        // Predicated region
        $region13: #{decoder_forward.1} parent=11 // pred_check
          %p249 = pneg %p40
        $region14: #{decoder_forward.1} parent=11 // pred_check_branch
          %251 = sbr.rel (%p249) target = $region16
        $region15: #{decoder_forward.1} parent=11 // pred_region
          %s253 = ssub.s32 32, 32
          %254 = vsyncadd [#allocation7], %s253
          %s256 = sshll.u32 [#allocation6], 4
          %s257 = int_to_ptr.vmem [resolvable:$true] %s256
          %259 = dma.hbm_to_vmem [thread:$0]  %s0, 32, %s257, [#allocation7]
        $region16: #{decoder_forward.1} parent=11 // pred_fallthru
          _
        // Predicated region
        $region17: #{decoder_forward.1} parent=11 // pred_check
          %p260 = pneg %p61
        $region18: #{decoder_forward.1} parent=11 // pred_check_branch
          %262 = sbr.rel (%p260) target = $region20
        $region19: #{decoder_forward.1} parent=11 // pred_region
          %s264 = ssub.s32 512, 512
          %265 = vsyncadd [#allocation9], %s264
          %s266 = sshll.u32 [#allocation8], 4
          %s267 = int_to_ptr.vmem [resolvable:$true] %s266
          %272 = dma.hbm_to_vmem [thread:$0]  %s1, 512, %s267, [#allocation9], 128, 128, 8
        $region20: #{decoder_forward.1} parent=11 // pred_fallthru
          _
        // Predicated region
        $region21: #{decoder_forward.1} parent=11 // pred_check
          %p273 = pneg %p82
        $region22: #{decoder_forward.1} parent=11 // pred_check_branch
          %275 = sbr.rel (%p273) target = $region24
        $region23: #{decoder_forward.1} parent=11 // pred_region
          _
        $region24: #{decoder_forward.1} parent=11 // pred_fallthru
          _
        // Predicated region
        $region25: #{decoder_forward.1} parent=11 // pred_check
          %p276 = pneg %p103
        $region26: #{decoder_forward.1} parent=11 // pred_check_branch
          %278 = sbr.rel (%p276) target = $region28
        $region27: #{decoder_forward.1} parent=11 // pred_region
          %s280 = ssub.s32 8192, 8192
          %281 = vsyncadd [#allocation9], %s280
          %s282 = sshll.u32 [#allocation10], 4
          %s283 = int_to_ptr.vmem [resolvable:$true] %s282
          %288 = dma.hbm_to_vmem [thread:$0]  %s3, 8192, %s283, [#allocation9], 512, 512, 32
        $region28: #{decoder_forward.1} parent=11 // pred_fallthru
          _
        // Predicated region
        $region29: #{decoder_forward.1} parent=11 // pred_check
          %p289 = pneg %p124
        $region30: #{decoder_forward.1} parent=11 // pred_check_branch
          %291 = sbr.rel (%p289) target = $region32
        $region31: #{decoder_forward.1} parent=11 // pred_region
          %s293 = ssub.s32 64, 64
          %294 = vsyncadd [#allocation12], %s293
          %s296 = sshll.u32 [#allocation11], 4
          %s297 = int_to_ptr.vmem [resolvable:$true] %s296
          %299 = dma.hbm_to_vmem [thread:$0]  %s4, 64, %s297, [#allocation12]
        $region32: #{decoder_forward.1} parent=11 // pred_fallthru
          _
        // Predicated region
        $region33: #{decoder_forward.1} parent=11 // pred_check
          %p300 = pneg %p145
        $region34: #{decoder_forward.1} parent=11 // pred_check_branch
          %302 = sbr.rel (%p300) target = $region36
        $region35: #{decoder_forward.1} parent=11 // pred_region
          %s304 = ssub.s32 4608, 4608
          %305 = vsyncadd [#allocation12], %s304
          %s306 = sshll.u32 [#allocation13], 4
          %s307 = int_to_ptr.vmem [resolvable:$true] %s306
          %312 = dma.hbm_to_vmem [thread:$0]  %s5, 4608, %s307, [#allocation12], 128, 128, 8
        $region36: #{decoder_forward.1} parent=11 // pred_fallthru
          _
        // Predicated region
        $region37: #{decoder_forward.1} parent=11 // pred_check
          %p313 = pneg %p166
        $region38: #{decoder_forward.1} parent=11 // pred_check_branch
          %315 = sbr.rel (%p313) target = $region40
        $region39: #{decoder_forward.1} parent=11 // pred_region
          _
        $region40: #{decoder_forward.1} parent=11 // pred_fallthru
          _
        // Predicated region
        $region41: #{decoder_forward.1} parent=11 // pred_check
          %p316 = pneg %p187
        $region42: #{decoder_forward.1} parent=11 // pred_check_branch
          %318 = sbr.rel (%p316) target = $region44
        $region43: #{decoder_forward.1} parent=11 // pred_region
          %s320 = ssub.s32 4608, 4608
          %321 = vsyncadd [#allocation15], %s320
          %s322 = sshll.u32 [#allocation14], 4
          %s323 = int_to_ptr.vmem [resolvable:$true] %s322
          %328 = dma.hbm_to_vmem [thread:$0]  %s7, 4608, %s323, [#allocation15], 128, 128, 8
        $region44: #{decoder_forward.1} parent=11 // pred_fallthru
          _
        // Predicated region
        $region45: #{decoder_forward.1} parent=11 // pred_check
          %p329 = pneg %p208
        $region46: #{decoder_forward.1} parent=11 // pred_check_branch
          %331 = sbr.rel (%p329) target = $region48
        $region47: #{decoder_forward.1} parent=11 // pred_region
          _
        $region48: #{decoder_forward.1} parent=11 // pred_fallthru
          _
      $region12: #{decoder_forward.1} parent=5 // pred_fallthru
        _
      %p332 = scmp.lt.s32.totalorder %s19, 2
      // Predicated region
      $region49: #{decoder_forward.1} parent=5 // pred_check
        %p333 = pneg %p332
      $region50: #{decoder_forward.1} parent=5 // pred_check_branch
        %335 = sbr.rel (%p333) target = $region52
      $region51: #{decoder_forward.1} parent=5 // pred_region
        _
      $region52: #{decoder_forward.1} parent=5 // pred_fallthru
        _
      %p336 = scmp.le.s32.totalorder 1, %s19
      %p337 = scmp.lt.s32.totalorder %s19, 3
      %p338 = pnand %p336, %p337
      %p339 = pneg %p338
      // Predicated region
      $region53: #{decoder_forward.1} parent=5 // pred_check
        _
      $region54: #{decoder_forward.1} parent=5 // pred_check_branch
        %341 = sbr.rel (%p338) target = $region56
      $region55: #{decoder_forward.1} parent=5 // pred_region
        %s342 = ssub.s32 %s19, 1
        // Predicated region
        $region57: #{decoder_forward.1} parent=55 // pred_check
          %p343 = pneg %p40
        $region58: #{decoder_forward.1} parent=55 // pred_check_branch
          %345 = sbr.rel (%p343) target = $region60
        $region59: #{decoder_forward.1} parent=55 // pred_region
          %346 = dma.done [#allocation7], 32
        $region60: #{decoder_forward.1} parent=55 // pred_fallthru
          _
        // Predicated region
        $region61: #{decoder_forward.1} parent=55 // pred_check
          %p347 = pneg %p61
        $region62: #{decoder_forward.1} parent=55 // pred_check_branch
          %349 = sbr.rel (%p347) target = $region64
        $region63: #{decoder_forward.1} parent=55 // pred_region
          %350 = dma.done [#allocation9], 512
        $region64: #{decoder_forward.1} parent=55 // pred_fallthru
          _
        // Predicated region
        $region65: #{decoder_forward.1} parent=55 // pred_check
          %p351 = pneg %p103
        $region66: #{decoder_forward.1} parent=55 // pred_check_branch
          %353 = sbr.rel (%p351) target = $region68
        $region67: #{decoder_forward.1} parent=55 // pred_region
          %354 = dma.done [#allocation9], 8192
        $region68: #{decoder_forward.1} parent=55 // pred_fallthru
          _
        // Predicated region
        $region69: #{decoder_forward.1} parent=55 // pred_check
          %p355 = pneg %p124
        $region70: #{decoder_forward.1} parent=55 // pred_check_branch
          %357 = sbr.rel (%p355) target = $region72
        $region71: #{decoder_forward.1} parent=55 // pred_region
          %358 = dma.done [#allocation12], 64
        $region72: #{decoder_forward.1} parent=55 // pred_fallthru
          _
        // Predicated region
        $region73: #{decoder_forward.1} parent=55 // pred_check
          %p359 = pneg %p145
        $region74: #{decoder_forward.1} parent=55 // pred_check_branch
          %361 = sbr.rel (%p359) target = $region76
        $region75: #{decoder_forward.1} parent=55 // pred_region
          %362 = dma.done [#allocation12], 4608
        $region76: #{decoder_forward.1} parent=55 // pred_fallthru
          _
        // Predicated region
        $region77: #{decoder_forward.1} parent=55 // pred_check
          %p363 = pneg %p187
        $region78: #{decoder_forward.1} parent=55 // pred_check_branch
          %365 = sbr.rel (%p363) target = $region80
        $region79: #{decoder_forward.1} parent=55 // pred_region
          %366 = dma.done [#allocation15], 4608
        $region80: #{decoder_forward.1} parent=55 // pred_fallthru
          _
        %p367 = pneg %p40
        %p368 = pneg %p37
        %p369 = pneg %p61
        %p370 = pneg %p58
        %p371 = pneg %p82
        %p372 = pneg %p79
        %p373 = pneg %p103
        %p374 = pneg %p100
        %p375 = pneg %p124
        %p376 = pneg %p121
        %p377 = pneg %p145
        %p378 = pneg %p142
        %p379 = pneg %p166
        %p380 = pneg %p163
        %p381 = pneg %p187
        %p382 = pneg %p184
        %p383 = pneg %p208
        %p384 = pneg %p205
        %p385 = pneg %p234
        %p386 = pneg %p231
        %s387 = smul.u32 16, %s24
        %p388 = scmp.lt.s32.totalorder %s387, 31
        %s389 = scalar_select %p388, %s387, 31
        %s390 = smul.addr %s389, 8
        %s391 = scalar_lea.vmem %s9, %s390
        %s392 = smul.u32 16, %s24
        %p393 = scmp.lt.s32.totalorder %s392, 31
        %s394 = scalar_select %p393, %s392, 31
        %s395 = smul.addr %s394, 8
        %s396 = scalar_lea.vmem %s9, %s395
        %s397 = smul.u32 16, %s24
        %s398 = scalar_lea.vmem [#allocation6], %s24
        %v399 = vld [vmem:[%s398] sm:$0x1]
        %v400 = vld [vmem:[#allocation8] sm:$0xff]
        %v401 = vld [vmem:[#allocation8 + $0x8] sm:$0xff]
        %v402 = vld [vmem:[#allocation8 + $0x10] sm:$0xff]
        %v403 = vld [vmem:[#allocation8 + $0x18] sm:$0xff]
        %v404 = vld [vmem:[%s2] sm:$0x1]
        %vm405 = vcmask 261120
        %v407 = vsel %vm405, %v399, 0
        %409 = vmatprep.subr.mxu0 0.0
        %410 = vmatpush1.msra.mxu0 0.0
        %411 = vmatprep.subr.mxu0 0.0
        %412 = vmatpush1.msra.mxu0 0.0
        %413 = vmatprep.subr.mxu0 0.0
        %414 = vmatpush1.msra.mxu0 0.0
        %415 = vmatprep.subr.mxu0 0.0
        %416 = vmatpush1.msra.mxu0 0.0
        %417 = vmatprep.subr.mxu0 0.0
        %418 = vmatpush1.msra.mxu0 0.0
        %419 = vmatprep.subr.mxu0 0.0
        %420 = vmatpush1.msra.mxu0 0.0
        %421 = vmatprep.subr.mxu0 0.0
        %422 = vmatpush1.msra.mxu0 0.0
        %423 = vmatprep.subr.mxu0 0.0
        %424 = vmatpush1.msra.mxu0 0.0
        %425 = vmatprep.subr.mxu0 0.0
        %426 = vmatpush1.msra.mxu0 0.0
        %427 = vmatprep.subr.mxu0 0.0
        %428 = vmatpush1.msra.mxu0 0.0
        %429 = vmatprep.subr.mxu0 0.0
        %430 = vmatpush1.msra.mxu0 0.0
        %431 = vmatprep.subr.mxu0 0.0
        %432 = vmatpush1.msra.mxu0 0.0
        %433 = vmatprep.subr.mxu0 0.0
        %434 = vmatpush1.msra.mxu0 %v403
        %435 = vmatprep.subr.mxu0 0.0
        %436 = vmatpush1.msra.mxu0 %v402
        %437 = vmatprep.subr.mxu0 0.0
        %438 = vmatpush1.msra.mxu0 %v401
        %439 = vmatprep.subr.mxu0 0.0
        %440 = vmatpush1.msra.mxu0 %v400
        %441 = vmatprep.subr.mxu0 0.0
        %442 = vmatpush2.msra.mxu0 0.0
        %443 = vmatprep.subr.mxu0 0.0
        %444 = vmatpush2.msra.mxu0 0.0
        %445 = vmatprep.subr.mxu0 0.0
        %446 = vmatpush2.msra.mxu0 0.0
        %447 = vmatprep.subr.mxu0 0.0
        %448 = vmatpush2.msra.mxu0 0.0
        %449 = vmatprep.subr.mxu0 0.0
        %450 = vmatpush2.msra.mxu0 0.0
        %451 = vmatprep.subr.mxu0 0.0
        %452 = vmatpush2.msra.mxu0 0.0
        %453 = vmatprep.subr.mxu0 0.0
        %454 = vmatpush2.msra.mxu0 0.0
        %455 = vmatprep.subr.mxu0 0.0
        %456 = vmatpush2.msra.mxu0 0.0
        %457 = vmatprep.subr.mxu0 0.0
        %458 = vmatpush2.msra.mxu0 0.0
        %459 = vmatprep.subr.mxu0 0.0
        %460 = vmatpush2.msra.mxu0 0.0
        %461 = vmatprep.subr.mxu0 0.0
        %462 = vmatpush2.msra.mxu0 0.0
        %463 = vmatprep.subr.mxu0 0.0
        %464 = vmatpush2.msra.mxu0 0.0
        %465 = vmatprep.subr.mxu0 0.0
        %466 = vmatpush2.msra.mxu0 0.0
        %467 = vmatprep.subr.mxu0 0.0
        %468 = vmatpush2.msra.mxu0 0.0
        %469 = vmatprep.subr.mxu0 0.0
        %470 = vmatpush2.msra.mxu0 0.0
        %471 = vmatprep.subr.mxu0 0.0
        %472 = vmatpush2.msra.mxu0 0.0
        %473 = vmatprep.mubr.f32.mxu0 0.0
        %474 = vmatmul.mubr.f32.gmra.mxu0 %v407
        %v475 = vpop.f32.mrf.mxu0
        %v476 = vadd.f32 %v404, %v475
        %v477 = vpop.f32.mrf.mxu0
        %478 = vdwg.mxu0
        %v479 = vmax.f32 %v476, 0.0
        %v480 = vld [vmem:[#allocation10] sm:$0xff]
        %v481 = vld [vmem:[#allocation10 + $0x8] sm:$0xff]
        %v482 = vld [vmem:[#allocation10 + $0x10] sm:$0xff]
        %v483 = vld [vmem:[#allocation10 + $0x18] sm:$0xff]
        %v484 = vld [vmem:[#allocation10 + $0x20] sm:$0xff]
        %v485 = vld [vmem:[#allocation10 + $0x28] sm:$0xff]
        %v486 = vld [vmem:[#allocation10 + $0x30] sm:$0xff]
        %v487 = vld [vmem:[#allocation10 + $0x38] sm:$0xff]
        %v488 = vld [vmem:[#allocation10 + $0x40] sm:$0xff]
        %v489 = vld [vmem:[#allocation10 + $0x48] sm:$0xff]
        %v490 = vld [vmem:[#allocation10 + $0x50] sm:$0xff]
        %v491 = vld [vmem:[#allocation10 + $0x58] sm:$0xff]
        %v492 = vld [vmem:[#allocation10 + $0x60] sm:$0xff]
        %v493 = vld [vmem:[#allocation10 + $0x68] sm:$0xff]
        %v494 = vld [vmem:[#allocation10 + $0x70] sm:$0xff]
        %v495 = vld [vmem:[#allocation10 + $0x78] sm:$0xff]
        %v496 = vld [vmem:[#allocation10 + $0x80] sm:$0xff]
        %v497 = vld [vmem:[#allocation10 + $0x88] sm:$0xff]
        %v498 = vld [vmem:[#allocation10 + $0x90] sm:$0xff]
        %v499 = vld [vmem:[#allocation10 + $0x98] sm:$0xff]
        %v500 = vld [vmem:[#allocation10 + $0xa0] sm:$0xff]
        %v501 = vld [vmem:[#allocation10 + $0xa8] sm:$0xff]
        %v502 = vld [vmem:[#allocation10 + $0xb0] sm:$0xff]
        %v503 = vld [vmem:[#allocation10 + $0xb8] sm:$0xff]
        %v504 = vld [vmem:[#allocation10 + $0xc0] sm:$0xff]
        %v505 = vld [vmem:[#allocation10 + $0xc8] sm:$0xff]
        %v506 = vld [vmem:[#allocation10 + $0xd0] sm:$0xff]
        %v507 = vld [vmem:[#allocation10 + $0xd8] sm:$0xff]
        %v508 = vld [vmem:[#allocation10 + $0xe0] sm:$0xff]
        %v509 = vld [vmem:[#allocation10 + $0xe8] sm:$0xff]
        %v510 = vld [vmem:[#allocation10 + $0xf0] sm:$0xff]
        %v511 = vld [vmem:[#allocation10 + $0xf8] sm:$0xff]
        %v512 = vld [vmem:[#allocation10 + $0x100] sm:$0xff]
        %v513 = vld [vmem:[#allocation10 + $0x108] sm:$0xff]
        %v514 = vld [vmem:[#allocation10 + $0x110] sm:$0xff]
        %v515 = vld [vmem:[#allocation10 + $0x118] sm:$0xff]
        %v516 = vld [vmem:[#allocation10 + $0x120] sm:$0xff]
        %v517 = vld [vmem:[#allocation10 + $0x128] sm:$0xff]
        %v518 = vld [vmem:[#allocation10 + $0x130] sm:$0xff]
        %v519 = vld [vmem:[#allocation10 + $0x138] sm:$0xff]
        %v520 = vld [vmem:[#allocation10 + $0x140] sm:$0xff]
        %v521 = vld [vmem:[#allocation10 + $0x148] sm:$0xff]
        %v522 = vld [vmem:[#allocation10 + $0x150] sm:$0xff]
        %v523 = vld [vmem:[#allocation10 + $0x158] sm:$0xff]
        %v524 = vld [vmem:[#allocation10 + $0x160] sm:$0xff]
        %v525 = vld [vmem:[#allocation10 + $0x168] sm:$0xff]
        %v526 = vld [vmem:[#allocation10 + $0x170] sm:$0xff]
        %v527 = vld [vmem:[#allocation10 + $0x178] sm:$0xff]
        %v528 = vld [vmem:[#allocation10 + $0x180] sm:$0xff]
        %v529 = vld [vmem:[#allocation10 + $0x188] sm:$0xff]
        %v530 = vld [vmem:[#allocation10 + $0x190] sm:$0xff]
        %v531 = vld [vmem:[#allocation10 + $0x198] sm:$0xff]
        %v532 = vld [vmem:[#allocation10 + $0x1a0] sm:$0xff]
        %v533 = vld [vmem:[#allocation10 + $0x1a8] sm:$0xff]
        %v534 = vld [vmem:[#allocation10 + $0x1b0] sm:$0xff]
        %v535 = vld [vmem:[#allocation10 + $0x1b8] sm:$0xff]
        %v536 = vld [vmem:[#allocation10 + $0x1c0] sm:$0xff]
        %v537 = vld [vmem:[#allocation10 + $0x1c8] sm:$0xff]
        %v538 = vld [vmem:[#allocation10 + $0x1d0] sm:$0xff]
        %v539 = vld [vmem:[#allocation10 + $0x1d8] sm:$0xff]
        %v540 = vld [vmem:[#allocation10 + $0x1e0] sm:$0xff]
        %v541 = vld [vmem:[#allocation10 + $0x1e8] sm:$0xff]
        %v542 = vld [vmem:[#allocation10 + $0x1f0] sm:$0xff]
        %v543 = vld [vmem:[#allocation10 + $0x1f8] sm:$0xff]
        %v544 = vld [vmem:[#allocation11] sm:$0xf]
        %v546 = vlaneseq
        %v547 = vshrl.u32 %v546, 7
        %v548 = vsub.s32 0, %v547
        %v549 = vrot.slane %v544, %v548
        %v550 = vlaneseq
        %v551 = vshrl.u32 %v550, 7
        %v552 = vsub.s32 1, %v551
        %v553 = vrot.slane %v544, %v552
        %v554 = vlaneseq
        %v555 = vshrl.u32 %v554, 7
        %v556 = vsub.s32 2, %v555
        %v557 = vrot.slane %v544, %v556
        %v558 = vlaneseq
        %v559 = vshrl.u32 %v558, 7
        %v560 = vsub.s32 3, %v559
        %v561 = vrot.slane %v544, %v560
        %566 = vmatprep.subr.mxu0 %v541
        %567 = vmatpush1.msra.mxu0 %v540
        %568 = vmatprep.subr.mxu0 %v537
        %569 = vmatpush1.msra.mxu0 %v536
        %570 = vmatprep.subr.mxu0 %v533
        %571 = vmatpush1.msra.mxu0 %v532
        %572 = vmatprep.subr.mxu0 %v529
        %573 = vmatpush1.msra.mxu0 %v528
        %574 = vmatprep.subr.mxu0 %v525
        %575 = vmatpush1.msra.mxu0 %v524
        %576 = vmatprep.subr.mxu0 %v521
        %577 = vmatpush1.msra.mxu0 %v520
        %578 = vmatprep.subr.mxu0 %v517
        %579 = vmatpush1.msra.mxu0 %v516
        %580 = vmatprep.subr.mxu0 %v513
        %581 = vmatpush1.msra.mxu0 %v512
        %582 = vmatprep.subr.mxu0 %v509
        %583 = vmatpush1.msra.mxu0 %v508
        %584 = vmatprep.subr.mxu0 %v505
        %585 = vmatpush1.msra.mxu0 %v504
        %586 = vmatprep.subr.mxu0 %v501
        %587 = vmatpush1.msra.mxu0 %v500
        %588 = vmatprep.subr.mxu0 %v497
        %589 = vmatpush1.msra.mxu0 %v496
        %590 = vmatprep.subr.mxu0 %v493
        %591 = vmatpush1.msra.mxu0 %v492
        %592 = vmatprep.subr.mxu0 %v489
        %593 = vmatpush1.msra.mxu0 %v488
        %594 = vmatprep.subr.mxu0 %v485
        %595 = vmatpush1.msra.mxu0 %v484
        %596 = vmatprep.subr.mxu0 %v481
        %597 = vmatpush1.msra.mxu0 %v480
        %598 = vmatprep.subr.mxu0 0.0
        %599 = vmatpush2.msra.mxu0 0.0
        %600 = vmatprep.subr.mxu0 0.0
        %601 = vmatpush2.msra.mxu0 0.0
        %602 = vmatprep.subr.mxu0 0.0
        %603 = vmatpush2.msra.mxu0 0.0
        %604 = vmatprep.subr.mxu0 0.0
        %605 = vmatpush2.msra.mxu0 0.0
        %606 = vmatprep.subr.mxu0 0.0
        %607 = vmatpush2.msra.mxu0 0.0
        %608 = vmatprep.subr.mxu0 0.0
        %609 = vmatpush2.msra.mxu0 0.0
        %610 = vmatprep.subr.mxu0 0.0
        %611 = vmatpush2.msra.mxu0 0.0
        %612 = vmatprep.subr.mxu0 0.0
        %613 = vmatpush2.msra.mxu0 0.0
        %614 = vmatprep.subr.mxu0 0.0
        %615 = vmatpush2.msra.mxu0 0.0
        %616 = vmatprep.subr.mxu0 0.0
        %617 = vmatpush2.msra.mxu0 0.0
        %618 = vmatprep.subr.mxu0 0.0
        %619 = vmatpush2.msra.mxu0 0.0
        %620 = vmatprep.subr.mxu0 0.0
        %621 = vmatpush2.msra.mxu0 0.0
        %622 = vmatprep.subr.mxu0 0.0
        %623 = vmatpush2.msra.mxu0 0.0
        %624 = vmatprep.subr.mxu0 0.0
        %625 = vmatpush2.msra.mxu0 0.0
        %626 = vmatprep.subr.mxu0 0.0
        %627 = vmatpush2.msra.mxu0 0.0
        %628 = vmatprep.subr.mxu0 0.0
        %629 = vmatpush2.msra.mxu0 0.0
        %630 = vmatprep.mubr.f32.mxu0 0.0
        %631 = vmatmul.mubr.f32.gmra.mxu0 %v479
        %v632 = vpop.f32.mrf.mxu0
        %v633 = vadd.f32 %v549, %v632
        %v634 = vpop.f32.mrf.mxu0
        %v635 = vadd.f32 %v553, %v634
        %636 = vdwg.mxu0
        %637 = vmatprep.subr.mxu0 %v543
        %638 = vmatpush1.msra.mxu0 %v542
        %639 = vmatprep.subr.mxu0 %v539
        %640 = vmatpush1.msra.mxu0 %v538
        %641 = vmatprep.subr.mxu0 %v535
        %642 = vmatpush1.msra.mxu0 %v534
        %643 = vmatprep.subr.mxu0 %v531
        %644 = vmatpush1.msra.mxu0 %v530
        %645 = vmatprep.subr.mxu0 %v527
        %646 = vmatpush1.msra.mxu0 %v526
        %647 = vmatprep.subr.mxu0 %v523
        %648 = vmatpush1.msra.mxu0 %v522
        %649 = vmatprep.subr.mxu0 %v519
        %650 = vmatpush1.msra.mxu0 %v518
        %651 = vmatprep.subr.mxu0 %v515
        %652 = vmatpush1.msra.mxu0 %v514
        %653 = vmatprep.subr.mxu0 %v511
        %654 = vmatpush1.msra.mxu0 %v510
        %655 = vmatprep.subr.mxu0 %v507
        %656 = vmatpush1.msra.mxu0 %v506
        %657 = vmatprep.subr.mxu0 %v503
        %658 = vmatpush1.msra.mxu0 %v502
        %659 = vmatprep.subr.mxu0 %v499
        %660 = vmatpush1.msra.mxu0 %v498
        %661 = vmatprep.subr.mxu0 %v495
        %662 = vmatpush1.msra.mxu0 %v494
        %663 = vmatprep.subr.mxu0 %v491
        %664 = vmatpush1.msra.mxu0 %v490
        %665 = vmatprep.subr.mxu0 %v487
        %666 = vmatpush1.msra.mxu0 %v486
        %667 = vmatprep.subr.mxu0 %v483
        %668 = vmatpush1.msra.mxu0 %v482
        %669 = vmatprep.subr.mxu0 0.0
        %670 = vmatpush2.msra.mxu0 0.0
        %671 = vmatprep.subr.mxu0 0.0
        %672 = vmatpush2.msra.mxu0 0.0
        %673 = vmatprep.subr.mxu0 0.0
        %674 = vmatpush2.msra.mxu0 0.0
        %675 = vmatprep.subr.mxu0 0.0
        %676 = vmatpush2.msra.mxu0 0.0
        %677 = vmatprep.subr.mxu0 0.0
        %678 = vmatpush2.msra.mxu0 0.0
        %679 = vmatprep.subr.mxu0 0.0
        %680 = vmatpush2.msra.mxu0 0.0
        %681 = vmatprep.subr.mxu0 0.0
        %682 = vmatpush2.msra.mxu0 0.0
        %683 = vmatprep.subr.mxu0 0.0
        %684 = vmatpush2.msra.mxu0 0.0
        %685 = vmatprep.subr.mxu0 0.0
        %686 = vmatpush2.msra.mxu0 0.0
        %687 = vmatprep.subr.mxu0 0.0
        %688 = vmatpush2.msra.mxu0 0.0
        %689 = vmatprep.subr.mxu0 0.0
        %690 = vmatpush2.msra.mxu0 0.0
        %691 = vmatprep.subr.mxu0 0.0
        %692 = vmatpush2.msra.mxu0 0.0
        %693 = vmatprep.subr.mxu0 0.0
        %694 = vmatpush2.msra.mxu0 0.0
        %695 = vmatprep.subr.mxu0 0.0
        %696 = vmatpush2.msra.mxu0 0.0
        %697 = vmatprep.subr.mxu0 0.0
        %698 = vmatpush2.msra.mxu0 0.0
        %699 = vmatprep.subr.mxu0 0.0
        %700 = vmatpush2.msra.mxu0 0.0
        %701 = vmatprep.mubr.f32.mxu0 0.0
        %702 = vmatmul.mubr.f32.gmra.mxu0 %v479
        %v703 = vpop.f32.mrf.mxu0
        %v704 = vadd.f32 %v557, %v703
        %v705 = vpop.f32.mrf.mxu0
        %v706 = vadd.f32 %v561, %v705
        %707 = vdwg.mxu0
        %v708 = vmax.f32 %v633, 0.0
        %v709 = vmax.f32 %v635, 0.0
        %v710 = vmax.f32 %v704, 0.0
        %v711 = vmax.f32 %v706, 0.0
        %712 = vst.msk [vmem:[#allocation2] sm:$0xff] %vm405, 0.0
        %713 = vst.msk [vmem:[#allocation2 + $0x8] sm:$0xff] %vm405, 0.0
        %714 = vst.msk [vmem:[#allocation2 + $0x10] sm:$0xff] %vm405, 0.0
        %715 = vst.msk [vmem:[#allocation2 + $0x18] sm:$0xff] %vm405, 0.0
        %716 = vst.msk [vmem:[#allocation2 + $0x20] sm:$0xff] %vm405, 0.0
        %717 = vst.msk [vmem:[#allocation2 + $0x28] sm:$0xff] %vm405, 0.0
        %718 = vst.msk [vmem:[#allocation2 + $0x30] sm:$0xff] %vm405, 0.0
        %vm719 = vcmask 253952
        %720 = vst.msk [vmem:[#allocation2 + $0x9] sm:$0x1] %vm719, %v708
        %722 = vrot.lane.b32.xlu0 %v708, 96
        %v723 = vpop.permute.xlu0 %722
        %725 = vst.msk [vmem:[#allocation2 + $0xa] sm:$0x1] %vm719, %v723
        %726 = vrot.lane.b32.xlu0 %v708, 64
        %v727 = vpop.permute.xlu0 %726
        %729 = vst.msk [vmem:[#allocation2 + $0xb] sm:$0x1] %vm719, %v727
        %730 = vrot.lane.b32.xlu0 %v708, 32
        %v731 = vpop.permute.xlu0 %730
        %733 = vst.msk [vmem:[#allocation2 + $0xc] sm:$0x1] %vm719, %v731
        %734 = vst.msk [vmem:[#allocation2 + $0x11] sm:$0x1] %vm719, %v709
        %736 = vrot.lane.b32.xlu0 %v709, 96
        %v737 = vpop.permute.xlu0 %736
        %739 = vst.msk [vmem:[#allocation2 + $0x12] sm:$0x1] %vm719, %v737
        %740 = vrot.lane.b32.xlu0 %v709, 64
        %v741 = vpop.permute.xlu0 %740
        %743 = vst.msk [vmem:[#allocation2 + $0x13] sm:$0x1] %vm719, %v741
        %744 = vrot.lane.b32.xlu0 %v709, 32
        %v745 = vpop.permute.xlu0 %744
        %747 = vst.msk [vmem:[#allocation2 + $0x14] sm:$0x1] %vm719, %v745
        %748 = vst.msk [vmem:[#allocation2 + $0x19] sm:$0x1] %vm719, %v710
        %750 = vrot.lane.b32.xlu0 %v710, 96
        %v751 = vpop.permute.xlu0 %750
        %753 = vst.msk [vmem:[#allocation2 + $0x1a] sm:$0x1] %vm719, %v751
        %754 = vrot.lane.b32.xlu0 %v710, 64
        %v755 = vpop.permute.xlu0 %754
        %757 = vst.msk [vmem:[#allocation2 + $0x1b] sm:$0x1] %vm719, %v755
        %758 = vrot.lane.b32.xlu0 %v710, 32
        %v759 = vpop.permute.xlu0 %758
        %761 = vst.msk [vmem:[#allocation2 + $0x1c] sm:$0x1] %vm719, %v759
        %762 = vst.msk [vmem:[#allocation2 + $0x21] sm:$0x1] %vm719, %v711
        %764 = vrot.lane.b32.xlu0 %v711, 96
        %v765 = vpop.permute.xlu0 %764
        %767 = vst.msk [vmem:[#allocation2 + $0x22] sm:$0x1] %vm719, %v765
        %768 = vrot.lane.b32.xlu0 %v711, 64
        %v769 = vpop.permute.xlu0 %768
        %771 = vst.msk [vmem:[#allocation2 + $0x23] sm:$0x1] %vm719, %v769
        %772 = vrot.lane.b32.xlu0 %v711, 32
        %v773 = vpop.permute.xlu0 %772
        %775 = vst.msk [vmem:[#allocation2 + $0x24] sm:$0x1] %vm719, %v773
        %v776 = vld [vmem:[#allocation2] sm:$0xff]
        %v777 = vld [vmem:[#allocation2 + $0x8] sm:$0xff]
        %v778 = vld [vmem:[#allocation2 + $0x10] sm:$0xff]
        %v779 = vld [vmem:[#allocation2 + $0x18] sm:$0xff]
        %780 = vst.msk [vmem:[#allocation3] sm:$0xff] %vm405, %v776
        %781 = vst.msk [vmem:[#allocation3 + $0x18] sm:$0xff] %vm405, %v777
        %782 = vst.msk [vmem:[#allocation3 + $0x30] sm:$0xff] %vm405, %v778
        %783 = vst.msk [vmem:[#allocation3 + $0x48] sm:$0xff] %vm405, %v779
        %v784 = vld [vmem:[#allocation2 + $0x1] sm:$0xff]
        %v785 = vld [vmem:[#allocation2 + $0x9] sm:$0xff]
        %v786 = vld [vmem:[#allocation2 + $0x11] sm:$0xff]
        %v787 = vld [vmem:[#allocation2 + $0x19] sm:$0xff]
        %792 = vrot.lane.b32.xlu0 %v784, 32
        %v793 = vpop.permute.xlu0 %792
        %794 = vrot.lane.b32.xlu0 %v785, 32
        %v795 = vpop.permute.xlu0 %794
        %796 = vrot.lane.b32.xlu0 %v786, 32
        %v797 = vpop.permute.xlu0 %796
        %798 = vrot.lane.b32.xlu0 %v787, 32
        %v799 = vpop.permute.xlu0 %798
        %vm804 = vcmask 523520
        %805 = vst.msk [vmem:[#allocation3] sm:$0xff] %vm804, %v793
        %806 = vst.msk [vmem:[#allocation3 + $0x18] sm:$0xff] %vm804, %v795
        %807 = vst.msk [vmem:[#allocation3 + $0x30] sm:$0xff] %vm804, %v797
        %808 = vst.msk [vmem:[#allocation3 + $0x48] sm:$0xff] %vm804, %v799
        %v809 = vld [vmem:[#allocation2 + $0x2] sm:$0xff]
        %v810 = vld [vmem:[#allocation2 + $0xa] sm:$0xff]
        %v811 = vld [vmem:[#allocation2 + $0x12] sm:$0xff]
        %v812 = vld [vmem:[#allocation2 + $0x1a] sm:$0xff]
        %817 = vrot.lane.b32.xlu0 %v809, 64
        %v818 = vpop.permute.xlu0 %817
        %819 = vrot.lane.b32.xlu0 %v810, 64
        %v820 = vpop.permute.xlu0 %819
        %821 = vrot.lane.b32.xlu0 %v811, 64
        %v822 = vpop.permute.xlu0 %821
        %823 = vrot.lane.b32.xlu0 %v812, 64
        %v824 = vpop.permute.xlu0 %823
        %vm829 = vcmask 785920
        %830 = vst.msk [vmem:[#allocation3] sm:$0xff] %vm829, %v818
        %831 = vst.msk [vmem:[#allocation3 + $0x18] sm:$0xff] %vm829, %v820
        %832 = vst.msk [vmem:[#allocation3 + $0x30] sm:$0xff] %vm829, %v822
        %833 = vst.msk [vmem:[#allocation3 + $0x48] sm:$0xff] %vm829, %v824
        %v834 = vld [vmem:[#allocation2 + $0x8] sm:$0xff]
        %v835 = vld [vmem:[#allocation2 + $0x10] sm:$0xff]
        %v836 = vld [vmem:[#allocation2 + $0x18] sm:$0xff]
        %v837 = vld [vmem:[#allocation2 + $0x20] sm:$0xff]
        %842 = vrot.lane.b32.xlu0 %v834, 96
        %v843 = vpop.permute.xlu0 %842
        %844 = vrot.lane.b32.xlu0 %v835, 96
        %v845 = vpop.permute.xlu0 %844
        %846 = vrot.lane.b32.xlu0 %v836, 96
        %v847 = vpop.permute.xlu0 %846
        %848 = vrot.lane.b32.xlu0 %v837, 96
        %v849 = vpop.permute.xlu0 %848
        %vm854 = vcmask 1048320
        %855 = vst.msk [vmem:[#allocation3] sm:$0xff] %vm854, %v843
        %856 = vst.msk [vmem:[#allocation3 + $0x18] sm:$0xff] %vm854, %v845
        %857 = vst.msk [vmem:[#allocation3 + $0x30] sm:$0xff] %vm854, %v847
        %858 = vst.msk [vmem:[#allocation3 + $0x48] sm:$0xff] %vm854, %v849
        %v859 = vld [vmem:[#allocation2 + $0x9] sm:$0xff]
        %v860 = vld [vmem:[#allocation2 + $0x11] sm:$0xff]
        %v861 = vld [vmem:[#allocation2 + $0x19] sm:$0xff]
        %v862 = vld [vmem:[#allocation2 + $0x21] sm:$0xff]
        %863 = vst.msk [vmem:[#allocation3 + $0x8] sm:$0xff] %vm405, %v859
        %864 = vst.msk [vmem:[#allocation3 + $0x20] sm:$0xff] %vm405, %v860
        %865 = vst.msk [vmem:[#allocation3 + $0x38] sm:$0xff] %vm405, %v861
        %866 = vst.msk [vmem:[#allocation3 + $0x50] sm:$0xff] %vm405, %v862
        %v867 = vld [vmem:[#allocation2 + $0xa] sm:$0xff]
        %v868 = vld [vmem:[#allocation2 + $0x12] sm:$0xff]
        %v869 = vld [vmem:[#allocation2 + $0x1a] sm:$0xff]
        %v870 = vld [vmem:[#allocation2 + $0x22] sm:$0xff]
        %875 = vrot.lane.b32.xlu0 %v867, 32
        %v876 = vpop.permute.xlu0 %875
        %877 = vrot.lane.b32.xlu0 %v868, 32
        %v878 = vpop.permute.xlu0 %877
        %879 = vrot.lane.b32.xlu0 %v869, 32
        %v880 = vpop.permute.xlu0 %879
        %881 = vrot.lane.b32.xlu0 %v870, 32
        %v882 = vpop.permute.xlu0 %881
        %887 = vst.msk [vmem:[#allocation3 + $0x8] sm:$0xff] %vm804, %v876
        %888 = vst.msk [vmem:[#allocation3 + $0x20] sm:$0xff] %vm804, %v878
        %889 = vst.msk [vmem:[#allocation3 + $0x38] sm:$0xff] %vm804, %v880
        %890 = vst.msk [vmem:[#allocation3 + $0x50] sm:$0xff] %vm804, %v882
        %v891 = vld [vmem:[#allocation2 + $0x10] sm:$0xff]
        %v892 = vld [vmem:[#allocation2 + $0x18] sm:$0xff]
        %v893 = vld [vmem:[#allocation2 + $0x20] sm:$0xff]
        %v894 = vld [vmem:[#allocation2 + $0x28] sm:$0xff]
        %899 = vrot.lane.b32.xlu0 %v891, 64
        %v900 = vpop.permute.xlu0 %899
        %901 = vrot.lane.b32.xlu0 %v892, 64
        %v902 = vpop.permute.xlu0 %901
        %903 = vrot.lane.b32.xlu0 %v893, 64
        %v904 = vpop.permute.xlu0 %903
        %905 = vrot.lane.b32.xlu0 %v894, 64
        %v906 = vpop.permute.xlu0 %905
        %911 = vst.msk [vmem:[#allocation3 + $0x8] sm:$0xff] %vm829, %v900
        %912 = vst.msk [vmem:[#allocation3 + $0x20] sm:$0xff] %vm829, %v902
        %913 = vst.msk [vmem:[#allocation3 + $0x38] sm:$0xff] %vm829, %v904
        %914 = vst.msk [vmem:[#allocation3 + $0x50] sm:$0xff] %vm829, %v906
        %v915 = vld [vmem:[#allocation2 + $0x11] sm:$0xff]
        %v916 = vld [vmem:[#allocation2 + $0x19] sm:$0xff]
        %v917 = vld [vmem:[#allocation2 + $0x21] sm:$0xff]
        %v918 = vld [vmem:[#allocation2 + $0x29] sm:$0xff]
        %923 = vrot.lane.b32.xlu0 %v915, 96
        %v924 = vpop.permute.xlu0 %923
        %925 = vrot.lane.b32.xlu0 %v916, 96
        %v926 = vpop.permute.xlu0 %925
        %927 = vrot.lane.b32.xlu0 %v917, 96
        %v928 = vpop.permute.xlu0 %927
        %929 = vrot.lane.b32.xlu0 %v918, 96
        %v930 = vpop.permute.xlu0 %929
        %935 = vst.msk [vmem:[#allocation3 + $0x8] sm:$0xff] %vm854, %v924
        %936 = vst.msk [vmem:[#allocation3 + $0x20] sm:$0xff] %vm854, %v926
        %937 = vst.msk [vmem:[#allocation3 + $0x38] sm:$0xff] %vm854, %v928
        %938 = vst.msk [vmem:[#allocation3 + $0x50] sm:$0xff] %vm854, %v930
        %v939 = vld [vmem:[#allocation2 + $0x12] sm:$0xff]
        %v940 = vld [vmem:[#allocation2 + $0x1a] sm:$0xff]
        %v941 = vld [vmem:[#allocation2 + $0x22] sm:$0xff]
        %v942 = vld [vmem:[#allocation2 + $0x2a] sm:$0xff]
        %943 = vst.msk [vmem:[#allocation3 + $0x10] sm:$0xff] %vm405, %v939
        %944 = vst.msk [vmem:[#allocation3 + $0x28] sm:$0xff] %vm405, %v940
        %945 = vst.msk [vmem:[#allocation3 + $0x40] sm:$0xff] %vm405, %v941
        %946 = vst.msk [vmem:[#allocation3 + $0x58] sm:$0xff] %vm405, %v942
        %v947 = vld [vmem:[#allocation3] sm:$0xff]
        %v948 = vld [vmem:[#allocation3 + $0x8] sm:$0xff]
        %v949 = vld [vmem:[#allocation3 + $0x10] sm:$0xff]
        %v950 = vld [vmem:[#allocation3 + $0x18] sm:$0xff]
        %v951 = vld [vmem:[#allocation3 + $0x20] sm:$0xff]
        %v952 = vld [vmem:[#allocation3 + $0x28] sm:$0xff]
        %v953 = vld [vmem:[#allocation3 + $0x30] sm:$0xff]
        %v954 = vld [vmem:[#allocation3 + $0x38] sm:$0xff]
        %v955 = vld [vmem:[#allocation3 + $0x40] sm:$0xff]
        %v956 = vld [vmem:[#allocation3 + $0x48] sm:$0xff]
        %v957 = vld [vmem:[#allocation3 + $0x50] sm:$0xff]
        %v958 = vld [vmem:[#allocation3 + $0x58] sm:$0xff]
        %v959 = vld [vmem:[#allocation13] sm:$0xff]
        %v960 = vld [vmem:[#allocation13 + $0x8] sm:$0xff]
        %v961 = vld [vmem:[#allocation13 + $0x10] sm:$0xff]
        %v962 = vld [vmem:[#allocation13 + $0x18] sm:$0xff]
        %v963 = vld [vmem:[#allocation13 + $0x20] sm:$0xff]
        %v964 = vld [vmem:[#allocation13 + $0x28] sm:$0xff]
        %v965 = vld [vmem:[#allocation13 + $0x30] sm:$0xff]
        %v966 = vld [vmem:[#allocation13 + $0x38] sm:$0xff]
        %v967 = vld [vmem:[#allocation13 + $0x40] sm:$0xff]
        %v968 = vld [vmem:[#allocation13 + $0x48] sm:$0xff]
        %v969 = vld [vmem:[#allocation13 + $0x50] sm:$0xff]
        %v970 = vld [vmem:[#allocation13 + $0x58] sm:$0xff]
        %v971 = vld [vmem:[#allocation13 + $0x60] sm:$0xff]
        %v972 = vld [vmem:[#allocation13 + $0x68] sm:$0xff]
        %v973 = vld [vmem:[#allocation13 + $0x70] sm:$0xff]
        %v974 = vld [vmem:[#allocation13 + $0x78] sm:$0xff]
        %v975 = vld [vmem:[#allocation13 + $0x80] sm:$0xff]
        %v976 = vld [vmem:[#allocation13 + $0x88] sm:$0xff]
        %v977 = vld [vmem:[#allocation13 + $0x90] sm:$0xff]
        %v978 = vld [vmem:[#allocation13 + $0x98] sm:$0xff]
        %v979 = vld [vmem:[#allocation13 + $0xa0] sm:$0xff]
        %v980 = vld [vmem:[#allocation13 + $0xa8] sm:$0xff]
        %v981 = vld [vmem:[#allocation13 + $0xb0] sm:$0xff]
        %v982 = vld [vmem:[#allocation13 + $0xb8] sm:$0xff]
        %v983 = vld [vmem:[#allocation13 + $0xc0] sm:$0xff]
        %v984 = vld [vmem:[#allocation13 + $0xc8] sm:$0xff]
        %v985 = vld [vmem:[#allocation13 + $0xd0] sm:$0xff]
        %v986 = vld [vmem:[#allocation13 + $0xd8] sm:$0xff]
        %v987 = vld [vmem:[#allocation13 + $0xe0] sm:$0xff]
        %v988 = vld [vmem:[#allocation13 + $0xe8] sm:$0xff]
        %v989 = vld [vmem:[#allocation13 + $0xf0] sm:$0xff]
        %v990 = vld [vmem:[#allocation13 + $0xf8] sm:$0xff]
        %v991 = vld [vmem:[#allocation13 + $0x100] sm:$0xff]
        %v992 = vld [vmem:[#allocation13 + $0x108] sm:$0xff]
        %v993 = vld [vmem:[#allocation13 + $0x110] sm:$0xff]
        %v994 = vld [vmem:[#allocation13 + $0x118] sm:$0xff]
        %v995 = vld [vmem:[%s6] sm:$0x1]
        %v997 = vlaneseq
        %v998 = vshrl.u32 %v997, 7
        %v999 = vsub.s32 0, %v998
        %v1000 = vrot.slane %v995, %v999
        %v1003 = vsel %vm405, %v949, 0
        %v1006 = vsel %vm405, %v952, 0
        %v1009 = vsel %vm405, %v955, 0
        %v1012 = vsel %vm405, %v958, 0
        %1014 = vmatprep.subr.mxu0 0.0
        %1015 = vmatpush1.msra.mxu0 %v974
        %1016 = vmatprep.subr.mxu0 0.0
        %1017 = vmatpush1.msra.mxu0 %v973
        %1018 = vmatprep.subr.mxu0 0.0
        %1019 = vmatpush1.msra.mxu0 %v972
        %1020 = vmatprep.subr.mxu0 0.0
        %1021 = vmatpush1.msra.mxu0 %v971
        %1022 = vmatprep.subr.mxu0 0.0
        %1023 = vmatpush1.msra.mxu0 %v970
        %1024 = vmatprep.subr.mxu0 0.0
        %1025 = vmatpush1.msra.mxu0 %v969
        %1026 = vmatprep.subr.mxu0 0.0
        %1027 = vmatpush1.msra.mxu0 %v968
        %1028 = vmatprep.subr.mxu0 0.0
        %1029 = vmatpush1.msra.mxu0 %v967
        %1030 = vmatprep.subr.mxu0 0.0
        %1031 = vmatpush1.msra.mxu0 %v966
        %1032 = vmatprep.subr.mxu0 0.0
        %1033 = vmatpush1.msra.mxu0 %v965
        %1034 = vmatprep.subr.mxu0 0.0
        %1035 = vmatpush1.msra.mxu0 %v964
        %1036 = vmatprep.subr.mxu0 0.0
        %1037 = vmatpush1.msra.mxu0 %v963
        %1038 = vmatprep.subr.mxu0 0.0
        %1039 = vmatpush1.msra.mxu0 %v962
        %1040 = vmatprep.subr.mxu0 0.0
        %1041 = vmatpush1.msra.mxu0 %v961
        %1042 = vmatprep.subr.mxu0 0.0
        %1043 = vmatpush1.msra.mxu0 %v960
        %1044 = vmatprep.subr.mxu0 0.0
        %1045 = vmatpush1.msra.mxu0 %v959
        %1046 = vmatprep.subr.mxu0 0.0
        %1047 = vmatpush2.msra.mxu0 %v990
        %1048 = vmatprep.subr.mxu0 0.0
        %1049 = vmatpush2.msra.mxu0 %v989
        %1050 = vmatprep.subr.mxu0 0.0
        %1051 = vmatpush2.msra.mxu0 %v988
        %1052 = vmatprep.subr.mxu0 0.0
        %1053 = vmatpush2.msra.mxu0 %v987
        %1054 = vmatprep.subr.mxu0 0.0
        %1055 = vmatpush2.msra.mxu0 %v986
        %1056 = vmatprep.subr.mxu0 0.0
        %1057 = vmatpush2.msra.mxu0 %v985
        %1058 = vmatprep.subr.mxu0 0.0
        %1059 = vmatpush2.msra.mxu0 %v984
        %1060 = vmatprep.subr.mxu0 0.0
        %1061 = vmatpush2.msra.mxu0 %v983
        %1062 = vmatprep.subr.mxu0 0.0
        %1063 = vmatpush2.msra.mxu0 %v982
        %1064 = vmatprep.subr.mxu0 0.0
        %1065 = vmatpush2.msra.mxu0 %v981
        %1066 = vmatprep.subr.mxu0 0.0
        %1067 = vmatpush2.msra.mxu0 %v980
        %1068 = vmatprep.subr.mxu0 0.0
        %1069 = vmatpush2.msra.mxu0 %v979
        %1070 = vmatprep.subr.mxu0 0.0
        %1071 = vmatpush2.msra.mxu0 %v978
        %1072 = vmatprep.subr.mxu0 0.0
        %1073 = vmatpush2.msra.mxu0 %v977
        %1074 = vmatprep.subr.mxu0 0.0
        %1075 = vmatpush2.msra.mxu0 %v976
        %1076 = vmatprep.subr.mxu0 0.0
        %1077 = vmatpush2.msra.mxu0 %v975
        %1078 = vmatprep.mubr.f32.mxu0 %v948
        %1079 = vmatmul.mubr.f32.gmra.mxu0 %v947
        %v1080 = vpop.f32.mrf.mxu0
        %v1081 = vadd.f32 %v1000, %v1080
        %v1082 = vpop.f32.mrf.mxu0
        %1083 = vmatprep.mubr.f32.mxu0 %v951
        %1084 = vmatmul.mubr.f32.gmra.mxu0 %v950
        %v1085 = vpop.f32.mrf.mxu0
        %v1086 = vadd.f32 %v1000, %v1085
        %v1087 = vpop.f32.mrf.mxu0
        %1088 = vmatprep.mubr.f32.mxu0 %v954
        %1089 = vmatmul.mubr.f32.gmra.mxu0 %v953
        %v1090 = vpop.f32.mrf.mxu0
        %v1091 = vadd.f32 %v1000, %v1090
        %v1092 = vpop.f32.mrf.mxu0
        %1093 = vmatprep.mubr.f32.mxu0 %v957
        %1094 = vmatmul.mubr.f32.gmra.mxu0 %v956
        %v1095 = vpop.f32.mrf.mxu0
        %v1096 = vadd.f32 %v1000, %v1095
        %v1097 = vpop.f32.mrf.mxu0
        %1098 = vdwg.mxu0
        %1099 = vmatprep.subr.mxu0 0.0
        %1100 = vmatpush1.msra.mxu0 0.0
        %1101 = vmatprep.subr.mxu0 0.0
        %1102 = vmatpush1.msra.mxu0 0.0
        %1103 = vmatprep.subr.mxu0 0.0
        %1104 = vmatpush1.msra.mxu0 0.0
        %1105 = vmatprep.subr.mxu0 0.0
        %1106 = vmatpush1.msra.mxu0 0.0
        %1107 = vmatprep.subr.mxu0 0.0
        %1108 = vmatpush1.msra.mxu0 0.0
        %1109 = vmatprep.subr.mxu0 0.0
        %1110 = vmatpush1.msra.mxu0 0.0
        %1111 = vmatprep.subr.mxu0 0.0
        %1112 = vmatpush1.msra.mxu0 0.0
        %1113 = vmatprep.subr.mxu0 0.0
        %1114 = vmatpush1.msra.mxu0 0.0
        %1115 = vmatprep.subr.mxu0 0.0
        %1116 = vmatpush1.msra.mxu0 0.0
        %1117 = vmatprep.subr.mxu0 0.0
        %1118 = vmatpush1.msra.mxu0 0.0
        %1119 = vmatprep.subr.mxu0 0.0
        %1120 = vmatpush1.msra.mxu0 0.0
        %1121 = vmatprep.subr.mxu0 0.0
        %1122 = vmatpush1.msra.mxu0 0.0
        %1123 = vmatprep.subr.mxu0 0.0
        %1124 = vmatpush1.msra.mxu0 %v994
        %1125 = vmatprep.subr.mxu0 0.0
        %1126 = vmatpush1.msra.mxu0 %v993
        %1127 = vmatprep.subr.mxu0 0.0
        %1128 = vmatpush1.msra.mxu0 %v992
        %1129 = vmatprep.subr.mxu0 0.0
        %1130 = vmatpush1.msra.mxu0 %v991
        %1131 = vmatprep.subr.mxu0 0.0
        %1132 = vmatpush2.msra.mxu0 0.0
        %1133 = vmatprep.subr.mxu0 0.0
        %1134 = vmatpush2.msra.mxu0 0.0
        %1135 = vmatprep.subr.mxu0 0.0
        %1136 = vmatpush2.msra.mxu0 0.0
        %1137 = vmatprep.subr.mxu0 0.0
        %1138 = vmatpush2.msra.mxu0 0.0
        %1139 = vmatprep.subr.mxu0 0.0
        %1140 = vmatpush2.msra.mxu0 0.0
        %1141 = vmatprep.subr.mxu0 0.0
        %1142 = vmatpush2.msra.mxu0 0.0
        %1143 = vmatprep.subr.mxu0 0.0
        %1144 = vmatpush2.msra.mxu0 0.0
        %1145 = vmatprep.subr.mxu0 0.0
        %1146 = vmatpush2.msra.mxu0 0.0
        %1147 = vmatprep.subr.mxu0 0.0
        %1148 = vmatpush2.msra.mxu0 0.0
        %1149 = vmatprep.subr.mxu0 0.0
        %1150 = vmatpush2.msra.mxu0 0.0
        %1151 = vmatprep.subr.mxu0 0.0
        %1152 = vmatpush2.msra.mxu0 0.0
        %1153 = vmatprep.subr.mxu0 0.0
        %1154 = vmatpush2.msra.mxu0 0.0
        %1155 = vmatprep.subr.mxu0 0.0
        %1156 = vmatpush2.msra.mxu0 0.0
        %1157 = vmatprep.subr.mxu0 0.0
        %1158 = vmatpush2.msra.mxu0 0.0
        %1159 = vmatprep.subr.mxu0 0.0
        %1160 = vmatpush2.msra.mxu0 0.0
        %1161 = vmatprep.subr.mxu0 0.0
        %1162 = vmatpush2.msra.mxu0 0.0
        %1163 = vmatprep.mubr.f32.mxu0 0.0
        %1164 = vmatmul.mubr.f32.gmra.mxu0 %v1003
        %v1165 = vpop.f32.mrf.mxu0
        %v1166 = vadd.f32 %v1081, %v1165
        %v1167 = vpop.f32.mrf.mxu0
        %1168 = vmatprep.mubr.f32.mxu0 0.0
        %1169 = vmatmul.mubr.f32.gmra.mxu0 %v1006
        %v1170 = vpop.f32.mrf.mxu0
        %v1171 = vadd.f32 %v1086, %v1170
        %v1172 = vpop.f32.mrf.mxu0
        %1173 = vmatprep.mubr.f32.mxu0 0.0
        %1174 = vmatmul.mubr.f32.gmra.mxu0 %v1009
        %v1175 = vpop.f32.mrf.mxu0
        %v1176 = vadd.f32 %v1091, %v1175
        %v1177 = vpop.f32.mrf.mxu0
        %1178 = vmatprep.mubr.f32.mxu0 0.0
        %1179 = vmatmul.mubr.f32.gmra.mxu0 %v1012
        %v1180 = vpop.f32.mrf.mxu0
        %v1181 = vadd.f32 %v1096, %v1180
        %v1182 = vpop.f32.mrf.mxu0
        %1183 = vdwg.mxu0
        %v1184 = vmax.f32 %v1166, 0.0
        %v1185 = vmax.f32 %v1171, 0.0
        %v1186 = vmax.f32 %v1176, 0.0
        %v1187 = vmax.f32 %v1181, 0.0
        %1188 = vst.msk [vmem:[#allocation4] sm:$0xff] %vm405, 0.0
        %1189 = vst.msk [vmem:[#allocation4 + $0x8] sm:$0xff] %vm405, 0.0
        %1190 = vst.msk [vmem:[#allocation4 + $0x10] sm:$0xff] %vm405, 0.0
        %1191 = vst.msk [vmem:[#allocation4 + $0x18] sm:$0xff] %vm405, 0.0
        %1192 = vst.msk [vmem:[#allocation4 + $0x20] sm:$0xff] %vm405, 0.0
        %1193 = vst.msk [vmem:[#allocation4 + $0x28] sm:$0xff] %vm405, 0.0
        %1194 = vst.msk [vmem:[#allocation4 + $0x30] sm:$0xff] %vm405, 0.0
        %1195 = vst.msk [vmem:[#allocation4 + $0x38] sm:$0xff] %vm405, 0.0
        %1196 = vst.msk [vmem:[#allocation4 + $0x40] sm:$0xff] %vm405, 0.0
        %1197 = vst.msk [vmem:[#allocation4 + $0x48] sm:$0xff] %vm405, 0.0
        %1198 = vst.msk [vmem:[#allocation4 + $0x50] sm:$0xff] %vm405, 0.0
        %1199 = vst.msk [vmem:[#allocation4 + $0x58] sm:$0xff] %vm405, 0.0
        %1200 = vst.msk [vmem:[#allocation4 + $0x60] sm:$0xff] %vm405, 0.0
        %1201 = vst.msk [vmem:[#allocation4 + $0x68] sm:$0xff] %vm405, 0.0
        %1202 = vst.msk [vmem:[#allocation4 + $0x70] sm:$0xff] %vm405, 0.0
        %1203 = vst.msk [vmem:[#allocation4 + $0x78] sm:$0xff] %vm405, 0.0
        %1204 = vst.msk [vmem:[#allocation4 + $0x80] sm:$0xff] %vm405, 0.0
        %1205 = vst.msk [vmem:[#allocation4 + $0x88] sm:$0xff] %vm405, 0.0
        %1206 = vst.msk [vmem:[#allocation4 + $0x90] sm:$0xff] %vm405, 0.0
        %1207 = vst.msk [vmem:[#allocation4 + $0x98] sm:$0xff] %vm405, 0.0
        %1208 = vst.msk [vmem:[#allocation4 + $0xa0] sm:$0xff] %vm405, 0.0
        %1209 = vst.msk [vmem:[#allocation4 + $0x11] sm:$0x1] %vm719, %v1184
        %1211 = vrot.lane.b32.xlu0 %v1184, 96
        %v1212 = vpop.permute.xlu0 %1211
        %1214 = vst.msk [vmem:[#allocation4 + $0x12] sm:$0x1] %vm719, %v1212
        %1215 = vrot.lane.b32.xlu0 %v1184, 64
        %v1216 = vpop.permute.xlu0 %1215
        %1218 = vst.msk [vmem:[#allocation4 + $0x21] sm:$0x1] %vm719, %v1216
        %1219 = vrot.lane.b32.xlu0 %v1184, 32
        %v1220 = vpop.permute.xlu0 %1219
        %1222 = vst.msk [vmem:[#allocation4 + $0x22] sm:$0x1] %vm719, %v1220
        %vm1223 = vcmask 254977
        %1224 = vst.msk [vmem:[#allocation4 + $0x12] sm:$0x2] %vm1223, %v1184
        %1225 = vst.msk [vmem:[#allocation4 + $0x13] sm:$0x2] %vm1223, %v1212
        %1226 = vst.msk [vmem:[#allocation4 + $0x22] sm:$0x2] %vm1223, %v1216
        %1227 = vst.msk [vmem:[#allocation4 + $0x23] sm:$0x2] %vm1223, %v1220
        %vm1228 = vcmask 256002
        %1229 = vst.msk [vmem:[#allocation4 + $0x13] sm:$0x4] %vm1228, %v1184
        %1230 = vst.msk [vmem:[#allocation4 + $0x14] sm:$0x4] %vm1228, %v1212
        %1231 = vst.msk [vmem:[#allocation4 + $0x23] sm:$0x4] %vm1228, %v1216
        %1232 = vst.msk [vmem:[#allocation4 + $0x24] sm:$0x4] %vm1228, %v1220
        %vm1233 = vcmask 257027
        %1234 = vst.msk [vmem:[#allocation4 + $0x14] sm:$0x8] %vm1233, %v1184
        %1235 = vst.msk [vmem:[#allocation4 + $0x15] sm:$0x8] %vm1233, %v1212
        %1236 = vst.msk [vmem:[#allocation4 + $0x24] sm:$0x8] %vm1233, %v1216
        %1237 = vst.msk [vmem:[#allocation4 + $0x25] sm:$0x8] %vm1233, %v1220
        %1238 = vst.msk [vmem:[#allocation4 + $0x31] sm:$0x1] %vm719, %v1185
        %1240 = vrot.lane.b32.xlu0 %v1185, 96
        %v1241 = vpop.permute.xlu0 %1240
        %1243 = vst.msk [vmem:[#allocation4 + $0x32] sm:$0x1] %vm719, %v1241
        %1244 = vrot.lane.b32.xlu0 %v1185, 64
        %v1245 = vpop.permute.xlu0 %1244
        %1247 = vst.msk [vmem:[#allocation4 + $0x41] sm:$0x1] %vm719, %v1245
        %1248 = vrot.lane.b32.xlu0 %v1185, 32
        %v1249 = vpop.permute.xlu0 %1248
        %1251 = vst.msk [vmem:[#allocation4 + $0x42] sm:$0x1] %vm719, %v1249
        %1252 = vst.msk [vmem:[#allocation4 + $0x32] sm:$0x2] %vm1223, %v1185
        %1253 = vst.msk [vmem:[#allocation4 + $0x33] sm:$0x2] %vm1223, %v1241
        %1254 = vst.msk [vmem:[#allocation4 + $0x42] sm:$0x2] %vm1223, %v1245
        %1255 = vst.msk [vmem:[#allocation4 + $0x43] sm:$0x2] %vm1223, %v1249
        %1256 = vst.msk [vmem:[#allocation4 + $0x33] sm:$0x4] %vm1228, %v1185
        %1257 = vst.msk [vmem:[#allocation4 + $0x34] sm:$0x4] %vm1228, %v1241
        %1258 = vst.msk [vmem:[#allocation4 + $0x43] sm:$0x4] %vm1228, %v1245
        %1259 = vst.msk [vmem:[#allocation4 + $0x44] sm:$0x4] %vm1228, %v1249
        %1260 = vst.msk [vmem:[#allocation4 + $0x34] sm:$0x8] %vm1233, %v1185
        %1261 = vst.msk [vmem:[#allocation4 + $0x35] sm:$0x8] %vm1233, %v1241
        %1262 = vst.msk [vmem:[#allocation4 + $0x44] sm:$0x8] %vm1233, %v1245
        %1263 = vst.msk [vmem:[#allocation4 + $0x45] sm:$0x8] %vm1233, %v1249
        %1264 = vst.msk [vmem:[#allocation4 + $0x51] sm:$0x1] %vm719, %v1186
        %1266 = vrot.lane.b32.xlu0 %v1186, 96
        %v1267 = vpop.permute.xlu0 %1266
        %1269 = vst.msk [vmem:[#allocation4 + $0x52] sm:$0x1] %vm719, %v1267
        %1270 = vrot.lane.b32.xlu0 %v1186, 64
        %v1271 = vpop.permute.xlu0 %1270
        %1273 = vst.msk [vmem:[#allocation4 + $0x61] sm:$0x1] %vm719, %v1271
        %1274 = vrot.lane.b32.xlu0 %v1186, 32
        %v1275 = vpop.permute.xlu0 %1274
        %1277 = vst.msk [vmem:[#allocation4 + $0x62] sm:$0x1] %vm719, %v1275
        %1278 = vst.msk [vmem:[#allocation4 + $0x52] sm:$0x2] %vm1223, %v1186
        %1279 = vst.msk [vmem:[#allocation4 + $0x53] sm:$0x2] %vm1223, %v1267
        %1280 = vst.msk [vmem:[#allocation4 + $0x62] sm:$0x2] %vm1223, %v1271
        %1281 = vst.msk [vmem:[#allocation4 + $0x63] sm:$0x2] %vm1223, %v1275
        %1282 = vst.msk [vmem:[#allocation4 + $0x53] sm:$0x4] %vm1228, %v1186
        %1283 = vst.msk [vmem:[#allocation4 + $0x54] sm:$0x4] %vm1228, %v1267
        %1284 = vst.msk [vmem:[#allocation4 + $0x63] sm:$0x4] %vm1228, %v1271
        %1285 = vst.msk [vmem:[#allocation4 + $0x64] sm:$0x4] %vm1228, %v1275
        %1286 = vst.msk [vmem:[#allocation4 + $0x54] sm:$0x8] %vm1233, %v1186
        %1287 = vst.msk [vmem:[#allocation4 + $0x55] sm:$0x8] %vm1233, %v1267
        %1288 = vst.msk [vmem:[#allocation4 + $0x64] sm:$0x8] %vm1233, %v1271
        %1289 = vst.msk [vmem:[#allocation4 + $0x65] sm:$0x8] %vm1233, %v1275
        %1290 = vst.msk [vmem:[#allocation4 + $0x71] sm:$0x1] %vm719, %v1187
        %1292 = vrot.lane.b32.xlu0 %v1187, 96
        %v1293 = vpop.permute.xlu0 %1292
        %1295 = vst.msk [vmem:[#allocation4 + $0x72] sm:$0x1] %vm719, %v1293
        %1296 = vrot.lane.b32.xlu0 %v1187, 64
        %v1297 = vpop.permute.xlu0 %1296
        %1299 = vst.msk [vmem:[#allocation4 + $0x81] sm:$0x1] %vm719, %v1297
        %1300 = vrot.lane.b32.xlu0 %v1187, 32
        %v1301 = vpop.permute.xlu0 %1300
        %1303 = vst.msk [vmem:[#allocation4 + $0x82] sm:$0x1] %vm719, %v1301
        %1304 = vst.msk [vmem:[#allocation4 + $0x72] sm:$0x2] %vm1223, %v1187
        %1305 = vst.msk [vmem:[#allocation4 + $0x73] sm:$0x2] %vm1223, %v1293
        %1306 = vst.msk [vmem:[#allocation4 + $0x82] sm:$0x2] %vm1223, %v1297
        %1307 = vst.msk [vmem:[#allocation4 + $0x83] sm:$0x2] %vm1223, %v1301
        %1308 = vst.msk [vmem:[#allocation4 + $0x73] sm:$0x4] %vm1228, %v1187
        %1309 = vst.msk [vmem:[#allocation4 + $0x74] sm:$0x4] %vm1228, %v1293
        %1310 = vst.msk [vmem:[#allocation4 + $0x83] sm:$0x4] %vm1228, %v1297
        %1311 = vst.msk [vmem:[#allocation4 + $0x84] sm:$0x4] %vm1228, %v1301
        %1312 = vst.msk [vmem:[#allocation4 + $0x74] sm:$0x8] %vm1233, %v1187
        %1313 = vst.msk [vmem:[#allocation4 + $0x75] sm:$0x8] %vm1233, %v1293
        %1314 = vst.msk [vmem:[#allocation4 + $0x84] sm:$0x8] %vm1233, %v1297
        %1315 = vst.msk [vmem:[#allocation4 + $0x85] sm:$0x8] %vm1233, %v1301
        %v1316 = vld [vmem:[#allocation4] sm:$0xff]
        %v1317 = vld [vmem:[#allocation4 + $0x8] sm:$0xff]
        %v1318 = vld [vmem:[#allocation4 + $0x10] sm:$0xff]
        %v1319 = vld [vmem:[#allocation4 + $0x18] sm:$0xff]
        %v1320 = vld [vmem:[#allocation4 + $0x20] sm:$0xff]
        %v1321 = vld [vmem:[#allocation4 + $0x28] sm:$0xff]
        %v1322 = vld [vmem:[#allocation4 + $0x30] sm:$0xff]
        %v1323 = vld [vmem:[#allocation4 + $0x38] sm:$0xff]
        %v1324 = vld [vmem:[#allocation4 + $0x40] sm:$0xff]
        %v1325 = vld [vmem:[#allocation4 + $0x48] sm:$0xff]
        %v1326 = vld [vmem:[#allocation4 + $0x50] sm:$0xff]
        %v1327 = vld [vmem:[#allocation4 + $0x58] sm:$0xff]
        %v1328 = vld [vmem:[#allocation4 + $0x60] sm:$0xff]
        %v1329 = vld [vmem:[#allocation4 + $0x68] sm:$0xff]
        %v1330 = vld [vmem:[#allocation4 + $0x70] sm:$0xff]
        %v1331 = vld [vmem:[#allocation4 + $0x78] sm:$0xff]
        %1332 = vst.msk [vmem:[#allocation5] sm:$0xff] %vm405, %v1316
        %1333 = vst.msk [vmem:[#allocation5 + $0x18] sm:$0xff] %vm405, %v1317
        %1334 = vst.msk [vmem:[#allocation5 + $0x30] sm:$0xff] %vm405, %v1318
        %1335 = vst.msk [vmem:[#allocation5 + $0x48] sm:$0xff] %vm405, %v1319
        %1336 = vst.msk [vmem:[#allocation5 + $0x60] sm:$0xff] %vm405, %v1320
        %1337 = vst.msk [vmem:[#allocation5 + $0x78] sm:$0xff] %vm405, %v1321
        %1338 = vst.msk [vmem:[#allocation5 + $0x90] sm:$0xff] %vm405, %v1322
        %1339 = vst.msk [vmem:[#allocation5 + $0xa8] sm:$0xff] %vm405, %v1323
        %1340 = vst.msk [vmem:[#allocation5 + $0xc0] sm:$0xff] %vm405, %v1324
        %1341 = vst.msk [vmem:[#allocation5 + $0xd8] sm:$0xff] %vm405, %v1325
        %1342 = vst.msk [vmem:[#allocation5 + $0xf0] sm:$0xff] %vm405, %v1326
        %1343 = vst.msk [vmem:[#allocation5 + $0x108] sm:$0xff] %vm405, %v1327
        %1344 = vst.msk [vmem:[#allocation5 + $0x120] sm:$0xff] %vm405, %v1328
        %1345 = vst.msk [vmem:[#allocation5 + $0x138] sm:$0xff] %vm405, %v1329
        %1346 = vst.msk [vmem:[#allocation5 + $0x150] sm:$0xff] %vm405, %v1330
        %1347 = vst.msk [vmem:[#allocation5 + $0x168] sm:$0xff] %vm405, %v1331
        %v1348 = vld [vmem:[#allocation4 + $0x1] sm:$0xff]
        %v1349 = vld [vmem:[#allocation4 + $0x9] sm:$0xff]
        %v1350 = vld [vmem:[#allocation4 + $0x11] sm:$0xff]
        %v1351 = vld [vmem:[#allocation4 + $0x19] sm:$0xff]
        %v1352 = vld [vmem:[#allocation4 + $0x21] sm:$0xff]
        %v1353 = vld [vmem:[#allocation4 + $0x29] sm:$0xff]
        %v1354 = vld [vmem:[#allocation4 + $0x31] sm:$0xff]
        %v1355 = vld [vmem:[#allocation4 + $0x39] sm:$0xff]
        %v1356 = vld [vmem:[#allocation4 + $0x41] sm:$0xff]
        %v1357 = vld [vmem:[#allocation4 + $0x49] sm:$0xff]
        %v1358 = vld [vmem:[#allocation4 + $0x51] sm:$0xff]
        %v1359 = vld [vmem:[#allocation4 + $0x59] sm:$0xff]
        %v1360 = vld [vmem:[#allocation4 + $0x61] sm:$0xff]
        %v1361 = vld [vmem:[#allocation4 + $0x69] sm:$0xff]
        %v1362 = vld [vmem:[#allocation4 + $0x71] sm:$0xff]
        %v1363 = vld [vmem:[#allocation4 + $0x79] sm:$0xff]
        %1380 = vrot.lane.b32.xlu0 %v1348, 32
        %v1381 = vpop.permute.xlu0 %1380
        %1382 = vrot.lane.b32.xlu0 %v1349, 32
        %v1383 = vpop.permute.xlu0 %1382
        %1384 = vrot.lane.b32.xlu0 %v1350, 32
        %v1385 = vpop.permute.xlu0 %1384
        %1386 = vrot.lane.b32.xlu0 %v1351, 32
        %v1387 = vpop.permute.xlu0 %1386
        %1388 = vrot.lane.b32.xlu0 %v1352, 32
        %v1389 = vpop.permute.xlu0 %1388
        %1390 = vrot.lane.b32.xlu0 %v1353, 32
        %v1391 = vpop.permute.xlu0 %1390
        %1392 = vrot.lane.b32.xlu0 %v1354, 32
        %v1393 = vpop.permute.xlu0 %1392
        %1394 = vrot.lane.b32.xlu0 %v1355, 32
        %v1395 = vpop.permute.xlu0 %1394
        %1396 = vrot.lane.b32.xlu0 %v1356, 32
        %v1397 = vpop.permute.xlu0 %1396
        %1398 = vrot.lane.b32.xlu0 %v1357, 32
        %v1399 = vpop.permute.xlu0 %1398
        %1400 = vrot.lane.b32.xlu0 %v1358, 32
        %v1401 = vpop.permute.xlu0 %1400
        %1402 = vrot.lane.b32.xlu0 %v1359, 32
        %v1403 = vpop.permute.xlu0 %1402
        %1404 = vrot.lane.b32.xlu0 %v1360, 32
        %v1405 = vpop.permute.xlu0 %1404
        %1406 = vrot.lane.b32.xlu0 %v1361, 32
        %v1407 = vpop.permute.xlu0 %1406
        %1408 = vrot.lane.b32.xlu0 %v1362, 32
        %v1409 = vpop.permute.xlu0 %1408
        %1410 = vrot.lane.b32.xlu0 %v1363, 32
        %v1411 = vpop.permute.xlu0 %1410
        %1428 = vst.msk [vmem:[#allocation5] sm:$0xff] %vm804, %v1381
        %1429 = vst.msk [vmem:[#allocation5 + $0x18] sm:$0xff] %vm804, %v1383
        %1430 = vst.msk [vmem:[#allocation5 + $0x30] sm:$0xff] %vm804, %v1385
        %1431 = vst.msk [vmem:[#allocation5 + $0x48] sm:$0xff] %vm804, %v1387
        %1432 = vst.msk [vmem:[#allocation5 + $0x60] sm:$0xff] %vm804, %v1389
        %1433 = vst.msk [vmem:[#allocation5 + $0x78] sm:$0xff] %vm804, %v1391
        %1434 = vst.msk [vmem:[#allocation5 + $0x90] sm:$0xff] %vm804, %v1393
        %1435 = vst.msk [vmem:[#allocation5 + $0xa8] sm:$0xff] %vm804, %v1395
        %1436 = vst.msk [vmem:[#allocation5 + $0xc0] sm:$0xff] %vm804, %v1397
        %1437 = vst.msk [vmem:[#allocation5 + $0xd8] sm:$0xff] %vm804, %v1399
        %1438 = vst.msk [vmem:[#allocation5 + $0xf0] sm:$0xff] %vm804, %v1401
        %1439 = vst.msk [vmem:[#allocation5 + $0x108] sm:$0xff] %vm804, %v1403
        %1440 = vst.msk [vmem:[#allocation5 + $0x120] sm:$0xff] %vm804, %v1405
        %1441 = vst.msk [vmem:[#allocation5 + $0x138] sm:$0xff] %vm804, %v1407
        %1442 = vst.msk [vmem:[#allocation5 + $0x150] sm:$0xff] %vm804, %v1409
        %1443 = vst.msk [vmem:[#allocation5 + $0x168] sm:$0xff] %vm804, %v1411
        %v1444 = vld [vmem:[#allocation4 + $0x2] sm:$0xff]
        %v1445 = vld [vmem:[#allocation4 + $0xa] sm:$0xff]
        %v1446 = vld [vmem:[#allocation4 + $0x12] sm:$0xff]
        %v1447 = vld [vmem:[#allocation4 + $0x1a] sm:$0xff]
        %v1448 = vld [vmem:[#allocation4 + $0x22] sm:$0xff]
        %v1449 = vld [vmem:[#allocation4 + $0x2a] sm:$0xff]
        %v1450 = vld [vmem:[#allocation4 + $0x32] sm:$0xff]
        %v1451 = vld [vmem:[#allocation4 + $0x3a] sm:$0xff]
        %v1452 = vld [vmem:[#allocation4 + $0x42] sm:$0xff]
        %v1453 = vld [vmem:[#allocation4 + $0x4a] sm:$0xff]
        %v1454 = vld [vmem:[#allocation4 + $0x52] sm:$0xff]
        %v1455 = vld [vmem:[#allocation4 + $0x5a] sm:$0xff]
        %v1456 = vld [vmem:[#allocation4 + $0x62] sm:$0xff]
        %v1457 = vld [vmem:[#allocation4 + $0x6a] sm:$0xff]
        %v1458 = vld [vmem:[#allocation4 + $0x72] sm:$0xff]
        %v1459 = vld [vmem:[#allocation4 + $0x7a] sm:$0xff]
        %1476 = vrot.lane.b32.xlu0 %v1444, 64
        %v1477 = vpop.permute.xlu0 %1476
        %1478 = vrot.lane.b32.xlu0 %v1445, 64
        %v1479 = vpop.permute.xlu0 %1478
        %1480 = vrot.lane.b32.xlu0 %v1446, 64
        %v1481 = vpop.permute.xlu0 %1480
        %1482 = vrot.lane.b32.xlu0 %v1447, 64
        %v1483 = vpop.permute.xlu0 %1482
        %1484 = vrot.lane.b32.xlu0 %v1448, 64
        %v1485 = vpop.permute.xlu0 %1484
        %1486 = vrot.lane.b32.xlu0 %v1449, 64
        %v1487 = vpop.permute.xlu0 %1486
        %1488 = vrot.lane.b32.xlu0 %v1450, 64
        %v1489 = vpop.permute.xlu0 %1488
        %1490 = vrot.lane.b32.xlu0 %v1451, 64
        %v1491 = vpop.permute.xlu0 %1490
        %1492 = vrot.lane.b32.xlu0 %v1452, 64
        %v1493 = vpop.permute.xlu0 %1492
        %1494 = vrot.lane.b32.xlu0 %v1453, 64
        %v1495 = vpop.permute.xlu0 %1494
        %1496 = vrot.lane.b32.xlu0 %v1454, 64
        %v1497 = vpop.permute.xlu0 %1496
        %1498 = vrot.lane.b32.xlu0 %v1455, 64
        %v1499 = vpop.permute.xlu0 %1498
        %1500 = vrot.lane.b32.xlu0 %v1456, 64
        %v1501 = vpop.permute.xlu0 %1500
        %1502 = vrot.lane.b32.xlu0 %v1457, 64
        %v1503 = vpop.permute.xlu0 %1502
        %1504 = vrot.lane.b32.xlu0 %v1458, 64
        %v1505 = vpop.permute.xlu0 %1504
        %1506 = vrot.lane.b32.xlu0 %v1459, 64
        %v1507 = vpop.permute.xlu0 %1506
        %1524 = vst.msk [vmem:[#allocation5] sm:$0xff] %vm829, %v1477
        %1525 = vst.msk [vmem:[#allocation5 + $0x18] sm:$0xff] %vm829, %v1479
        %1526 = vst.msk [vmem:[#allocation5 + $0x30] sm:$0xff] %vm829, %v1481
        %1527 = vst.msk [vmem:[#allocation5 + $0x48] sm:$0xff] %vm829, %v1483
        %1528 = vst.msk [vmem:[#allocation5 + $0x60] sm:$0xff] %vm829, %v1485
        %1529 = vst.msk [vmem:[#allocation5 + $0x78] sm:$0xff] %vm829, %v1487
        %1530 = vst.msk [vmem:[#allocation5 + $0x90] sm:$0xff] %vm829, %v1489
        %1531 = vst.msk [vmem:[#allocation5 + $0xa8] sm:$0xff] %vm829, %v1491
        %1532 = vst.msk [vmem:[#allocation5 + $0xc0] sm:$0xff] %vm829, %v1493
        %1533 = vst.msk [vmem:[#allocation5 + $0xd8] sm:$0xff] %vm829, %v1495
        %1534 = vst.msk [vmem:[#allocation5 + $0xf0] sm:$0xff] %vm829, %v1497
        %1535 = vst.msk [vmem:[#allocation5 + $0x108] sm:$0xff] %vm829, %v1499
        %1536 = vst.msk [vmem:[#allocation5 + $0x120] sm:$0xff] %vm829, %v1501
        %1537 = vst.msk [vmem:[#allocation5 + $0x138] sm:$0xff] %vm829, %v1503
        %1538 = vst.msk [vmem:[#allocation5 + $0x150] sm:$0xff] %vm829, %v1505
        %1539 = vst.msk [vmem:[#allocation5 + $0x168] sm:$0xff] %vm829, %v1507
        %v1540 = vld [vmem:[#allocation4 + $0x10] sm:$0xff]
        %v1541 = vld [vmem:[#allocation4 + $0x18] sm:$0xff]
        %v1542 = vld [vmem:[#allocation4 + $0x20] sm:$0xff]
        %v1543 = vld [vmem:[#allocation4 + $0x28] sm:$0xff]
        %v1544 = vld [vmem:[#allocation4 + $0x30] sm:$0xff]
        %v1545 = vld [vmem:[#allocation4 + $0x38] sm:$0xff]
        %v1546 = vld [vmem:[#allocation4 + $0x40] sm:$0xff]
        %v1547 = vld [vmem:[#allocation4 + $0x48] sm:$0xff]
        %v1548 = vld [vmem:[#allocation4 + $0x50] sm:$0xff]
        %v1549 = vld [vmem:[#allocation4 + $0x58] sm:$0xff]
        %v1550 = vld [vmem:[#allocation4 + $0x60] sm:$0xff]
        %v1551 = vld [vmem:[#allocation4 + $0x68] sm:$0xff]
        %v1552 = vld [vmem:[#allocation4 + $0x70] sm:$0xff]
        %v1553 = vld [vmem:[#allocation4 + $0x78] sm:$0xff]
        %v1554 = vld [vmem:[#allocation4 + $0x80] sm:$0xff]
        %v1555 = vld [vmem:[#allocation4 + $0x88] sm:$0xff]
        %1572 = vrot.lane.b32.xlu0 %v1540, 96
        %v1573 = vpop.permute.xlu0 %1572
        %1574 = vrot.lane.b32.xlu0 %v1541, 96
        %v1575 = vpop.permute.xlu0 %1574
        %1576 = vrot.lane.b32.xlu0 %v1542, 96
        %v1577 = vpop.permute.xlu0 %1576
        %1578 = vrot.lane.b32.xlu0 %v1543, 96
        %v1579 = vpop.permute.xlu0 %1578
        %1580 = vrot.lane.b32.xlu0 %v1544, 96
        %v1581 = vpop.permute.xlu0 %1580
        %1582 = vrot.lane.b32.xlu0 %v1545, 96
        %v1583 = vpop.permute.xlu0 %1582
        %1584 = vrot.lane.b32.xlu0 %v1546, 96
        %v1585 = vpop.permute.xlu0 %1584
        %1586 = vrot.lane.b32.xlu0 %v1547, 96
        %v1587 = vpop.permute.xlu0 %1586
        %1588 = vrot.lane.b32.xlu0 %v1548, 96
        %v1589 = vpop.permute.xlu0 %1588
        %1590 = vrot.lane.b32.xlu0 %v1549, 96
        %v1591 = vpop.permute.xlu0 %1590
        %1592 = vrot.lane.b32.xlu0 %v1550, 96
        %v1593 = vpop.permute.xlu0 %1592
        %1594 = vrot.lane.b32.xlu0 %v1551, 96
        %v1595 = vpop.permute.xlu0 %1594
        %1596 = vrot.lane.b32.xlu0 %v1552, 96
        %v1597 = vpop.permute.xlu0 %1596
        %1598 = vrot.lane.b32.xlu0 %v1553, 96
        %v1599 = vpop.permute.xlu0 %1598
        %1600 = vrot.lane.b32.xlu0 %v1554, 96
        %v1601 = vpop.permute.xlu0 %1600
        %1602 = vrot.lane.b32.xlu0 %v1555, 96
        %v1603 = vpop.permute.xlu0 %1602
        %1620 = vst.msk [vmem:[#allocation5] sm:$0xff] %vm854, %v1573
        %1621 = vst.msk [vmem:[#allocation5 + $0x18] sm:$0xff] %vm854, %v1575
        %1622 = vst.msk [vmem:[#allocation5 + $0x30] sm:$0xff] %vm854, %v1577
        %1623 = vst.msk [vmem:[#allocation5 + $0x48] sm:$0xff] %vm854, %v1579
        %1624 = vst.msk [vmem:[#allocation5 + $0x60] sm:$0xff] %vm854, %v1581
        %1625 = vst.msk [vmem:[#allocation5 + $0x78] sm:$0xff] %vm854, %v1583
        %1626 = vst.msk [vmem:[#allocation5 + $0x90] sm:$0xff] %vm854, %v1585
        %1627 = vst.msk [vmem:[#allocation5 + $0xa8] sm:$0xff] %vm854, %v1587
        %1628 = vst.msk [vmem:[#allocation5 + $0xc0] sm:$0xff] %vm854, %v1589
        %1629 = vst.msk [vmem:[#allocation5 + $0xd8] sm:$0xff] %vm854, %v1591
        %1630 = vst.msk [vmem:[#allocation5 + $0xf0] sm:$0xff] %vm854, %v1593
        %1631 = vst.msk [vmem:[#allocation5 + $0x108] sm:$0xff] %vm854, %v1595
        %1632 = vst.msk [vmem:[#allocation5 + $0x120] sm:$0xff] %vm854, %v1597
        %1633 = vst.msk [vmem:[#allocation5 + $0x138] sm:$0xff] %vm854, %v1599
        %1634 = vst.msk [vmem:[#allocation5 + $0x150] sm:$0xff] %vm854, %v1601
        %1635 = vst.msk [vmem:[#allocation5 + $0x168] sm:$0xff] %vm854, %v1603
        %v1636 = vld [vmem:[#allocation4 + $0x11] sm:$0xff]
        %v1637 = vld [vmem:[#allocation4 + $0x19] sm:$0xff]
        %v1638 = vld [vmem:[#allocation4 + $0x21] sm:$0xff]
        %v1639 = vld [vmem:[#allocation4 + $0x29] sm:$0xff]
        %v1640 = vld [vmem:[#allocation4 + $0x31] sm:$0xff]
        %v1641 = vld [vmem:[#allocation4 + $0x39] sm:$0xff]
        %v1642 = vld [vmem:[#allocation4 + $0x41] sm:$0xff]
        %v1643 = vld [vmem:[#allocation4 + $0x49] sm:$0xff]
        %v1644 = vld [vmem:[#allocation4 + $0x51] sm:$0xff]
        %v1645 = vld [vmem:[#allocation4 + $0x59] sm:$0xff]
        %v1646 = vld [vmem:[#allocation4 + $0x61] sm:$0xff]
        %v1647 = vld [vmem:[#allocation4 + $0x69] sm:$0xff]
        %v1648 = vld [vmem:[#allocation4 + $0x71] sm:$0xff]
        %v1649 = vld [vmem:[#allocation4 + $0x79] sm:$0xff]
        %v1650 = vld [vmem:[#allocation4 + $0x81] sm:$0xff]
        %v1651 = vld [vmem:[#allocation4 + $0x89] sm:$0xff]
        %1652 = vst.msk [vmem:[#allocation5 + $0x8] sm:$0xff] %vm405, %v1636
        %1653 = vst.msk [vmem:[#allocation5 + $0x20] sm:$0xff] %vm405, %v1637
        %1654 = vst.msk [vmem:[#allocation5 + $0x38] sm:$0xff] %vm405, %v1638
        %1655 = vst.msk [vmem:[#allocation5 + $0x50] sm:$0xff] %vm405, %v1639
        %1656 = vst.msk [vmem:[#allocation5 + $0x68] sm:$0xff] %vm405, %v1640
        %1657 = vst.msk [vmem:[#allocation5 + $0x80] sm:$0xff] %vm405, %v1641
        %1658 = vst.msk [vmem:[#allocation5 + $0x98] sm:$0xff] %vm405, %v1642
        %1659 = vst.msk [vmem:[#allocation5 + $0xb0] sm:$0xff] %vm405, %v1643
        %1660 = vst.msk [vmem:[#allocation5 + $0xc8] sm:$0xff] %vm405, %v1644
        %1661 = vst.msk [vmem:[#allocation5 + $0xe0] sm:$0xff] %vm405, %v1645
        %1662 = vst.msk [vmem:[#allocation5 + $0xf8] sm:$0xff] %vm405, %v1646
        %1663 = vst.msk [vmem:[#allocation5 + $0x110] sm:$0xff] %vm405, %v1647
        %1664 = vst.msk [vmem:[#allocation5 + $0x128] sm:$0xff] %vm405, %v1648
        %1665 = vst.msk [vmem:[#allocation5 + $0x140] sm:$0xff] %vm405, %v1649
        %1666 = vst.msk [vmem:[#allocation5 + $0x158] sm:$0xff] %vm405, %v1650
        %1667 = vst.msk [vmem:[#allocation5 + $0x170] sm:$0xff] %vm405, %v1651
        %v1668 = vld [vmem:[#allocation4 + $0x12] sm:$0xff]
        %v1669 = vld [vmem:[#allocation4 + $0x1a] sm:$0xff]
        %v1670 = vld [vmem:[#allocation4 + $0x22] sm:$0xff]
        %v1671 = vld [vmem:[#allocation4 + $0x2a] sm:$0xff]
        %v1672 = vld [vmem:[#allocation4 + $0x32] sm:$0xff]
        %v1673 = vld [vmem:[#allocation4 + $0x3a] sm:$0xff]
        %v1674 = vld [vmem:[#allocation4 + $0x42] sm:$0xff]
        %v1675 = vld [vmem:[#allocation4 + $0x4a] sm:$0xff]
        %v1676 = vld [vmem:[#allocation4 + $0x52] sm:$0xff]
        %v1677 = vld [vmem:[#allocation4 + $0x5a] sm:$0xff]
        %v1678 = vld [vmem:[#allocation4 + $0x62] sm:$0xff]
        %v1679 = vld [vmem:[#allocation4 + $0x6a] sm:$0xff]
        %v1680 = vld [vmem:[#allocation4 + $0x72] sm:$0xff]
        %v1681 = vld [vmem:[#allocation4 + $0x7a] sm:$0xff]
        %v1682 = vld [vmem:[#allocation4 + $0x82] sm:$0xff]
        %v1683 = vld [vmem:[#allocation4 + $0x8a] sm:$0xff]
        %1700 = vrot.lane.b32.xlu0 %v1668, 32
        %v1701 = vpop.permute.xlu0 %1700
        %1702 = vrot.lane.b32.xlu0 %v1669, 32
        %v1703 = vpop.permute.xlu0 %1702
        %1704 = vrot.lane.b32.xlu0 %v1670, 32
        %v1705 = vpop.permute.xlu0 %1704
        %1706 = vrot.lane.b32.xlu0 %v1671, 32
        %v1707 = vpop.permute.xlu0 %1706
        %1708 = vrot.lane.b32.xlu0 %v1672, 32
        %v1709 = vpop.permute.xlu0 %1708
        %1710 = vrot.lane.b32.xlu0 %v1673, 32
        %v1711 = vpop.permute.xlu0 %1710
        %1712 = vrot.lane.b32.xlu0 %v1674, 32
        %v1713 = vpop.permute.xlu0 %1712
        %1714 = vrot.lane.b32.xlu0 %v1675, 32
        %v1715 = vpop.permute.xlu0 %1714
        %1716 = vrot.lane.b32.xlu0 %v1676, 32
        %v1717 = vpop.permute.xlu0 %1716
        %1718 = vrot.lane.b32.xlu0 %v1677, 32
        %v1719 = vpop.permute.xlu0 %1718
        %1720 = vrot.lane.b32.xlu0 %v1678, 32
        %v1721 = vpop.permute.xlu0 %1720
        %1722 = vrot.lane.b32.xlu0 %v1679, 32
        %v1723 = vpop.permute.xlu0 %1722
        %1724 = vrot.lane.b32.xlu0 %v1680, 32
        %v1725 = vpop.permute.xlu0 %1724
        %1726 = vrot.lane.b32.xlu0 %v1681, 32
        %v1727 = vpop.permute.xlu0 %1726
        %1728 = vrot.lane.b32.xlu0 %v1682, 32
        %v1729 = vpop.permute.xlu0 %1728
        %1730 = vrot.lane.b32.xlu0 %v1683, 32
        %v1731 = vpop.permute.xlu0 %1730
        %1748 = vst.msk [vmem:[#allocation5 + $0x8] sm:$0xff] %vm804, %v1701
        %1749 = vst.msk [vmem:[#allocation5 + $0x20] sm:$0xff] %vm804, %v1703
        %1750 = vst.msk [vmem:[#allocation5 + $0x38] sm:$0xff] %vm804, %v1705
        %1751 = vst.msk [vmem:[#allocation5 + $0x50] sm:$0xff] %vm804, %v1707
        %1752 = vst.msk [vmem:[#allocation5 + $0x68] sm:$0xff] %vm804, %v1709
        %1753 = vst.msk [vmem:[#allocation5 + $0x80] sm:$0xff] %vm804, %v1711
        %1754 = vst.msk [vmem:[#allocation5 + $0x98] sm:$0xff] %vm804, %v1713
        %1755 = vst.msk [vmem:[#allocation5 + $0xb0] sm:$0xff] %vm804, %v1715
        %1756 = vst.msk [vmem:[#allocation5 + $0xc8] sm:$0xff] %vm804, %v1717
        %1757 = vst.msk [vmem:[#allocation5 + $0xe0] sm:$0xff] %vm804, %v1719
        %1758 = vst.msk [vmem:[#allocation5 + $0xf8] sm:$0xff] %vm804, %v1721
        %1759 = vst.msk [vmem:[#allocation5 + $0x110] sm:$0xff] %vm804, %v1723
        %1760 = vst.msk [vmem:[#allocation5 + $0x128] sm:$0xff] %vm804, %v1725
        %1761 = vst.msk [vmem:[#allocation5 + $0x140] sm:$0xff] %vm804, %v1727
        %1762 = vst.msk [vmem:[#allocation5 + $0x158] sm:$0xff] %vm804, %v1729
        %1763 = vst.msk [vmem:[#allocation5 + $0x170] sm:$0xff] %vm804, %v1731
        %v1764 = vld [vmem:[#allocation4 + $0x20] sm:$0xff]
        %v1765 = vld [vmem:[#allocation4 + $0x28] sm:$0xff]
        %v1766 = vld [vmem:[#allocation4 + $0x30] sm:$0xff]
        %v1767 = vld [vmem:[#allocation4 + $0x38] sm:$0xff]
        %v1768 = vld [vmem:[#allocation4 + $0x40] sm:$0xff]
        %v1769 = vld [vmem:[#allocation4 + $0x48] sm:$0xff]
        %v1770 = vld [vmem:[#allocation4 + $0x50] sm:$0xff]
        %v1771 = vld [vmem:[#allocation4 + $0x58] sm:$0xff]
        %v1772 = vld [vmem:[#allocation4 + $0x60] sm:$0xff]
        %v1773 = vld [vmem:[#allocation4 + $0x68] sm:$0xff]
        %v1774 = vld [vmem:[#allocation4 + $0x70] sm:$0xff]
        %v1775 = vld [vmem:[#allocation4 + $0x78] sm:$0xff]
        %v1776 = vld [vmem:[#allocation4 + $0x80] sm:$0xff]
        %v1777 = vld [vmem:[#allocation4 + $0x88] sm:$0xff]
        %v1778 = vld [vmem:[#allocation4 + $0x90] sm:$0xff]
        %v1779 = vld [vmem:[#allocation4 + $0x98] sm:$0xff]
        %1796 = vrot.lane.b32.xlu0 %v1764, 64
        %v1797 = vpop.permute.xlu0 %1796
        %1798 = vrot.lane.b32.xlu0 %v1765, 64
        %v1799 = vpop.permute.xlu0 %1798
        %1800 = vrot.lane.b32.xlu0 %v1766, 64
        %v1801 = vpop.permute.xlu0 %1800
        %1802 = vrot.lane.b32.xlu0 %v1767, 64
        %v1803 = vpop.permute.xlu0 %1802
        %1804 = vrot.lane.b32.xlu0 %v1768, 64
        %v1805 = vpop.permute.xlu0 %1804
        %1806 = vrot.lane.b32.xlu0 %v1769, 64
        %v1807 = vpop.permute.xlu0 %1806
        %1808 = vrot.lane.b32.xlu0 %v1770, 64
        %v1809 = vpop.permute.xlu0 %1808
        %1810 = vrot.lane.b32.xlu0 %v1771, 64
        %v1811 = vpop.permute.xlu0 %1810
        %1812 = vrot.lane.b32.xlu0 %v1772, 64
        %v1813 = vpop.permute.xlu0 %1812
        %1814 = vrot.lane.b32.xlu0 %v1773, 64
        %v1815 = vpop.permute.xlu0 %1814
        %1816 = vrot.lane.b32.xlu0 %v1774, 64
        %v1817 = vpop.permute.xlu0 %1816
        %1818 = vrot.lane.b32.xlu0 %v1775, 64
        %v1819 = vpop.permute.xlu0 %1818
        %1820 = vrot.lane.b32.xlu0 %v1776, 64
        %v1821 = vpop.permute.xlu0 %1820
        %1822 = vrot.lane.b32.xlu0 %v1777, 64
        %v1823 = vpop.permute.xlu0 %1822
        %1824 = vrot.lane.b32.xlu0 %v1778, 64
        %v1825 = vpop.permute.xlu0 %1824
        %1826 = vrot.lane.b32.xlu0 %v1779, 64
        %v1827 = vpop.permute.xlu0 %1826
        %1844 = vst.msk [vmem:[#allocation5 + $0x8] sm:$0xff] %vm829, %v1797
        %1845 = vst.msk [vmem:[#allocation5 + $0x20] sm:$0xff] %vm829, %v1799
        %1846 = vst.msk [vmem:[#allocation5 + $0x38] sm:$0xff] %vm829, %v1801
        %1847 = vst.msk [vmem:[#allocation5 + $0x50] sm:$0xff] %vm829, %v1803
        %1848 = vst.msk [vmem:[#allocation5 + $0x68] sm:$0xff] %vm829, %v1805
        %1849 = vst.msk [vmem:[#allocation5 + $0x80] sm:$0xff] %vm829, %v1807
        %1850 = vst.msk [vmem:[#allocation5 + $0x98] sm:$0xff] %vm829, %v1809
        %1851 = vst.msk [vmem:[#allocation5 + $0xb0] sm:$0xff] %vm829, %v1811
        %1852 = vst.msk [vmem:[#allocation5 + $0xc8] sm:$0xff] %vm829, %v1813
        %1853 = vst.msk [vmem:[#allocation5 + $0xe0] sm:$0xff] %vm829, %v1815
        %1854 = vst.msk [vmem:[#allocation5 + $0xf8] sm:$0xff] %vm829, %v1817
        %1855 = vst.msk [vmem:[#allocation5 + $0x110] sm:$0xff] %vm829, %v1819
        %1856 = vst.msk [vmem:[#allocation5 + $0x128] sm:$0xff] %vm829, %v1821
        %1857 = vst.msk [vmem:[#allocation5 + $0x140] sm:$0xff] %vm829, %v1823
        %1858 = vst.msk [vmem:[#allocation5 + $0x158] sm:$0xff] %vm829, %v1825
        %1859 = vst.msk [vmem:[#allocation5 + $0x170] sm:$0xff] %vm829, %v1827
        %v1860 = vld [vmem:[#allocation4 + $0x21] sm:$0xff]
        %v1861 = vld [vmem:[#allocation4 + $0x29] sm:$0xff]
        %v1862 = vld [vmem:[#allocation4 + $0x31] sm:$0xff]
        %v1863 = vld [vmem:[#allocation4 + $0x39] sm:$0xff]
        %v1864 = vld [vmem:[#allocation4 + $0x41] sm:$0xff]
        %v1865 = vld [vmem:[#allocation4 + $0x49] sm:$0xff]
        %v1866 = vld [vmem:[#allocation4 + $0x51] sm:$0xff]
        %v1867 = vld [vmem:[#allocation4 + $0x59] sm:$0xff]
        %v1868 = vld [vmem:[#allocation4 + $0x61] sm:$0xff]
        %v1869 = vld [vmem:[#allocation4 + $0x69] sm:$0xff]
        %v1870 = vld [vmem:[#allocation4 + $0x71] sm:$0xff]
        %v1871 = vld [vmem:[#allocation4 + $0x79] sm:$0xff]
        %v1872 = vld [vmem:[#allocation4 + $0x81] sm:$0xff]
        %v1873 = vld [vmem:[#allocation4 + $0x89] sm:$0xff]
        %v1874 = vld [vmem:[#allocation4 + $0x91] sm:$0xff]
        %v1875 = vld [vmem:[#allocation4 + $0x99] sm:$0xff]
        %1892 = vrot.lane.b32.xlu0 %v1860, 96
        %v1893 = vpop.permute.xlu0 %1892
        %1894 = vrot.lane.b32.xlu0 %v1861, 96
        %v1895 = vpop.permute.xlu0 %1894
        %1896 = vrot.lane.b32.xlu0 %v1862, 96
        %v1897 = vpop.permute.xlu0 %1896
        %1898 = vrot.lane.b32.xlu0 %v1863, 96
        %v1899 = vpop.permute.xlu0 %1898
        %1900 = vrot.lane.b32.xlu0 %v1864, 96
        %v1901 = vpop.permute.xlu0 %1900
        %1902 = vrot.lane.b32.xlu0 %v1865, 96
        %v1903 = vpop.permute.xlu0 %1902
        %1904 = vrot.lane.b32.xlu0 %v1866, 96
        %v1905 = vpop.permute.xlu0 %1904
        %1906 = vrot.lane.b32.xlu0 %v1867, 96
        %v1907 = vpop.permute.xlu0 %1906
        %1908 = vrot.lane.b32.xlu0 %v1868, 96
        %v1909 = vpop.permute.xlu0 %1908
        %1910 = vrot.lane.b32.xlu0 %v1869, 96
        %v1911 = vpop.permute.xlu0 %1910
        %1912 = vrot.lane.b32.xlu0 %v1870, 96
        %v1913 = vpop.permute.xlu0 %1912
        %1914 = vrot.lane.b32.xlu0 %v1871, 96
        %v1915 = vpop.permute.xlu0 %1914
        %1916 = vrot.lane.b32.xlu0 %v1872, 96
        %v1917 = vpop.permute.xlu0 %1916
        %1918 = vrot.lane.b32.xlu0 %v1873, 96
        %v1919 = vpop.permute.xlu0 %1918
        %1920 = vrot.lane.b32.xlu0 %v1874, 96
        %v1921 = vpop.permute.xlu0 %1920
        %1922 = vrot.lane.b32.xlu0 %v1875, 96
        %v1923 = vpop.permute.xlu0 %1922
        %1940 = vst.msk [vmem:[#allocation5 + $0x8] sm:$0xff] %vm854, %v1893
        %1941 = vst.msk [vmem:[#allocation5 + $0x20] sm:$0xff] %vm854, %v1895
        %1942 = vst.msk [vmem:[#allocation5 + $0x38] sm:$0xff] %vm854, %v1897
        %1943 = vst.msk [vmem:[#allocation5 + $0x50] sm:$0xff] %vm854, %v1899
        %1944 = vst.msk [vmem:[#allocation5 + $0x68] sm:$0xff] %vm854, %v1901
        %1945 = vst.msk [vmem:[#allocation5 + $0x80] sm:$0xff] %vm854, %v1903
        %1946 = vst.msk [vmem:[#allocation5 + $0x98] sm:$0xff] %vm854, %v1905
        %1947 = vst.msk [vmem:[#allocation5 + $0xb0] sm:$0xff] %vm854, %v1907
        %1948 = vst.msk [vmem:[#allocation5 + $0xc8] sm:$0xff] %vm854, %v1909
        %1949 = vst.msk [vmem:[#allocation5 + $0xe0] sm:$0xff] %vm854, %v1911
        %1950 = vst.msk [vmem:[#allocation5 + $0xf8] sm:$0xff] %vm854, %v1913
        %1951 = vst.msk [vmem:[#allocation5 + $0x110] sm:$0xff] %vm854, %v1915
        %1952 = vst.msk [vmem:[#allocation5 + $0x128] sm:$0xff] %vm854, %v1917
        %1953 = vst.msk [vmem:[#allocation5 + $0x140] sm:$0xff] %vm854, %v1919
        %1954 = vst.msk [vmem:[#allocation5 + $0x158] sm:$0xff] %vm854, %v1921
        %1955 = vst.msk [vmem:[#allocation5 + $0x170] sm:$0xff] %vm854, %v1923
        %v1956 = vld [vmem:[#allocation4 + $0x22] sm:$0xff]
        %v1957 = vld [vmem:[#allocation4 + $0x2a] sm:$0xff]
        %v1958 = vld [vmem:[#allocation4 + $0x32] sm:$0xff]
        %v1959 = vld [vmem:[#allocation4 + $0x3a] sm:$0xff]
        %v1960 = vld [vmem:[#allocation4 + $0x42] sm:$0xff]
        %v1961 = vld [vmem:[#allocation4 + $0x4a] sm:$0xff]
        %v1962 = vld [vmem:[#allocation4 + $0x52] sm:$0xff]
        %v1963 = vld [vmem:[#allocation4 + $0x5a] sm:$0xff]
        %v1964 = vld [vmem:[#allocation4 + $0x62] sm:$0xff]
        %v1965 = vld [vmem:[#allocation4 + $0x6a] sm:$0xff]
        %v1966 = vld [vmem:[#allocation4 + $0x72] sm:$0xff]
        %v1967 = vld [vmem:[#allocation4 + $0x7a] sm:$0xff]
        %v1968 = vld [vmem:[#allocation4 + $0x82] sm:$0xff]
        %v1969 = vld [vmem:[#allocation4 + $0x8a] sm:$0xff]
        %v1970 = vld [vmem:[#allocation4 + $0x92] sm:$0xff]
        %v1971 = vld [vmem:[#allocation4 + $0x9a] sm:$0xff]
        %1972 = vst.msk [vmem:[#allocation5 + $0x10] sm:$0xff] %vm405, %v1956
        %1973 = vst.msk [vmem:[#allocation5 + $0x28] sm:$0xff] %vm405, %v1957
        %1974 = vst.msk [vmem:[#allocation5 + $0x40] sm:$0xff] %vm405, %v1958
        %1975 = vst.msk [vmem:[#allocation5 + $0x58] sm:$0xff] %vm405, %v1959
        %1976 = vst.msk [vmem:[#allocation5 + $0x70] sm:$0xff] %vm405, %v1960
        %1977 = vst.msk [vmem:[#allocation5 + $0x88] sm:$0xff] %vm405, %v1961
        %1978 = vst.msk [vmem:[#allocation5 + $0xa0] sm:$0xff] %vm405, %v1962
        %1979 = vst.msk [vmem:[#allocation5 + $0xb8] sm:$0xff] %vm405, %v1963
        %1980 = vst.msk [vmem:[#allocation5 + $0xd0] sm:$0xff] %vm405, %v1964
        %1981 = vst.msk [vmem:[#allocation5 + $0xe8] sm:$0xff] %vm405, %v1965
        %1982 = vst.msk [vmem:[#allocation5 + $0x100] sm:$0xff] %vm405, %v1966
        %1983 = vst.msk [vmem:[#allocation5 + $0x118] sm:$0xff] %vm405, %v1967
        %1984 = vst.msk [vmem:[#allocation5 + $0x130] sm:$0xff] %vm405, %v1968
        %1985 = vst.msk [vmem:[#allocation5 + $0x148] sm:$0xff] %vm405, %v1969
        %1986 = vst.msk [vmem:[#allocation5 + $0x160] sm:$0xff] %vm405, %v1970
        %1987 = vst.msk [vmem:[#allocation5 + $0x178] sm:$0xff] %vm405, %v1971
        %v1988 = vld [vmem:[#allocation5] sm:$0xff]
        %v1989 = vld [vmem:[#allocation5 + $0x8] sm:$0xff]
        %v1990 = vld [vmem:[#allocation5 + $0x10] sm:$0xff]
        %v1991 = vld [vmem:[#allocation5 + $0x18] sm:$0xff]
        %v1992 = vld [vmem:[#allocation5 + $0x20] sm:$0xff]
        %v1993 = vld [vmem:[#allocation5 + $0x28] sm:$0xff]
        %v1994 = vld [vmem:[#allocation5 + $0x30] sm:$0xff]
        %v1995 = vld [vmem:[#allocation5 + $0x38] sm:$0xff]
        %v1996 = vld [vmem:[#allocation5 + $0x40] sm:$0xff]
        %v1997 = vld [vmem:[#allocation5 + $0x48] sm:$0xff]
        %v1998 = vld [vmem:[#allocation5 + $0x50] sm:$0xff]
        %v1999 = vld [vmem:[#allocation5 + $0x58] sm:$0xff]
        %v2000 = vld [vmem:[#allocation5 + $0x60] sm:$0xff]
        %v2001 = vld [vmem:[#allocation5 + $0x68] sm:$0xff]
        %v2002 = vld [vmem:[#allocation5 + $0x70] sm:$0xff]
        %v2003 = vld [vmem:[#allocation5 + $0x78] sm:$0xff]
        %v2004 = vld [vmem:[#allocation5 + $0x80] sm:$0xff]
        %v2005 = vld [vmem:[#allocation5 + $0x88] sm:$0xff]
        %v2006 = vld [vmem:[#allocation5 + $0x90] sm:$0xff]
        %v2007 = vld [vmem:[#allocation5 + $0x98] sm:$0xff]
        %v2008 = vld [vmem:[#allocation5 + $0xa0] sm:$0xff]
        %v2009 = vld [vmem:[#allocation5 + $0xa8] sm:$0xff]
        %v2010 = vld [vmem:[#allocation5 + $0xb0] sm:$0xff]
        %v2011 = vld [vmem:[#allocation5 + $0xb8] sm:$0xff]
        %v2012 = vld [vmem:[#allocation5 + $0xc0] sm:$0xff]
        %v2013 = vld [vmem:[#allocation5 + $0xc8] sm:$0xff]
        %v2014 = vld [vmem:[#allocation5 + $0xd0] sm:$0xff]
        %v2015 = vld [vmem:[#allocation5 + $0xd8] sm:$0xff]
        %v2016 = vld [vmem:[#allocation5 + $0xe0] sm:$0xff]
        %v2017 = vld [vmem:[#allocation5 + $0xe8] sm:$0xff]
        %v2018 = vld [vmem:[#allocation5 + $0xf0] sm:$0xff]
        %v2019 = vld [vmem:[#allocation5 + $0xf8] sm:$0xff]
        %v2020 = vld [vmem:[#allocation5 + $0x100] sm:$0xff]
        %v2021 = vld [vmem:[#allocation5 + $0x108] sm:$0xff]
        %v2022 = vld [vmem:[#allocation5 + $0x110] sm:$0xff]
        %v2023 = vld [vmem:[#allocation5 + $0x118] sm:$0xff]
        %v2024 = vld [vmem:[#allocation5 + $0x120] sm:$0xff]
        %v2025 = vld [vmem:[#allocation5 + $0x128] sm:$0xff]
        %v2026 = vld [vmem:[#allocation5 + $0x130] sm:$0xff]
        %v2027 = vld [vmem:[#allocation5 + $0x138] sm:$0xff]
        %v2028 = vld [vmem:[#allocation5 + $0x140] sm:$0xff]
        %v2029 = vld [vmem:[#allocation5 + $0x148] sm:$0xff]
        %v2030 = vld [vmem:[#allocation5 + $0x150] sm:$0xff]
        %v2031 = vld [vmem:[#allocation5 + $0x158] sm:$0xff]
        %v2032 = vld [vmem:[#allocation5 + $0x160] sm:$0xff]
        %v2033 = vld [vmem:[#allocation5 + $0x168] sm:$0xff]
        %v2034 = vld [vmem:[#allocation5 + $0x170] sm:$0xff]
        %v2035 = vld [vmem:[#allocation5 + $0x178] sm:$0xff]
        %v2036 = vld [vmem:[#allocation14] sm:$0xff]
        %v2037 = vld [vmem:[#allocation14 + $0x8] sm:$0xff]
        %v2038 = vld [vmem:[#allocation14 + $0x10] sm:$0xff]
        %v2039 = vld [vmem:[#allocation14 + $0x18] sm:$0xff]
        %v2040 = vld [vmem:[#allocation14 + $0x20] sm:$0xff]
        %v2041 = vld [vmem:[#allocation14 + $0x28] sm:$0xff]
        %v2042 = vld [vmem:[#allocation14 + $0x30] sm:$0xff]
        %v2043 = vld [vmem:[#allocation14 + $0x38] sm:$0xff]
        %v2044 = vld [vmem:[#allocation14 + $0x40] sm:$0xff]
        %v2045 = vld [vmem:[#allocation14 + $0x48] sm:$0xff]
        %v2046 = vld [vmem:[#allocation14 + $0x50] sm:$0xff]
        %v2047 = vld [vmem:[#allocation14 + $0x58] sm:$0xff]
        %v2048 = vld [vmem:[#allocation14 + $0x60] sm:$0xff]
        %v2049 = vld [vmem:[#allocation14 + $0x68] sm:$0xff]
        %v2050 = vld [vmem:[#allocation14 + $0x70] sm:$0xff]
        %v2051 = vld [vmem:[#allocation14 + $0x78] sm:$0xff]
        %v2052 = vld [vmem:[#allocation14 + $0x80] sm:$0xff]
        %v2053 = vld [vmem:[#allocation14 + $0x88] sm:$0xff]
        %v2054 = vld [vmem:[#allocation14 + $0x90] sm:$0xff]
        %v2055 = vld [vmem:[#allocation14 + $0x98] sm:$0xff]
        %v2056 = vld [vmem:[#allocation14 + $0xa0] sm:$0xff]
        %v2057 = vld [vmem:[#allocation14 + $0xa8] sm:$0xff]
        %v2058 = vld [vmem:[#allocation14 + $0xb0] sm:$0xff]
        %v2059 = vld [vmem:[#allocation14 + $0xb8] sm:$0xff]
        %v2060 = vld [vmem:[#allocation14 + $0xc0] sm:$0xff]
        %v2061 = vld [vmem:[#allocation14 + $0xc8] sm:$0xff]
        %v2062 = vld [vmem:[#allocation14 + $0xd0] sm:$0xff]
        %v2063 = vld [vmem:[#allocation14 + $0xd8] sm:$0xff]
        %v2064 = vld [vmem:[#allocation14 + $0xe0] sm:$0xff]
        %v2065 = vld [vmem:[#allocation14 + $0xe8] sm:$0xff]
        %v2066 = vld [vmem:[#allocation14 + $0xf0] sm:$0xff]
        %v2067 = vld [vmem:[#allocation14 + $0xf8] sm:$0xff]
        %v2068 = vld [vmem:[#allocation14 + $0x100] sm:$0xff]
        %v2069 = vld [vmem:[#allocation14 + $0x108] sm:$0xff]
        %v2070 = vld [vmem:[#allocation14 + $0x110] sm:$0xff]
        %v2071 = vld [vmem:[#allocation14 + $0x118] sm:$0xff]
        %v2072 = vld [vmem:[%s8] sm:$0x1]
        %v2074 = vlaneseq
        %v2075 = vshrl.u32 %v2074, 7
        %v2076 = vsub.s32 0, %v2075
        %v2077 = vrot.slane %v2072, %v2076
        %v2080 = vsel %vm405, %v1990, 0
        %v2083 = vsel %vm405, %v1993, 0
        %v2086 = vsel %vm405, %v1996, 0
        %v2089 = vsel %vm405, %v1999, 0
        %v2092 = vsel %vm405, %v2002, 0
        %v2095 = vsel %vm405, %v2005, 0
        %v2098 = vsel %vm405, %v2008, 0
        %v2101 = vsel %vm405, %v2011, 0
        %v2104 = vsel %vm405, %v2014, 0
        %v2107 = vsel %vm405, %v2017, 0
        %v2110 = vsel %vm405, %v2020, 0
        %v2113 = vsel %vm405, %v2023, 0
        %v2116 = vsel %vm405, %v2026, 0
        %v2119 = vsel %vm405, %v2029, 0
        %v2122 = vsel %vm405, %v2032, 0
        %v2125 = vsel %vm405, %v2035, 0
        %2127 = vmatprep.subr.mxu0 0.0
        %2128 = vmatpush1.msra.mxu0 %v2051
        %2129 = vmatprep.subr.mxu0 0.0
        %2130 = vmatpush1.msra.mxu0 %v2050
        %2131 = vmatprep.subr.mxu0 0.0
        %2132 = vmatpush1.msra.mxu0 %v2049
        %2133 = vmatprep.subr.mxu0 0.0
        %2134 = vmatpush1.msra.mxu0 %v2048
        %2135 = vmatprep.subr.mxu0 0.0
        %2136 = vmatpush1.msra.mxu0 %v2047
        %2137 = vmatprep.subr.mxu0 0.0
        %2138 = vmatpush1.msra.mxu0 %v2046
        %2139 = vmatprep.subr.mxu0 0.0
        %2140 = vmatpush1.msra.mxu0 %v2045
        %2141 = vmatprep.subr.mxu0 0.0
        %2142 = vmatpush1.msra.mxu0 %v2044
        %2143 = vmatprep.subr.mxu0 0.0
        %2144 = vmatpush1.msra.mxu0 %v2043
        %2145 = vmatprep.subr.mxu0 0.0
        %2146 = vmatpush1.msra.mxu0 %v2042
        %2147 = vmatprep.subr.mxu0 0.0
        %2148 = vmatpush1.msra.mxu0 %v2041
        %2149 = vmatprep.subr.mxu0 0.0
        %2150 = vmatpush1.msra.mxu0 %v2040
        %2151 = vmatprep.subr.mxu0 0.0
        %2152 = vmatpush1.msra.mxu0 %v2039
        %2153 = vmatprep.subr.mxu0 0.0
        %2154 = vmatpush1.msra.mxu0 %v2038
        %2155 = vmatprep.subr.mxu0 0.0
        %2156 = vmatpush1.msra.mxu0 %v2037
        %2157 = vmatprep.subr.mxu0 0.0
        %2158 = vmatpush1.msra.mxu0 %v2036
        %2159 = vmatprep.subr.mxu0 0.0
        %2160 = vmatpush2.msra.mxu0 %v2067
        %2161 = vmatprep.subr.mxu0 0.0
        %2162 = vmatpush2.msra.mxu0 %v2066
        %2163 = vmatprep.subr.mxu0 0.0
        %2164 = vmatpush2.msra.mxu0 %v2065
        %2165 = vmatprep.subr.mxu0 0.0
        %2166 = vmatpush2.msra.mxu0 %v2064
        %2167 = vmatprep.subr.mxu0 0.0
        %2168 = vmatpush2.msra.mxu0 %v2063
        %2169 = vmatprep.subr.mxu0 0.0
        %2170 = vmatpush2.msra.mxu0 %v2062
        %2171 = vmatprep.subr.mxu0 0.0
        %2172 = vmatpush2.msra.mxu0 %v2061
        %2173 = vmatprep.subr.mxu0 0.0
        %2174 = vmatpush2.msra.mxu0 %v2060
        %2175 = vmatprep.subr.mxu0 0.0
        %2176 = vmatpush2.msra.mxu0 %v2059
        %2177 = vmatprep.subr.mxu0 0.0
        %2178 = vmatpush2.msra.mxu0 %v2058
        %2179 = vmatprep.subr.mxu0 0.0
        %2180 = vmatpush2.msra.mxu0 %v2057
        %2181 = vmatprep.subr.mxu0 0.0
        %2182 = vmatpush2.msra.mxu0 %v2056
        %2183 = vmatprep.subr.mxu0 0.0
        %2184 = vmatpush2.msra.mxu0 %v2055
        %2185 = vmatprep.subr.mxu0 0.0
        %2186 = vmatpush2.msra.mxu0 %v2054
        %2187 = vmatprep.subr.mxu0 0.0
        %2188 = vmatpush2.msra.mxu0 %v2053
        %2189 = vmatprep.subr.mxu0 0.0
        %2190 = vmatpush2.msra.mxu0 %v2052
        %2191 = vmatprep.mubr.f32.mxu0 %v1989
        %2192 = vmatmul.mubr.f32.gmra.mxu0 %v1988
        %v2193 = vpop.f32.mrf.mxu0
        %v2194 = vadd.f32 %v2077, %v2193
        %v2195 = vpop.f32.mrf.mxu0
        %2196 = vmatprep.mubr.f32.mxu0 %v1992
        %2197 = vmatmul.mubr.f32.gmra.mxu0 %v1991
        %v2198 = vpop.f32.mrf.mxu0
        %v2199 = vadd.f32 %v2077, %v2198
        %v2200 = vpop.f32.mrf.mxu0
        %2201 = vmatprep.mubr.f32.mxu0 %v1995
        %2202 = vmatmul.mubr.f32.gmra.mxu0 %v1994
        %v2203 = vpop.f32.mrf.mxu0
        %v2204 = vadd.f32 %v2077, %v2203
        %v2205 = vpop.f32.mrf.mxu0
        %2206 = vmatprep.mubr.f32.mxu0 %v1998
        %2207 = vmatmul.mubr.f32.gmra.mxu0 %v1997
        %v2208 = vpop.f32.mrf.mxu0
        %v2209 = vadd.f32 %v2077, %v2208
        %v2210 = vpop.f32.mrf.mxu0
        %2211 = vmatprep.mubr.f32.mxu0 %v2001
        %2212 = vmatmul.mubr.f32.gmra.mxu0 %v2000
        %v2213 = vpop.f32.mrf.mxu0
        %v2214 = vadd.f32 %v2077, %v2213
        %v2215 = vpop.f32.mrf.mxu0
        %2216 = vmatprep.mubr.f32.mxu0 %v2004
        %2217 = vmatmul.mubr.f32.gmra.mxu0 %v2003
        %v2218 = vpop.f32.mrf.mxu0
        %v2219 = vadd.f32 %v2077, %v2218
        %v2220 = vpop.f32.mrf.mxu0
        %2221 = vmatprep.mubr.f32.mxu0 %v2007
        %2222 = vmatmul.mubr.f32.gmra.mxu0 %v2006
        %v2223 = vpop.f32.mrf.mxu0
        %v2224 = vadd.f32 %v2077, %v2223
        %v2225 = vpop.f32.mrf.mxu0
        %2226 = vmatprep.mubr.f32.mxu0 %v2010
        %2227 = vmatmul.mubr.f32.gmra.mxu0 %v2009
        %v2228 = vpop.f32.mrf.mxu0
        %v2229 = vadd.f32 %v2077, %v2228
        %v2230 = vpop.f32.mrf.mxu0
        %2231 = vmatprep.mubr.f32.mxu0 %v2013
        %2232 = vmatmul.mubr.f32.gmra.mxu0 %v2012
        %v2233 = vpop.f32.mrf.mxu0
        %v2234 = vadd.f32 %v2077, %v2233
        %v2235 = vpop.f32.mrf.mxu0
        %2236 = vmatprep.mubr.f32.mxu0 %v2016
        %2237 = vmatmul.mubr.f32.gmra.mxu0 %v2015
        %v2238 = vpop.f32.mrf.mxu0
        %v2239 = vadd.f32 %v2077, %v2238
        %v2240 = vpop.f32.mrf.mxu0
        %2241 = vmatprep.mubr.f32.mxu0 %v2019
        %2242 = vmatmul.mubr.f32.gmra.mxu0 %v2018
        %v2243 = vpop.f32.mrf.mxu0
        %v2244 = vadd.f32 %v2077, %v2243
        %v2245 = vpop.f32.mrf.mxu0
        %2246 = vmatprep.mubr.f32.mxu0 %v2022
        %2247 = vmatmul.mubr.f32.gmra.mxu0 %v2021
        %v2248 = vpop.f32.mrf.mxu0
        %v2249 = vadd.f32 %v2077, %v2248
        %v2250 = vpop.f32.mrf.mxu0
        %2251 = vmatprep.mubr.f32.mxu0 %v2025
        %2252 = vmatmul.mubr.f32.gmra.mxu0 %v2024
        %v2253 = vpop.f32.mrf.mxu0
        %v2254 = vadd.f32 %v2077, %v2253
        %v2255 = vpop.f32.mrf.mxu0
        %2256 = vmatprep.mubr.f32.mxu0 %v2028
        %2257 = vmatmul.mubr.f32.gmra.mxu0 %v2027
        %v2258 = vpop.f32.mrf.mxu0
        %v2259 = vadd.f32 %v2077, %v2258
        %v2260 = vpop.f32.mrf.mxu0
        %2261 = vmatprep.mubr.f32.mxu0 %v2031
        %2262 = vmatmul.mubr.f32.gmra.mxu0 %v2030
        %v2263 = vpop.f32.mrf.mxu0
        %v2264 = vadd.f32 %v2077, %v2263
        %v2265 = vpop.f32.mrf.mxu0
        %2266 = vmatprep.mubr.f32.mxu0 %v2034
        %2267 = vmatmul.mubr.f32.gmra.mxu0 %v2033
        %v2268 = vpop.f32.mrf.mxu0
        %v2269 = vadd.f32 %v2077, %v2268
        %v2270 = vpop.f32.mrf.mxu0
        %2271 = vdwg.mxu0
        %2272 = vmatprep.subr.mxu0 0.0
        %2273 = vmatpush1.msra.mxu0 0.0
        %2274 = vmatprep.subr.mxu0 0.0
        %2275 = vmatpush1.msra.mxu0 0.0
        %2276 = vmatprep.subr.mxu0 0.0
        %2277 = vmatpush1.msra.mxu0 0.0
        %2278 = vmatprep.subr.mxu0 0.0
        %2279 = vmatpush1.msra.mxu0 0.0
        %2280 = vmatprep.subr.mxu0 0.0
        %2281 = vmatpush1.msra.mxu0 0.0
        %2282 = vmatprep.subr.mxu0 0.0
        %2283 = vmatpush1.msra.mxu0 0.0
        %2284 = vmatprep.subr.mxu0 0.0
        %2285 = vmatpush1.msra.mxu0 0.0
        %2286 = vmatprep.subr.mxu0 0.0
        %2287 = vmatpush1.msra.mxu0 0.0
        %2288 = vmatprep.subr.mxu0 0.0
        %2289 = vmatpush1.msra.mxu0 0.0
        %2290 = vmatprep.subr.mxu0 0.0
        %2291 = vmatpush1.msra.mxu0 0.0
        %2292 = vmatprep.subr.mxu0 0.0
        %2293 = vmatpush1.msra.mxu0 0.0
        %2294 = vmatprep.subr.mxu0 0.0
        %2295 = vmatpush1.msra.mxu0 0.0
        %2296 = vmatprep.subr.mxu0 0.0
        %2297 = vmatpush1.msra.mxu0 %v2071
        %2298 = vmatprep.subr.mxu0 0.0
        %2299 = vmatpush1.msra.mxu0 %v2070
        %2300 = vmatprep.subr.mxu0 0.0
        %2301 = vmatpush1.msra.mxu0 %v2069
        %2302 = vmatprep.subr.mxu0 0.0
        %2303 = vmatpush1.msra.mxu0 %v2068
        %2304 = vmatprep.subr.mxu0 0.0
        %2305 = vmatpush2.msra.mxu0 0.0
        %2306 = vmatprep.subr.mxu0 0.0
        %2307 = vmatpush2.msra.mxu0 0.0
        %2308 = vmatprep.subr.mxu0 0.0
        %2309 = vmatpush2.msra.mxu0 0.0
        %2310 = vmatprep.subr.mxu0 0.0
        %2311 = vmatpush2.msra.mxu0 0.0
        %2312 = vmatprep.subr.mxu0 0.0
        %2313 = vmatpush2.msra.mxu0 0.0
        %2314 = vmatprep.subr.mxu0 0.0
        %2315 = vmatpush2.msra.mxu0 0.0
        %2316 = vmatprep.subr.mxu0 0.0
        %2317 = vmatpush2.msra.mxu0 0.0
        %2318 = vmatprep.subr.mxu0 0.0
        %2319 = vmatpush2.msra.mxu0 0.0
        %2320 = vmatprep.subr.mxu0 0.0
        %2321 = vmatpush2.msra.mxu0 0.0
        %2322 = vmatprep.subr.mxu0 0.0
        %2323 = vmatpush2.msra.mxu0 0.0
        %2324 = vmatprep.subr.mxu0 0.0
        %2325 = vmatpush2.msra.mxu0 0.0
        %2326 = vmatprep.subr.mxu0 0.0
        %2327 = vmatpush2.msra.mxu0 0.0
        %2328 = vmatprep.subr.mxu0 0.0
        %2329 = vmatpush2.msra.mxu0 0.0
        %2330 = vmatprep.subr.mxu0 0.0
        %2331 = vmatpush2.msra.mxu0 0.0
        %2332 = vmatprep.subr.mxu0 0.0
        %2333 = vmatpush2.msra.mxu0 0.0
        %2334 = vmatprep.subr.mxu0 0.0
        %2335 = vmatpush2.msra.mxu0 0.0
        %2336 = vmatprep.mubr.f32.mxu0 0.0
        %2337 = vmatmul.mubr.f32.gmra.mxu0 %v2080
        %v2338 = vpop.f32.mrf.mxu0
        %v2339 = vadd.f32 %v2194, %v2338
        %v2340 = vpop.f32.mrf.mxu0
        %2341 = vmatprep.mubr.f32.mxu0 0.0
        %2342 = vmatmul.mubr.f32.gmra.mxu0 %v2083
        %v2343 = vpop.f32.mrf.mxu0
        %v2344 = vadd.f32 %v2199, %v2343
        %v2345 = vpop.f32.mrf.mxu0
        %2346 = vmatprep.mubr.f32.mxu0 0.0
        %2347 = vmatmul.mubr.f32.gmra.mxu0 %v2086
        %v2348 = vpop.f32.mrf.mxu0
        %v2349 = vadd.f32 %v2204, %v2348
        %v2350 = vpop.f32.mrf.mxu0
        %2351 = vmatprep.mubr.f32.mxu0 0.0
        %2352 = vmatmul.mubr.f32.gmra.mxu0 %v2089
        %v2353 = vpop.f32.mrf.mxu0
        %v2354 = vadd.f32 %v2209, %v2353
        %v2355 = vpop.f32.mrf.mxu0
        %2356 = vmatprep.mubr.f32.mxu0 0.0
        %2357 = vmatmul.mubr.f32.gmra.mxu0 %v2092
        %v2358 = vpop.f32.mrf.mxu0
        %v2359 = vadd.f32 %v2214, %v2358
        %v2360 = vpop.f32.mrf.mxu0
        %2361 = vmatprep.mubr.f32.mxu0 0.0
        %2362 = vmatmul.mubr.f32.gmra.mxu0 %v2095
        %v2363 = vpop.f32.mrf.mxu0
        %v2364 = vadd.f32 %v2219, %v2363
        %v2365 = vpop.f32.mrf.mxu0
        %2366 = vmatprep.mubr.f32.mxu0 0.0
        %2367 = vmatmul.mubr.f32.gmra.mxu0 %v2098
        %v2368 = vpop.f32.mrf.mxu0
        %v2369 = vadd.f32 %v2224, %v2368
        %v2370 = vpop.f32.mrf.mxu0
        %2371 = vmatprep.mubr.f32.mxu0 0.0
        %2372 = vmatmul.mubr.f32.gmra.mxu0 %v2101
        %v2373 = vpop.f32.mrf.mxu0
        %v2374 = vadd.f32 %v2229, %v2373
        %v2375 = vpop.f32.mrf.mxu0
        %2376 = vmatprep.mubr.f32.mxu0 0.0
        %2377 = vmatmul.mubr.f32.gmra.mxu0 %v2104
        %v2378 = vpop.f32.mrf.mxu0
        %v2379 = vadd.f32 %v2234, %v2378
        %v2380 = vpop.f32.mrf.mxu0
        %2381 = vmatprep.mubr.f32.mxu0 0.0
        %2382 = vmatmul.mubr.f32.gmra.mxu0 %v2107
        %v2383 = vpop.f32.mrf.mxu0
        %v2384 = vadd.f32 %v2239, %v2383
        %v2385 = vpop.f32.mrf.mxu0
        %2386 = vmatprep.mubr.f32.mxu0 0.0
        %2387 = vmatmul.mubr.f32.gmra.mxu0 %v2110
        %v2388 = vpop.f32.mrf.mxu0
        %v2389 = vadd.f32 %v2244, %v2388
        %v2390 = vpop.f32.mrf.mxu0
        %2391 = vmatprep.mubr.f32.mxu0 0.0
        %2392 = vmatmul.mubr.f32.gmra.mxu0 %v2113
        %v2393 = vpop.f32.mrf.mxu0
        %v2394 = vadd.f32 %v2249, %v2393
        %v2395 = vpop.f32.mrf.mxu0
        %2396 = vmatprep.mubr.f32.mxu0 0.0
        %2397 = vmatmul.mubr.f32.gmra.mxu0 %v2116
        %v2398 = vpop.f32.mrf.mxu0
        %v2399 = vadd.f32 %v2254, %v2398
        %v2400 = vpop.f32.mrf.mxu0
        %2401 = vmatprep.mubr.f32.mxu0 0.0
        %2402 = vmatmul.mubr.f32.gmra.mxu0 %v2119
        %v2403 = vpop.f32.mrf.mxu0
        %v2404 = vadd.f32 %v2259, %v2403
        %v2405 = vpop.f32.mrf.mxu0
        %2406 = vmatprep.mubr.f32.mxu0 0.0
        %2407 = vmatmul.mubr.f32.gmra.mxu0 %v2122
        %v2408 = vpop.f32.mrf.mxu0
        %v2409 = vadd.f32 %v2264, %v2408
        %v2410 = vpop.f32.mrf.mxu0
        %2411 = vmatprep.mubr.f32.mxu0 0.0
        %2412 = vmatmul.mubr.f32.gmra.mxu0 %v2125
        %v2413 = vpop.f32.mrf.mxu0
        %v2414 = vadd.f32 %v2269, %v2413
        %v2415 = vpop.f32.mrf.mxu0
        %2416 = vdwg.mxu0
        %v2417 = vmul.f32 %v2339, 0.5
        %v2418 = vmul.f32 %v2344, 0.5
        %v2419 = vmul.f32 %v2349, 0.5
        %v2420 = vmul.f32 %v2354, 0.5
        %v2421 = vmul.f32 %v2359, 0.5
        %v2422 = vmul.f32 %v2364, 0.5
        %v2423 = vmul.f32 %v2369, 0.5
        %v2424 = vmul.f32 %v2374, 0.5
        %v2425 = vmul.f32 %v2379, 0.5
        %v2426 = vmul.f32 %v2384, 0.5
        %v2427 = vmul.f32 %v2389, 0.5
        %v2428 = vmul.f32 %v2394, 0.5
        %v2429 = vmul.f32 %v2399, 0.5
        %v2430 = vmul.f32 %v2404, 0.5
        %v2431 = vmul.f32 %v2409, 0.5
        %v2432 = vmul.f32 %v2414, 0.5
        %v2433 = vtanh.pop %v2417
        %v2434 = vtanh.pop %v2418
        %v2435 = vtanh.pop %v2419
        %v2436 = vtanh.pop %v2420
        %v2437 = vtanh.pop %v2421
        %v2438 = vtanh.pop %v2422
        %v2439 = vtanh.pop %v2423
        %v2440 = vtanh.pop %v2424
        %v2441 = vtanh.pop %v2425
        %v2442 = vtanh.pop %v2426
        %v2443 = vtanh.pop %v2427
        %v2444 = vtanh.pop %v2428
        %v2445 = vtanh.pop %v2429
        %v2446 = vtanh.pop %v2430
        %v2447 = vtanh.pop %v2431
        %v2448 = vtanh.pop %v2432
        %v2449 = vadd.f32 %v2433, 1.0
        %v2450 = vadd.f32 %v2434, 1.0
        %v2451 = vadd.f32 %v2435, 1.0
        %v2452 = vadd.f32 %v2436, 1.0
        %v2453 = vadd.f32 %v2437, 1.0
        %v2454 = vadd.f32 %v2438, 1.0
        %v2455 = vadd.f32 %v2439, 1.0
        %v2456 = vadd.f32 %v2440, 1.0
        %v2457 = vadd.f32 %v2441, 1.0
        %v2458 = vadd.f32 %v2442, 1.0
        %v2459 = vadd.f32 %v2443, 1.0
        %v2460 = vadd.f32 %v2444, 1.0
        %v2461 = vadd.f32 %v2445, 1.0
        %v2462 = vadd.f32 %v2446, 1.0
        %v2463 = vadd.f32 %v2447, 1.0
        %v2464 = vadd.f32 %v2448, 1.0
        %v2465 = vmul.f32 %v2449, 0.5
        %v2466 = vmul.f32 %v2450, 0.5
        %v2467 = vmul.f32 %v2451, 0.5
        %v2468 = vmul.f32 %v2452, 0.5
        %v2469 = vmul.f32 %v2453, 0.5
        %v2470 = vmul.f32 %v2454, 0.5
        %v2471 = vmul.f32 %v2455, 0.5
        %v2472 = vmul.f32 %v2456, 0.5
        %v2473 = vmul.f32 %v2457, 0.5
        %v2474 = vmul.f32 %v2458, 0.5
        %v2475 = vmul.f32 %v2459, 0.5
        %v2476 = vmul.f32 %v2460, 0.5
        %v2477 = vmul.f32 %v2461, 0.5
        %v2478 = vmul.f32 %v2462, 0.5
        %v2479 = vmul.f32 %v2463, 0.5
        %v2480 = vmul.f32 %v2464, 0.5
        %2481 = vst [vmem:[%s396] sm:$0xff] %v2465
        %2482 = vst [vmem:[%s396 + $0x8] sm:$0xff] %v2466
        %2483 = vst [vmem:[%s396 + $0x10] sm:$0xff] %v2467
        %2484 = vst [vmem:[%s396 + $0x18] sm:$0xff] %v2468
        %2485 = vst [vmem:[%s396 + $0x20] sm:$0xff] %v2469
        %2486 = vst [vmem:[%s396 + $0x28] sm:$0xff] %v2470
        %2487 = vst [vmem:[%s396 + $0x30] sm:$0xff] %v2471
        %2488 = vst [vmem:[%s396 + $0x38] sm:$0xff] %v2472
        %2489 = vst [vmem:[%s396 + $0x40] sm:$0xff] %v2473
        %2490 = vst [vmem:[%s396 + $0x48] sm:$0xff] %v2474
        %2491 = vst [vmem:[%s396 + $0x50] sm:$0xff] %v2475
        %2492 = vst [vmem:[%s396 + $0x58] sm:$0xff] %v2476
        %2493 = vst [vmem:[%s396 + $0x60] sm:$0xff] %v2477
        %2494 = vst [vmem:[%s396 + $0x68] sm:$0xff] %v2478
        %2495 = vst [vmem:[%s396 + $0x70] sm:$0xff] %v2479
        %2496 = vst [vmem:[%s396 + $0x78] sm:$0xff] %v2480
        %s2497 = smul.u32 16, %s24
        %p2498 = scmp.lt.s32.totalorder %s2497, 31
        %s2499 = scalar_select %p2498, %s2497, 31
        %s2500 = smul.addr %s2499, 8
        %s2501 = scalar_lea.vmem %s9, %s2500
        // Predicated region
        $region81: #{decoder_forward.1} parent=55 // pred_check
          %p2502 = pneg %p231
        $region82: #{decoder_forward.1} parent=55 // pred_check_branch
          %2504 = sbr.rel (%p2502) target = $region84
        $region83: #{decoder_forward.1} parent=55 // pred_region
          %s2505 = smul.u32 16, %s24
        $region84: #{decoder_forward.1} parent=55 // pred_fallthru
          _
      $region56: #{decoder_forward.1} parent=5 // pred_fallthru
        _
      %p2506 = scmp.le.s32.totalorder 2, %s19
      // Predicated region
      $region85: #{decoder_forward.1} parent=5 // pred_check
        %p2507 = pneg %p2506
      $region86: #{decoder_forward.1} parent=5 // pred_check_branch
        %2509 = sbr.rel (%p2507) target = $region88
      $region87: #{decoder_forward.1} parent=5 // pred_region
        %s2510 = ssub.s32 %s19, 2
        // Predicated region
        $region89: #{decoder_forward.1} parent=87 // pred_check
          %p2511 = pneg %p237
        $region90: #{decoder_forward.1} parent=87 // pred_check_branch
          %2513 = sbr.rel (%p2511) target = $region92
        $region91: #{decoder_forward.1} parent=87 // pred_region
          %s2514 = smul.u32 16, %s25
          %p2515 = scmp.lt.s32.totalorder %s2514, 31
          %s2516 = scalar_select %p2515, %s2514, 31
          %s2517 = smul.addr %s2516, 8
          %s2518 = scalar_lea.vmem %s9, %s2517
        $region92: #{decoder_forward.1} parent=87 // pred_fallthru
          _
      $region88: #{decoder_forward.1} parent=5 // pred_fallthru
        _
    $region6: #{decoder_forward.1} parent=1 // loop_footer
      %s23 = sadd.s32 1, %s19
    $region7: #{decoder_forward.1} parent=1 // loop_footer_branch
      %18 = sbr.rel target = $region3
    $region8: #{decoder_forward.1} parent=1 // loop_exit
      _
    %2519 = vsyncpa [#allocation7], 1
    %s2520 = scalar_lea.sflag [#allocation7], 1
    %2521 = vsyncpa %s2520, 1
    %2522 = vsyncpa [#allocation9], 1
    %2523 = vsyncpa [#allocation12], 1
    %2524 = vsyncpa [#allocation15], 1

</llo_original>
